<compile_context>
chip_gen: v5e
topology: v5e:2x2
jax: 0.10.0
libtpu: 0.0.40
codegen_flags: <defaults>
</compile_context>

<pallas_src>
import numpy as np
import jax
import jax.numpy as jnp
from jax.experimental import pallas as pl
from jax.experimental.pallas import tpu as pltpu

# ----------------------------- dimensions -----------------------------------
HID = 32
SEG_C = 5                          # semantic classes
PPN_C = 5                          # 3 point offsets + 2 scores
EMB_C = 3                          # embedding dims
HEAD_C = SEG_C + PPN_C + EMB_C + 1 + 1   # 15 raw head columns (+seed, +margin)
OUT_C = HEAD_C + 2                 # + fused semantic label + fused ppn score = 17
NODE_GEO_C = 16                    # synthetic geometric node-encoder features
EDGE_GEO_C = 19                    # synthetic geometric edge-encoder features
PPN_FEAT_P = 6                     # particle-gnn ppn feats (start, dir)
PPN_FEAT_I = 12                    # interaction-gnn ppn feats

LANE = 128                         # lane-dense output width
TILE_M = 512                       # row tile (fits all of v5e/v6e/v7x VMEM easily)
MAX_SEEDS = 2

_CP = pltpu.CompilerParams(dimension_semantics=("parallel",))


def _ceil_to(n, m):
    return ((n + m - 1) // m) * m


def _row_spec(width):
    return pl.BlockSpec((TILE_M, width), lambda i: (i, 0))


def _resident_spec(shape):
    # weights / biases / centers stay resident across row tiles
    return pl.BlockSpec(shape, lambda i: (0, 0))


# ----------------------------- Pallas kernels --------------------------------
def _backbone_kernel(x_ref, w1_ref, b1_ref, w2_ref, b2_ref, wh_ref, bh_ref, o_ref):
    # bf16 MXU matmuls with f32 accumulation; activations in f32.
    x = x_ref[...].astype(jnp.bfloat16)
    h = jnp.maximum(jnp.dot(x, w1_ref[...], preferred_element_type=jnp.float32)
                    + b1_ref[...], 0.0)
    h = jnp.maximum(jnp.dot(h.astype(jnp.bfloat16), w2_ref[...],
                            preferred_element_type=jnp.float32) + b2_ref[...], 0.0)
    head = jnp.dot(h.astype(jnp.bfloat16), wh_ref[...],
                   preferred_element_type=jnp.float32) + bh_ref[...]

    seg = head[:, 0:SEG_C]
    seed_logit = head[:, 13:14]
    marg_raw = head[:, 14:15]

    # fused head activations (EUP slot is otherwise idle here)
    seediness = 1.0 / (1.0 + jnp.exp(-seed_logit))                       # sigmoid
    # numerically stable softplus + 0.1
    margins = (jnp.maximum(marg_raw, 0.0)
               + jnp.log(1.0 + jnp.exp(-jnp.abs(marg_raw))) + 0.1)

    # semantic argmax (first index achieving the row max), as float column
    row_max = jnp.max(seg, axis=1, keepdims=True)
    col_idx = jax.lax.broadcasted_iota(jnp.int32, seg.shape, 1).astype(jnp.float32)
    sem = jnp.min(jnp.where(seg >= row_max, col_idx, jnp.float32(SEG_C)),
                  axis=1, keepdims=True)

    # PPN last-score softmax over head cols [8,9]  == sigmoid(p9 - p8)
    ppn_score = 1.0 / (1.0 + jnp.exp(-(head[:, 9:10] - head[:, 8:9])))

    pad = jnp.zeros((head.shape[0], LANE - OUT_C), jnp.float32)
    # lane-dense 128-wide output slab
    o_ref[...] = jnp.concatenate(
        [head[:, 0:13], seediness, margins, sem, ppn_score, pad], axis=1)


def _mlp2_kernel(x_ref, w1_ref, b1_ref, w2_ref, b2_ref, o_ref):
    x = x_ref[...].astype(jnp.bfloat16)
    h = jnp.maximum(jnp.dot(x, w1_ref[...], preferred_element_type=jnp.float32)
                    + b1_ref[...], 0.0)
    out = jnp.dot(h.astype(jnp.bfloat16), w2_ref[...],
                  preferred_element_type=jnp.float32) + b2_ref[...]
    pad = jnp.zeros((out.shape[0], LANE - out.shape[1]), jnp.float32)
    o_ref[...] = jnp.concatenate([out, pad], axis=1)


def _gaussian_kernel(e_ref, c_ref, inv_ref, p_ref):
    # p[n,k] = exp(-||e_n - c_k||^2 * inv_k) with inv_k = 1/(2*margin_k^2)
    # d=3 inner dim -> MXU would be <1% utilized; do it with VPU broadcasts
    # (also avoids the e2 - 2ec + c2 cancellation issue).
    e = e_ref[...]                 # (TILE_M, 3) f32
    c = c_ref[...]                 # (3, K_PAD) f32, resident
    d2 = jnp.zeros((e.shape[0], c.shape[1]), jnp.float32)
    for d in range(EMB_C):         # unrolled at trace time
        diff = e[:, d:d + 1] - c[d:d + 1, :]
        d2 = d2 + diff * diff
    p_ref[...] = jnp.exp(-d2 * inv_ref[...])


# ----------------------------- Pallas wrappers --------------------------------
def pallas_backbone(x_np, p):
    """x_np: (N, >=5) numpy. Returns device array (N, OUT_C)."""
    n = x_np.shape[0]
    n_pad = _ceil_to(max(n, 1), TILE_M)
    xp = np.zeros((n_pad, 5), np.float32)
    xp[:n] = x_np[:, :5]
    args = (jnp.asarray(xp), p["w1"], p["b1"], p["w2"], p["b2"], p["wh"], p["bh"])
    out = pl.pallas_call(
        _backbone_kernel,
        out_shape=jax.ShapeDtypeStruct((n_pad, LANE), jnp.float32),
        grid=(n_pad // TILE_M,),
        in_specs=[_row_spec(5)] + [_resident_spec(a.shape) for a in args[1:]],
        out_specs=_row_spec(LANE),
        compiler_params=_CP,
    )(*args)
    return out[:n, :OUT_C]


def pallas_mlp2(x_np, p):
    """x_np: (N, D) numpy. Returns numpy (N, out_dim)."""
    out_dim = int(p["w2"].shape[1])
    n = x_np.shape[0]
    if n == 0:
        return np.zeros((0, out_dim), np.float32)
    din = x_np.shape[1]
    n_pad = _ceil_to(n, TILE_M)
    xp = np.zeros((n_pad, din), np.float32)
    xp[:n] = x_np
    args = (jnp.asarray(xp), p["w1"], p["b1"], p["w2"], p["b2"])
    out = pl.pallas_call(
        _mlp2_kernel,
        out_shape=jax.ShapeDtypeStruct((n_pad, LANE), jnp.float32),
        grid=(n_pad // TILE_M,),
        in_specs=[_row_spec(din)] + [_resident_spec(a.shape) for a in args[1:]],
        out_specs=_row_spec(LANE),
        compiler_params=_CP,
    )(*args)
    return np.asarray(out[:n, :out_dim])


def pallas_gaussian_batched(emb_np, centers_np, inv_np):
    """One call for ALL (batch, class) groups: emb (N,3), centers (K,3), inv (K,)."""
    n, k = emb_np.shape[0], centers_np.shape[0]
    n_pad = _ceil_to(max(n, 1), TILE_M)
    k_pad = _ceil_to(max(k, 1), LANE)
    e = np.zeros((n_pad, EMB_C), np.float32); e[:n] = emb_np
    c = np.zeros((EMB_C, k_pad), np.float32); c[:, :k] = centers_np.T
    inv = np.zeros((1, k_pad), np.float32); inv[0, :k] = inv_np
    out = pl.pallas_call(
        _gaussian_kernel,
        out_shape=jax.ShapeDtypeStruct((n_pad, k_pad), jnp.float32),
        grid=(n_pad // TILE_M,),
        in_specs=[_row_spec(EMB_C),
                  _resident_spec((EMB_C, k_pad)),
                  _resident_spec((1, k_pad))],
        out_specs=pl.BlockSpec((TILE_M, k_pad), lambda i: (i, 0)),
        compiler_params=_CP,
    )(jnp.asarray(e), jnp.asarray(c), jnp.asarray(inv))
    return np.asarray(out[:n, :k])


# ----------------------------- parameters -------------------------------------
def init_params(key):
    ks = jax.random.split(key, 10)

    def lin(k, din, dout, scale=0.1):
        # matmul weights kept in bf16 (MXU fast path); biases in f32
        return (jax.random.normal(k, (din, dout), jnp.float32) * scale).astype(jnp.bfloat16)

    bh = jnp.zeros((1, HEAD_C), jnp.float32).at[0, 0].set(1.0).at[0, 4].set(-1.0)
    backbone = dict(w1=lin(ks[0], 5, HID), b1=jnp.zeros((1, HID), jnp.float32),
                    w2=lin(ks[1], HID, HID), b2=jnp.zeros((1, HID), jnp.float32),
                    wh=lin(ks[2], HID, HEAD_C), bh=bh)

    dn_p = NODE_GEO_C + PPN_FEAT_P                       # 22
    dn_i = NODE_GEO_C + PPN_FEAT_I                       # 28
    pgnn_node = dict(w1=lin(ks[3], dn_p, HID), b1=jnp.zeros((1, HID), jnp.float32),
                     w2=lin(ks[4], HID, 2), b2=jnp.zeros((1, 2), jnp.float32))
    pgnn_edge = dict(w1=lin(ks[5], 2 * dn_p + EDGE_GEO_C, HID),
                     b1=jnp.zeros((1, HID), jnp.float32),
                     w2=lin(ks[6], HID, 2), b2=jnp.zeros((1, 2), jnp.float32))
    ignn_edge = dict(w1=lin(ks[7], 2 * dn_i + EDGE_GEO_C, HID),
                     b1=jnp.zeros((1, HID), jnp.float32),
                     w2=lin(ks[8], HID, 2), b2=jnp.zeros((1, 2), jnp.float32))
    return dict(backbone=backbone, pgnn_node=pgnn_node,
                pgnn_edge=pgnn_edge, ignn_edge=ignn_edge)


# ----------------------------- host-side glue ----------------------------------
def _obj_array(lst):
    a = np.empty(len(lst), dtype=object)
    for i, v in enumerate(lst):
        a[i] = v
    return a


def cluster_direction(coords, start, max_dist=5.0):
    rel = coords - start[None, :]
    d = np.linalg.norm(rel, axis=1)
    sel = d < max_dist
    if not np.any(sel):
        return np.zeros(3, dtype=np.float32)
    dirv = rel[sel].mean(axis=0)
    n = np.linalg.norm(dirv)
    if n > 0:
        dirv = dirv / n
    return dirv.astype(np.float32)


def complete_graph(batch_ids):
    edges = []
    for b in np.unique(batch_ids):
        idx = np.where(batch_ids == b)[0]
        for ii in range(len(idx)):
            for jj in range(ii + 1, len(idx)):
                edges.append([idx[ii], idx[jj]])
    if not edges:
        return np.zeros((2, 0), dtype=np.int64)
    return np.array(edges, dtype=np.int64).T


def node_encoder_np(data, clusts):
    feats = []
    for c in clusts:
        pts, vals = data[c, :3], data[c, 4]
        f = np.concatenate([pts.mean(axis=0), pts.std(axis=0),
                            pts.min(axis=0), pts.max(axis=0),
                            [float(len(c)), vals.mean(), vals.std(), 0.0]])
        feats.append(f)
    if not feats:
        return np.zeros((0, NODE_GEO_C), np.float32)
    return np.stack(feats).astype(np.float32)


def edge_encoder_np(data, clusts, edge_index):
    feats = []
    for k in range(edge_index.shape[1]):
        i, j = int(edge_index[0, k]), int(edge_index[1, k])
        ci = data[clusts[i], :3].mean(axis=0)
        cj = data[clusts[j], :3].mean(axis=0)
        diff = cj - ci
        f = np.concatenate([ci, cj, diff, [np.linalg.norm(diff)],
                            np.outer(diff, diff).reshape(-1)])
        feats.append(f)
    if not feats:
        return np.zeros((0, EDGE_GEO_C), np.float32)
    return np.stack(feats).astype(np.float32)


def cluster_fragments(embeddings, seediness, margins, batch_labels, semantic_labels,
                      s_thresholds, p_thresholds, cluster_all, min_frag_size,
                      max_seeds=MAX_SEEDS):
    # TODO(synk): iterative fit_predict (sequential seed selection + masking) is
    # simplified to single-shot top-K seed assignment; all (batch, class) groups
    # share ONE batched Pallas gaussian call instead of per-group launches.
    groups, centers_list, inv_list = [], [], []
    col = 0
    for b in np.unique(batch_labels):
        for s in range(4):                     # semantic classes 0..3 only
            mask = np.where((batch_labels == b) & (semantic_labels == s))[0]
            if len(mask) == 0:
                continue
            seed = seediness[mask]
            order = np.argsort(-seed)
            cand = order[seed[order] > s_thresholds[s]]
            if len(cand) == 0:
                cand = order[:1]
            cand = cand[:max_seeds]
            centers_list.append(embeddings[mask][cand])
            inv_list.append(1.0 / (2.0 * margins[mask][cand] ** 2 + 1e-6))
            groups.append((mask, int(s), int(b), col, len(cand)))
            col += len(cand)
    if not groups:
        return [], [], []

    centers_all = np.concatenate(centers_list, axis=0).astype(np.float32)
    inv_all = np.concatenate(inv_list, axis=0).astype(np.float32)
    probs_all = pallas_gaussian_batched(embeddings, centers_all, inv_all)   # (N, K)

    fragments, frag_batch_ids, frag_seg = [], [], []
    for mask, s, b, c0, k in groups:
        probs = probs_all[mask][:, c0:c0 + k]
        labels = np.argmax(probs, axis=1)
        if not cluster_all:
            labels = np.where(probs.max(axis=1) > p_thresholds[s], labels, -1)
        for c in np.unique(labels):
            if c < 0:
                continue
            sel = mask[labels == c]
            if len(sel) < min_frag_size:
                continue
            fragments.append(sel)
            frag_batch_ids.append(b)
            frag_seg.append(s)
    return fragments, frag_batch_ids, frag_seg


def node_assignment_simple(edges, edge_pred, n):
    # TODO(synk): score-maximizing node_assignment_score replaced by union-find
    # over edges whose "on" logit wins.
    parent = np.arange(n)

    def find(i):
        while parent[i] != i:
            parent[i] = parent[parent[i]]
            i = parent[i]
        return i

    for k in range(len(edges)):
        if edge_pred[k, 1] > edge_pred[k, 0]:
            a, b = find(int(edges[k][0])), find(int(edges[k][1]))
            if a != b:
                parent[a] = b
    roots = np.array([find(i) for i in range(n)])
    _, group = np.unique(roots, return_inverse=True)
    return group.astype(np.int64)


def primary_assignment(node_pred, group_ids):
    prim = np.zeros(len(group_ids), dtype=bool)
    for g in np.unique(group_ids):
        m = np.where(group_ids == g)[0]
        prim[m[np.argmax(node_pred[m, 1])]] = True
    return prim


def ppn_frag_feats(data, ppn_points, ppn_score, frag):
    amax = int(np.argmax(ppn_score[frag]))          # score precomputed in-kernel
    start = data[frag][amax, :3] + ppn_points[frag][amax, :3] + 0.5
    dirv = cluster_direction(data[frag][:, :3], start, 5.0)
    return np.concatenate([start, dirv]).astype(np.float32)


# ----------------------------- full chain forward -------------------------------
def full_chain_forward(input_np, params):
    data = input_np.astype(np.float32)                       # (N,5) sorted by batch

    # ---- CNN backbone (UResNet+PPN+ClusterCNN heads) + fused activations ----
    # Single Pallas dispatch, single D2H transfer of the 17 useful columns.
    head = np.asarray(jax.block_until_ready(pallas_backbone(data, params["backbone"])))
    segmentation = head[:, 0:SEG_C]
    ppn_points = head[:, SEG_C:SEG_C + PPN_C]
    embeddings = head[:, SEG_C + PPN_C:SEG_C + PPN_C + EMB_C]
    seediness = head[:, 13]                     # sigmoid fused in-kernel
    margins = head[:, 14]                       # stable softplus + 0.1 fused in-kernel
    semantic_labels = head[:, 15].astype(np.int64)   # argmax fused in-kernel
    ppn_score = head[:, 16]                     # PPN last-score softmax fused in-kernel

    result = {"segmentation": [segmentation], "points": [ppn_points],
              "embeddings": [embeddings], "seediness": [seediness],
              "margins": [margins]}

    batch_labels = data[:, 3].astype(np.int64)
    s_thresholds = [0.0] * 4
    p_thresholds = [0.5] * 4
    cluster_all, min_frag_size = True, -1

    # ---- fragment clustering (batched fit_predict, one gaussian kernel call) ----
    frags_l, frag_b_l, frag_s_l = cluster_fragments(
        embeddings, seediness, margins, batch_labels, semantic_labels,
        s_thresholds, p_thresholds, cluster_all, min_frag_size)
    fragments = _obj_array(frags_l)
    frag_batch_ids = np.array(frag_b_l, dtype=np.int64)
    frag_seg = np.array(frag_s_l, dtype=np.int32)

    _, counts = np.unique(batch_labels, return_counts=True)
    nbatches = len(counts)
    vids = np.concatenate([np.arange(n) for n in counts])

    # ---- particle GNN on EM (class 0) fragments ----
    # TODO(synk): the data-dependent host-side clustering between the CNN stage
    # and the GNN stages forces a device->host sync here; fusing into a single
    # dispatch would require moving the clustering onto device.
    em_mask = np.where(frag_seg == 0)[0]
    em_frags = fragments[em_mask]
    em_batch = frag_batch_ids[em_mask]

    edge_index = complete_graph(em_batch)
    node_f = node_encoder_np(data, em_frags)
    edge_f = edge_encoder_np(data, em_frags, edge_index)
    if len(em_frags):
        ppn_feats = np.stack([ppn_frag_feats(data, ppn_points, ppn_score, f)
                              for f in em_frags])
        x_nodes = np.concatenate([node_f, ppn_feats], axis=1).astype(np.float32)
    else:
        x_nodes = np.zeros((0, NODE_GEO_C + PPN_FEAT_P), np.float32)

    # TODO(synk): NNConv message-passing GNN replaced by node/edge MLPs (Pallas).
    node_pred_all = pallas_mlp2(x_nodes, params["pgnn_node"])
    if edge_index.shape[1] > 0:
        # TODO(synk): node-feature gather for edge inputs is host-side; a
        # PrefetchScalarGridSpec + pl.Element gather would avoid shipping the
        # (E, 63/75) concatenated array over PCIe when edge counts grow O(n^2).
        e_in = np.concatenate([x_nodes[edge_index[0]], x_nodes[edge_index[1]], edge_f],
                              axis=1).astype(np.float32)
        edge_pred_all = pallas_mlp2(e_in, params["pgnn_edge"])
    else:
        edge_pred_all = np.zeros((0, 2), np.float32)

    if len(em_batch):
        cids = np.concatenate([np.arange(n) for n in
                               np.unique(em_batch, return_counts=True)[1]])
    else:
        cids = np.zeros(0, dtype=np.int64)
    bcids = [np.where(em_batch == b)[0] for b in range(nbatches)]
    beids = [np.where(em_batch[edge_index[0]] == b)[0] for b in range(nbatches)]
    node_pred = [node_pred_all[b] for b in bcids]
    edge_pred = [edge_pred_all[b] for b in beids]
    edge_index_b = [cids[edge_index[:, b]].T for b in beids]
    frags = [_obj_array([vids[c] for c in em_frags[bc]]) for bc in bcids]
    result.update({"fragments": [frags], "frag_node_pred": [node_pred],
                   "frag_edge_pred": [edge_pred], "frag_edge_index": [edge_index_b]})

    group_ids = []
    for b in range(nbatches):
        if not len(frags[b]):
            group_ids.append(np.array([], dtype=np.int64))
        else:
            group_ids.append(node_assignment_simple(edge_index_b[b], edge_pred[b],
                                                    len(frags[b])))
    result.update({"frag_group_pred": [group_ids]})

    # ---- build particles from fragment groups ----
    particles, part_primary_ids = [], []
    for b in range(nbatches):
        voxel_inds = counts[:b].sum() + np.arange(counts[b])
        if len(frags[b]):
            primary_labels = primary_assignment(node_pred[b], group_ids[b])
            for g in np.unique(group_ids[b]):
                group_mask = np.where(group_ids[b] == g)[0]
                particles.append(voxel_inds[np.concatenate(list(frags[b][group_mask]))])
                part_primary_ids.append(int(group_mask[primary_labels[group_mask]][0]))
        mask = (frag_batch_ids == b) & (frag_seg != 0)
        particles.extend(list(fragments[mask]))
        part_primary_ids.extend([-1] * int(np.sum(mask)))
    particles = _obj_array(particles)
    part_batch_ids = np.array([int(data[p[0], 3]) for p in particles], dtype=np.int64) \
        if len(particles) else np.zeros(0, dtype=np.int64)
    part_primary_ids = np.array(part_primary_ids, dtype=np.int32)
    part_seg = np.array([int(np.bincount(semantic_labels[p]).argmax()) for p in particles],
                        dtype=np.int32) if len(particles) else np.zeros(0, np.int32)

    # ---- interaction GNN on particles ----
    edge_index2 = complete_graph(part_batch_ids)
    node_f2 = node_encoder_np(data, particles)
    edge_f2 = edge_encoder_np(data, particles, edge_index2)

    ppn_feats2 = []
    for i in range(len(particles)):
        p = particles[i]
        if part_seg[i] == 1:
            pts = data[p, :3]
            dist = np.linalg.norm(pts[:, None, :] - pts[None, :, :], axis=-1)
            idx = int(np.argmax(dist))
            si, ei = idx // len(p), idx % len(p)
            start, end = pts[si], pts[ei]
            dirv = end - start
            nrm = np.linalg.norm(dirv)
            if nrm > 0:
                dirv = dirv / nrm
        else:
            pp = p
            if part_seg[i] == 0 and part_primary_ids[i] >= 0:
                b = int(part_batch_ids[i])
                voxel_inds = counts[:b].sum() + np.arange(counts[b])
                pp = voxel_inds[frags[b][part_primary_ids[i]]]
            amax = int(np.argmax(ppn_score[pp]))
            start = data[pp][amax, :3] + ppn_points[pp][amax, :3] + 0.5
            end = start
            dirv = cluster_direction(data[pp][:, :3], start, 5.0)
        vals = data[p, 4]
        feat = np.concatenate([[vals.mean(), vals.std(), float(part_seg[i])],
                               start, end, dirv]).astype(np.float32)
        ppn_feats2.append(feat)
    ppn_feats2 = np.stack(ppn_feats2) if ppn_feats2 else np.zeros((0, PPN_FEAT_I), np.float32)
    x_nodes2 = np.concatenate([node_f2, ppn_feats2], axis=1).astype(np.float32) \
        if len(particles) else np.zeros((0, NODE_GEO_C + PPN_FEAT_I), np.float32)

    if edge_index2.shape[1] > 0:
        e_in2 = np.concatenate([x_nodes2[edge_index2[0]], x_nodes2[edge_index2[1]],
                                edge_f2], axis=1).astype(np.float32)
        edge_pred2_all = pallas_mlp2(e_in2, params["ignn_edge"])
    else:
        edge_pred2_all = np.zeros((0, 2), np.float32)

    if len(part_batch_ids):
        cids2 = np.concatenate([np.arange(n) for n in
                                np.unique(part_batch_ids, return_counts=True)[1]])
    else:
        cids2 = np.zeros(0, dtype=np.int64)
    bcids2 = [np.where(part_batch_ids == b)[0] for b in range(nbatches)]
    beids2 = [np.where(part_batch_ids[edge_index2[0]] == b)[0] for b in range(nbatches)]
    edge_pred2 = [edge_pred2_all[b] for b in beids2]
    edge_index2_b = [cids2[edge_index2[:, b]].T for b in beids2]
    particles_b = [_obj_array([vids[c] for c in particles[bc]]) for bc in bcids2]
    result.update({"particles": [particles_b], "inter_edge_pred": [edge_pred2],
                   "inter_edge_index": [edge_index2_b]})
    return result


# ----------------------------- main -----------------------------------------
if __name__ == "__main__":
    key = jax.random.PRNGKey(0)
    kc, kv = jax.random.split(key, 2)
    N = 128
    coords = jax.random.uniform(kc, (N, 3), minval=0.0, maxval=16.0)
    batch = jnp.concatenate([jnp.zeros((N // 2, 1)), jnp.ones((N - N // 2, 1))], axis=0)
    vals = jax.random.normal(kv, (N, 1))
    input_np = np.asarray(jnp.concatenate([coords, batch, vals], axis=1),
                          dtype=np.float32)          # (N,5) [x,y,z,batch_id,val]

    params = init_params(jax.random.PRNGKey(1))

    # run the backbone kernel once and block on the device result
    probe = pallas_backbone(input_np, params["backbone"])
    jax.block_until_ready(probe)
    assert probe.shape == (N, OUT_C)

    res = full_chain_forward(input_np, params)
    assert res["segmentation"][0].shape == (N, SEG_C)
    assert res["points"][0].shape == (N, PPN_C)
    assert "frag_group_pred" in res and "inter_edge_pred" in res
    print("KERNEL_OK")
</pallas_src>

<mosaic_0001>
module attributes {stable_mosaic.version = 11 : i64} {
  func.func @_backbone_kernel(%arg0: i32, %arg1: memref<512x5xf32, #tpu.memory_space<vmem>>, %arg2: memref<5x32xbf16, #tpu.memory_space<vmem>>, %arg3: memref<1x32xf32, #tpu.memory_space<vmem>>, %arg4: memref<32x32xbf16, #tpu.memory_space<vmem>>, %arg5: memref<1x32xf32, #tpu.memory_space<vmem>>, %arg6: memref<32x15xbf16, #tpu.memory_space<vmem>>, %arg7: memref<1x15xf32, #tpu.memory_space<vmem>>, %arg8: memref<512x128xf32, #tpu.memory_space<vmem>>) attributes {dimension_semantics = [#tpu.dimension_semantics<parallel>], iteration_bounds = array<i64: 1>, scalar_prefetch = 0 : i64, scratch_operands = 0 : i64, tpu.core_type = #tpu.core_type<tc>, window_params = [{transform_indices = @transform_0, window_bounds = array<i64: 512, 5>}, {pipeline_mode = #tpu.pipeline_mode<synchronous>, transform_indices = @transform_1, window_bounds = array<i64: 5, 32>}, {pipeline_mode = #tpu.pipeline_mode<synchronous>, transform_indices = @transform_2, window_bounds = array<i64: 1, 32>}, {pipeline_mode = #tpu.pipeline_mode<synchronous>, transform_indices = @transform_3, window_bounds = array<i64: 32, 32>}, {pipeline_mode = #tpu.pipeline_mode<synchronous>, transform_indices = @transform_4, window_bounds = array<i64: 1, 32>}, {pipeline_mode = #tpu.pipeline_mode<synchronous>, transform_indices = @transform_5, window_bounds = array<i64: 32, 15>}, {pipeline_mode = #tpu.pipeline_mode<synchronous>, transform_indices = @transform_6, window_bounds = array<i64: 1, 15>}, {transform_indices = @transform_7, window_bounds = array<i64: 512, 128>}]} {
    %c0 = arith.constant 0 : index
    %c0_0 = arith.constant 0 : index
    %0 = vector.load %arg1[%c0, %c0_0] : memref<512x5xf32, #tpu.memory_space<vmem>>, vector<512x5xf32>
    %1 = arith.truncf %0 : vector<512x5xf32> to vector<512x5xbf16>
    %c0_1 = arith.constant 0 : index
    %c0_2 = arith.constant 0 : index
    %2 = vector.load %arg2[%c0_1, %c0_2] : memref<5x32xbf16, #tpu.memory_space<vmem>>, vector<5x32xbf16>
    %cst = arith.constant dense<0.000000e+00> : vector<512x32xf32>
    %3 = tpu.matmul %1, %2, %cst {dimension_numbers = #tpu.dot_dimension_numbers<[1], [0], [0], [1], [0, 0, 1, 1], [], []>} : vector<512x5xbf16>, vector<5x32xbf16>, vector<512x32xf32> -> vector<512x32xf32>
    %c0_3 = arith.constant 0 : index
    %c0_4 = arith.constant 0 : index
    %4 = vector.load %arg3[%c0_3, %c0_4] : memref<1x32xf32, #tpu.memory_space<vmem>>, vector<1x32xf32>
    %5 = vector.broadcast %4 : vector<1x32xf32> to vector<512x32xf32>
    %6 = arith.addf %3, %5 : vector<512x32xf32>
    %cst_5 = arith.constant 0.000000e+00 : f32
    %7 = vector.broadcast %cst_5 : f32 to vector<512x32xf32>
    %8 = arith.maximumf %6, %7 : vector<512x32xf32>
    %9 = arith.truncf %8 : vector<512x32xf32> to vector<512x32xbf16>
    %c0_6 = arith.constant 0 : index
    %c0_7 = arith.constant 0 : index
    %10 = vector.load %arg4[%c0_6, %c0_7] : memref<32x32xbf16, #tpu.memory_space<vmem>>, vector<32x32xbf16>
    %cst_8 = arith.constant dense<0.000000e+00> : vector<512x32xf32>
    %11 = tpu.matmul %9, %10, %cst_8 {dimension_numbers = #tpu.dot_dimension_numbers<[1], [0], [0], [1], [0, 0, 1, 1], [], []>} : vector<512x32xbf16>, vector<32x32xbf16>, vector<512x32xf32> -> vector<512x32xf32>
    %c0_9 = arith.constant 0 : index
    %c0_10 = arith.constant 0 : index
    %12 = vector.load %arg5[%c0_9, %c0_10] : memref<1x32xf32, #tpu.memory_space<vmem>>, vector<1x32xf32>
    %13 = vector.broadcast %12 : vector<1x32xf32> to vector<512x32xf32>
    %14 = arith.addf %11, %13 : vector<512x32xf32>
    %cst_11 = arith.constant 0.000000e+00 : f32
    %15 = vector.broadcast %cst_11 : f32 to vector<512x32xf32>
    %16 = arith.maximumf %14, %15 : vector<512x32xf32>
    %17 = arith.truncf %16 : vector<512x32xf32> to vector<512x32xbf16>
    %c0_12 = arith.constant 0 : index
    %c0_13 = arith.constant 0 : index
    %18 = vector.load %arg6[%c0_12, %c0_13] : memref<32x15xbf16, #tpu.memory_space<vmem>>, vector<32x15xbf16>
    %cst_14 = arith.constant dense<0.000000e+00> : vector<512x15xf32>
    %19 = tpu.matmul %17, %18, %cst_14 {dimension_numbers = #tpu.dot_dimension_numbers<[1], [0], [0], [1], [0, 0, 1, 1], [], []>} : vector<512x32xbf16>, vector<32x15xbf16>, vector<512x15xf32> -> vector<512x15xf32>
    %c0_15 = arith.constant 0 : index
    %c0_16 = arith.constant 0 : index
    %20 = vector.load %arg7[%c0_15, %c0_16] : memref<1x15xf32, #tpu.memory_space<vmem>>, vector<1x15xf32>
    %21 = vector.broadcast %20 : vector<1x15xf32> to vector<512x15xf32>
    %22 = arith.addf %19, %21 : vector<512x15xf32>
    %23 = vector.extract_strided_slice %22 {offsets = [0, 0], sizes = [512, 5], strides = [1, 1]} : vector<512x15xf32> to vector<512x5xf32>
    %24 = vector.extract_strided_slice %22 {offsets = [0, 13], sizes = [512, 1], strides = [1, 1]} : vector<512x15xf32> to vector<512x1xf32>
    %25 = vector.extract_strided_slice %22 {offsets = [0, 14], sizes = [512, 1], strides = [1, 1]} : vector<512x15xf32> to vector<512x1xf32>
    %cst_17 = arith.constant 0.000000e+00 : f32
    %26 = vector.broadcast %cst_17 : f32 to vector<512x1xf32>
    %27 = arith.subf %26, %24 : vector<512x1xf32>
    %28 = math.exp %27 : vector<512x1xf32>
    %cst_18 = arith.constant 1.000000e+00 : f32
    %29 = vector.broadcast %cst_18 : f32 to vector<512x1xf32>
    %30 = arith.addf %29, %28 : vector<512x1xf32>
    %cst_19 = arith.constant 1.000000e+00 : f32
    %31 = vector.broadcast %cst_19 : f32 to vector<512x1xf32>
    %32 = arith.divf %31, %30 : vector<512x1xf32>
    %cst_20 = arith.constant 0.000000e+00 : f32
    %33 = vector.broadcast %cst_20 : f32 to vector<512x1xf32>
    %34 = arith.maximumf %25, %33 : vector<512x1xf32>
    %35 = math.absf %25 : vector<512x1xf32>
    %cst_21 = arith.constant 0.000000e+00 : f32
    %36 = vector.broadcast %cst_21 : f32 to vector<512x1xf32>
    %37 = arith.subf %36, %35 : vector<512x1xf32>
    %38 = math.exp %37 : vector<512x1xf32>
    %cst_22 = arith.constant 1.000000e+00 : f32
    %39 = vector.broadcast %cst_22 : f32 to vector<512x1xf32>
    %40 = arith.addf %39, %38 : vector<512x1xf32>
    %41 = math.log %40 : vector<512x1xf32>
    %42 = arith.addf %34, %41 : vector<512x1xf32>
    %cst_23 = arith.constant 1.000000e-01 : f32
    %43 = vector.broadcast %cst_23 : f32 to vector<512x1xf32>
    %44 = arith.addf %42, %43 : vector<512x1xf32>
    %cst_24 = arith.constant dense<0xFF800000> : vector<512xf32>
    %45 = vector.multi_reduction <maximumf>, %23, %cst_24 [1] : vector<512x5xf32> to vector<512xf32>
    %46 = vector.shape_cast %45 : vector<512xf32> to vector<512x1xf32>
    %47 = tpu.iota {dimensions = array<i32: 1>} : vector<512x5xi32>
    %48 = arith.sitofp %47 : vector<512x5xi32> to vector<512x5xf32>
    %49 = vector.broadcast %46 : vector<512x1xf32> to vector<512x5xf32>
    %50 = arith.cmpf oge, %23, %49 : vector<512x5xf32>
    %cst_25 = arith.constant 5.000000e+00 : f32
    %51 = vector.broadcast %cst_25 : f32 to vector<512x5xf32>
    %52 = arith.select %50, %48, %51 : vector<512x5xi1>, vector<512x5xf32>
    %cst_26 = arith.constant dense<0x7F800000> : vector<512xf32>
    %53 = vector.multi_reduction <minimumf>, %52, %cst_26 [1] : vector<512x5xf32> to vector<512xf32>
    %54 = vector.shape_cast %53 : vector<512xf32> to vector<512x1xf32>
    %55 = vector.extract_strided_slice %22 {offsets = [0, 9], sizes = [512, 1], strides = [1, 1]} : vector<512x15xf32> to vector<512x1xf32>
    %56 = vector.extract_strided_slice %22 {offsets = [0, 8], sizes = [512, 1], strides = [1, 1]} : vector<512x15xf32> to vector<512x1xf32>
    %57 = arith.subf %55, %56 : vector<512x1xf32>
    %cst_27 = arith.constant 0.000000e+00 : f32
    %58 = vector.broadcast %cst_27 : f32 to vector<512x1xf32>
    %59 = arith.subf %58, %57 : vector<512x1xf32>
    %60 = math.exp %59 : vector<512x1xf32>
    %cst_28 = arith.constant 1.000000e+00 : f32
    %61 = vector.broadcast %cst_28 : f32 to vector<512x1xf32>
    %62 = arith.addf %61, %60 : vector<512x1xf32>
    %cst_29 = arith.constant 1.000000e+00 : f32
    %63 = vector.broadcast %cst_29 : f32 to vector<512x1xf32>
    %64 = arith.divf %63, %62 : vector<512x1xf32>
    %cst_30 = arith.constant 0.000000e+00 : f32
    %65 = vector.broadcast %cst_30 : f32 to vector<512x111xf32>
    %66 = vector.extract_strided_slice %22 {offsets = [0, 0], sizes = [512, 13], strides = [1, 1]} : vector<512x15xf32> to vector<512x13xf32>
    %67 = tpu.concatenate %66, %32, %44, %54, %64, %65 in 1 : vector<512x13xf32>, vector<512x1xf32>, vector<512x1xf32>, vector<512x1xf32>, vector<512x1xf32>, vector<512x111xf32> -> vector<512x128xf32>
    %c0_31 = arith.constant 0 : index
    %c0_32 = arith.constant 0 : index
    %68 = vector.load %arg8[%c0_31, %c0_32] : memref<512x128xf32, #tpu.memory_space<vmem>>, vector<512x128xf32>
    tpu.vector_store %arg8[%c0_31, %c0_32], %67 {strides = array<i32>} : memref<512x128xf32, #tpu.memory_space<vmem>>, vector<512x128xf32>,
    return
  }
  func.func @transform_0(%arg0: i32) -> (i32, i32) {
    %c0_i32 = arith.constant 0 : i32
    %c0_i32_0 = arith.constant 0 : i32
    return %arg0, %c0_i32 : i32, i32
  }
  func.func @transform_1(%arg0: i32) -> (i32, i32) {
    %c0_i32 = arith.constant 0 : i32
    %c0_i32_0 = arith.constant 0 : i32
    %c0_i32_1 = arith.constant 0 : i32
    return %c0_i32, %c0_i32_0 : i32, i32
  }
  func.func @transform_2(%arg0: i32) -> (i32, i32) {
    %c0_i32 = arith.constant 0 : i32
    %c0_i32_0 = arith.constant 0 : i32
    %c0_i32_1 = arith.constant 0 : i32
    return %c0_i32, %c0_i32_0 : i32, i32
  }
  func.func @transform_3(%arg0: i32) -> (i32, i32) {
    %c0_i32 = arith.constant 0 : i32
    %c0_i32_0 = arith.constant 0 : i32
    %c0_i32_1 = arith.constant 0 : i32
    return %c0_i32, %c0_i32_0 : i32, i32
  }
  func.func @transform_4(%arg0: i32) -> (i32, i32) {
    %c0_i32 = arith.constant 0 : i32
    %c0_i32_0 = arith.constant 0 : i32
    %c0_i32_1 = arith.constant 0 : i32
    return %c0_i32, %c0_i32_0 : i32, i32
  }
  func.func @transform_5(%arg0: i32) -> (i32, i32) {
    %c0_i32 = arith.constant 0 : i32
    %c0_i32_0 = arith.constant 0 : i32
    %c0_i32_1 = arith.constant 0 : i32
    return %c0_i32, %c0_i32_0 : i32, i32
  }
  func.func @transform_6(%arg0: i32) -> (i32, i32) {
    %c0_i32 = arith.constant 0 : i32
    %c0_i32_0 = arith.constant 0 : i32
    %c0_i32_1 = arith.constant 0 : i32
    return %c0_i32, %c0_i32_0 : i32, i32
  }
  func.func @transform_7(%arg0: i32) -> (i32, i32) {
    %c0_i32 = arith.constant 0 : i32
    %c0_i32_0 = arith.constant 0 : i32
    return %arg0, %c0_i32 : i32, i32
  }
}

</mosaic_0001>

<llo_original>
// kernel: tpu_custom_call.1
$region0: #{tpu_custom_call.1}
  #allocation0 [shape = 'u32[]', space=smem, size = 0x4, offset = 0x4, fixed_abs, tag = 'smem constant byte address 0x4 - core index']
  #allocation1 [shape = 'u32[72,128]{1,0:T(1,128)}', space=vmem, size = 0x9000, scoped, tag = 'internal scratch']
  %s0 = inlined_call_operand.vmem [shape: f32[512,5], index: 0, kind: input, shape index: {}]
  %s1 = inlined_call_operand.vmem [shape: bf16[5,32], index: 1, kind: input, shape index: {}]
  %s2 = inlined_call_operand.vmem [shape: f32[1,32], index: 2, kind: input, shape index: {}]
  %s3 = inlined_call_operand.vmem [shape: bf16[32,32], index: 3, kind: input, shape index: {}]
  %s4 = inlined_call_operand.vmem [shape: f32[1,32], index: 4, kind: input, shape index: {}]
  %s5 = inlined_call_operand.vmem [shape: bf16[32,15], index: 5, kind: input, shape index: {}]
  %s6 = inlined_call_operand.vmem [shape: f32[1,15], index: 6, kind: input, shape index: {}]
  %s7 = inlined_call_operand.hbm [shape: f32[512,128], index: 7, kind: output, shape index: {}]
  %s8 = sld [smem:[#allocation0]]
  $region38: #{tpu_custom_call.1} parent=0
    _
  %s10 = ssub.s32 1, %s8
  %s11 = scalar_select 0, %s10, %s8
  $region1: #{tpu_custom_call.1} parent=0
    #allocation2 [shape = 'u8[262144]{0}', space=vmem, size = 0x40000, scoped, tag = 'output window, operand 0, single buffered']
    #allocation3 [shape = 's32[1]{0}', space=sflag, size = 0x4, scoped, tag = 'scoped memory for tpu_custom_call.1']
    %12 = vsyncpa [#allocation3], 0
    // Predicated region
    $region2: #{tpu_custom_call.1} parent=1 // pred_check
      _
    $region3: #{tpu_custom_call.1} parent=1 // pred_check_branch
      %14 = sbr.rel (0) target = $region5
    $region4: #{tpu_custom_call.1} parent=1 // pred_region
      _
    $region5: #{tpu_custom_call.1} parent=1 // pred_fallthru
      _
    // Predicated region
    $region6: #{tpu_custom_call.1} parent=1 // pred_check
      _
    $region7: #{tpu_custom_call.1} parent=1 // pred_check_branch
      %16 = sbr.rel (0) target = $region9
    $region8: #{tpu_custom_call.1} parent=1 // pred_region
      _
    $region9: #{tpu_custom_call.1} parent=1 // pred_fallthru
      _
    // Predicated region
    $region10: #{tpu_custom_call.1} parent=1 // pred_check
      _
    $region11: #{tpu_custom_call.1} parent=1 // pred_check_branch
      %18 = sbr.rel (0) target = $region13
    $region12: #{tpu_custom_call.1} parent=1 // pred_region
      _
    $region13: #{tpu_custom_call.1} parent=1 // pred_fallthru
      _
    // Predicated region
    $region14: #{tpu_custom_call.1} parent=1 // pred_check
      _
    $region15: #{tpu_custom_call.1} parent=1 // pred_check_branch
      %20 = sbr.rel (0) target = $region17
    $region16: #{tpu_custom_call.1} parent=1 // pred_region
      _
    $region17: #{tpu_custom_call.1} parent=1 // pred_fallthru
      _
    // Predicated region
    $region18: #{tpu_custom_call.1} parent=1 // pred_check
      _
    $region19: #{tpu_custom_call.1} parent=1 // pred_check_branch
      %22 = sbr.rel (0) target = $region21
    $region20: #{tpu_custom_call.1} parent=1 // pred_region
      _
    $region21: #{tpu_custom_call.1} parent=1 // pred_fallthru
      _
    // Predicated region
    $region22: #{tpu_custom_call.1} parent=1 // pred_check
      _
    $region23: #{tpu_custom_call.1} parent=1 // pred_check_branch
      %24 = sbr.rel (0) target = $region25
    $region24: #{tpu_custom_call.1} parent=1 // pred_region
      _
    $region25: #{tpu_custom_call.1} parent=1 // pred_fallthru
      _
    // Predicated region
    $region26: #{tpu_custom_call.1} parent=1 // pred_check
      _
    $region27: #{tpu_custom_call.1} parent=1 // pred_check_branch
      %26 = sbr.rel (0) target = $region29
    $region28: #{tpu_custom_call.1} parent=1 // pred_region
      _
    $region29: #{tpu_custom_call.1} parent=1 // pred_fallthru
      _
    %v28 = vld [vmem:[%s0] sm:$0xff]
    %v29 = vld [vmem:[%s0 + $0x8] sm:$0xff]
    %v30 = vld [vmem:[%s0 + $0x10] sm:$0xff]
    %v31 = vld [vmem:[%s0 + $0x18] sm:$0xff]
    %v32 = vld [vmem:[%s0 + $0x20] sm:$0xff]
    %v33 = vld [vmem:[%s0 + $0x28] sm:$0xff]
    %v34 = vld [vmem:[%s0 + $0x30] sm:$0xff]
    %v35 = vld [vmem:[%s0 + $0x38] sm:$0xff]
    %v36 = vld [vmem:[%s0 + $0x40] sm:$0xff]
    %v37 = vld [vmem:[%s0 + $0x48] sm:$0xff]
    %v38 = vld [vmem:[%s0 + $0x50] sm:$0xff]
    %v39 = vld [vmem:[%s0 + $0x58] sm:$0xff]
    %v40 = vld [vmem:[%s0 + $0x60] sm:$0xff]
    %v41 = vld [vmem:[%s0 + $0x68] sm:$0xff]
    %v42 = vld [vmem:[%s0 + $0x70] sm:$0xff]
    %v43 = vld [vmem:[%s0 + $0x78] sm:$0xff]
    %v44 = vld [vmem:[%s0 + $0x80] sm:$0xff]
    %v45 = vld [vmem:[%s0 + $0x88] sm:$0xff]
    %v46 = vld [vmem:[%s0 + $0x90] sm:$0xff]
    %v47 = vld [vmem:[%s0 + $0x98] sm:$0xff]
    %v48 = vld [vmem:[%s0 + $0xa0] sm:$0xff]
    %v49 = vld [vmem:[%s0 + $0xa8] sm:$0xff]
    %v50 = vld [vmem:[%s0 + $0xb0] sm:$0xff]
    %v51 = vld [vmem:[%s0 + $0xb8] sm:$0xff]
    %v52 = vld [vmem:[%s0 + $0xc0] sm:$0xff]
    %v53 = vld [vmem:[%s0 + $0xc8] sm:$0xff]
    %v54 = vld [vmem:[%s0 + $0xd0] sm:$0xff]
    %v55 = vld [vmem:[%s0 + $0xd8] sm:$0xff]
    %v56 = vld [vmem:[%s0 + $0xe0] sm:$0xff]
    %v57 = vld [vmem:[%s0 + $0xe8] sm:$0xff]
    %v58 = vld [vmem:[%s0 + $0xf0] sm:$0xff]
    %v59 = vld [vmem:[%s0 + $0xf8] sm:$0xff]
    %v60 = vld [vmem:[%s0 + $0x100] sm:$0xff]
    %v61 = vld [vmem:[%s0 + $0x108] sm:$0xff]
    %v62 = vld [vmem:[%s0 + $0x110] sm:$0xff]
    %v63 = vld [vmem:[%s0 + $0x118] sm:$0xff]
    %v64 = vld [vmem:[%s0 + $0x120] sm:$0xff]
    %v65 = vld [vmem:[%s0 + $0x128] sm:$0xff]
    %v66 = vld [vmem:[%s0 + $0x130] sm:$0xff]
    %v67 = vld [vmem:[%s0 + $0x138] sm:$0xff]
    %v68 = vld [vmem:[%s0 + $0x140] sm:$0xff]
    %v69 = vld [vmem:[%s0 + $0x148] sm:$0xff]
    %v70 = vld [vmem:[%s0 + $0x150] sm:$0xff]
    %v71 = vld [vmem:[%s0 + $0x158] sm:$0xff]
    %v72 = vld [vmem:[%s0 + $0x160] sm:$0xff]
    %v73 = vld [vmem:[%s0 + $0x168] sm:$0xff]
    %v74 = vld [vmem:[%s0 + $0x170] sm:$0xff]
    %v75 = vld [vmem:[%s0 + $0x178] sm:$0xff]
    %v76 = vld [vmem:[%s0 + $0x180] sm:$0xff]
    %v77 = vld [vmem:[%s0 + $0x188] sm:$0xff]
    %v78 = vld [vmem:[%s0 + $0x190] sm:$0xff]
    %v79 = vld [vmem:[%s0 + $0x198] sm:$0xff]
    %v80 = vld [vmem:[%s0 + $0x1a0] sm:$0xff]
    %v81 = vld [vmem:[%s0 + $0x1a8] sm:$0xff]
    %v82 = vld [vmem:[%s0 + $0x1b0] sm:$0xff]
    %v83 = vld [vmem:[%s0 + $0x1b8] sm:$0xff]
    %v84 = vld [vmem:[%s0 + $0x1c0] sm:$0xff]
    %v85 = vld [vmem:[%s0 + $0x1c8] sm:$0xff]
    %v86 = vld [vmem:[%s0 + $0x1d0] sm:$0xff]
    %v87 = vld [vmem:[%s0 + $0x1d8] sm:$0xff]
    %v88 = vld [vmem:[%s0 + $0x1e0] sm:$0xff]
    %v89 = vld [vmem:[%s0 + $0x1e8] sm:$0xff]
    %v90 = vld [vmem:[%s0 + $0x1f0] sm:$0xff]
    %v91 = vld [vmem:[%s0 + $0x1f8] sm:$0xff]
    %v92 = vpack.c.bf16 %v29, %v28
    %v93 = vpack.c.bf16 %v31, %v30
    %v94 = vpack.c.bf16 %v33, %v32
    %v95 = vpack.c.bf16 %v35, %v34
    %v96 = vpack.c.bf16 %v37, %v36
    %v97 = vpack.c.bf16 %v39, %v38
    %v98 = vpack.c.bf16 %v41, %v40
    %v99 = vpack.c.bf16 %v43, %v42
    %v100 = vpack.c.bf16 %v45, %v44
    %v101 = vpack.c.bf16 %v47, %v46
    %v102 = vpack.c.bf16 %v49, %v48
    %v103 = vpack.c.bf16 %v51, %v50
    %v104 = vpack.c.bf16 %v53, %v52
    %v105 = vpack.c.bf16 %v55, %v54
    %v106 = vpack.c.bf16 %v57, %v56
    %v107 = vpack.c.bf16 %v59, %v58
    %v108 = vpack.c.bf16 %v61, %v60
    %v109 = vpack.c.bf16 %v63, %v62
    %v110 = vpack.c.bf16 %v65, %v64
    %v111 = vpack.c.bf16 %v67, %v66
    %v112 = vpack.c.bf16 %v69, %v68
    %v113 = vpack.c.bf16 %v71, %v70
    %v114 = vpack.c.bf16 %v73, %v72
    %v115 = vpack.c.bf16 %v75, %v74
    %v116 = vpack.c.bf16 %v77, %v76
    %v117 = vpack.c.bf16 %v79, %v78
    %v118 = vpack.c.bf16 %v81, %v80
    %v119 = vpack.c.bf16 %v83, %v82
    %v120 = vpack.c.bf16 %v85, %v84
    %v121 = vpack.c.bf16 %v87, %v86
    %v122 = vpack.c.bf16 %v89, %v88
    %v123 = vpack.c.bf16 %v91, %v90
    %v124 = vld [vmem:[%s1] sm:$0x7]
    %v125 = vld [vmem:[%s2] sm:$0x1]
    %v127 = vperm.slane %v125, 0
    %vm129 = vcmask 39936
    %v131 = vsel %vm129, %v92, 0
    %v134 = vsel %vm129, %v93, 0
    %v137 = vsel %vm129, %v94, 0
    %v140 = vsel %vm129, %v95, 0
    %v143 = vsel %vm129, %v96, 0
    %v146 = vsel %vm129, %v97, 0
    %v149 = vsel %vm129, %v98, 0
    %v152 = vsel %vm129, %v99, 0
    %v155 = vsel %vm129, %v100, 0
    %v158 = vsel %vm129, %v101, 0
    %v161 = vsel %vm129, %v102, 0
    %v164 = vsel %vm129, %v103, 0
    %v167 = vsel %vm129, %v104, 0
    %v170 = vsel %vm129, %v105, 0
    %v173 = vsel %vm129, %v106, 0
    %v176 = vsel %vm129, %v107, 0
    %v179 = vsel %vm129, %v108, 0
    %v182 = vsel %vm129, %v109, 0
    %v185 = vsel %vm129, %v110, 0
    %v188 = vsel %vm129, %v111, 0
    %v191 = vsel %vm129, %v112, 0
    %v194 = vsel %vm129, %v113, 0
    %v197 = vsel %vm129, %v114, 0
    %v200 = vsel %vm129, %v115, 0
    %v203 = vsel %vm129, %v116, 0
    %v206 = vsel %vm129, %v117, 0
    %v209 = vsel %vm129, %v118, 0
    %v212 = vsel %vm129, %v119, 0
    %v215 = vsel %vm129, %v120, 0
    %v218 = vsel %vm129, %v121, 0
    %v221 = vsel %vm129, %v122, 0
    %v224 = vsel %vm129, %v123, 0
    %vm226 = vcmask 1041408
    %vm227 = vcmask 1042432
    %v228 = vsel %vm226, 4294967295, 65535
    %v229 = vsel %vm227, %v228, 0
    %v231 = vand.u32 %v124, %v229
    %233 = vmatpush.bf16.msra.mxu0 0
    %234 = vmatpush.bf16.msra.mxu0 0
    %235 = vmatpush.bf16.msra.mxu0 0
    %236 = vmatpush.bf16.msra.mxu0 0
    %237 = vmatpush.bf16.msra.mxu0 0
    %238 = vmatpush.bf16.msra.mxu0 0
    %239 = vmatpush.bf16.msra.mxu0 0
    %240 = vmatpush.bf16.msra.mxu0 %v231
    %241 = vmatmul.bf16.gmra.mxu0 %v131
    %v242 = vpop.f32.mrf.mxu0
    %v243 = vadd.f32 %v127, %v242
    %v244 = vpop.f32.mrf.mxu0
    %v245 = vadd.f32 %v127, %v244
    %246 = vmatmul.bf16.gmra.mxu0 %v134
    %v247 = vpop.f32.mrf.mxu0
    %v248 = vadd.f32 %v127, %v247
    %v249 = vpop.f32.mrf.mxu0
    %v250 = vadd.f32 %v127, %v249
    %251 = vmatmul.bf16.gmra.mxu0 %v137
    %v252 = vpop.f32.mrf.mxu0
    %v253 = vadd.f32 %v127, %v252
    %v254 = vpop.f32.mrf.mxu0
    %v255 = vadd.f32 %v127, %v254
    %256 = vmatmul.bf16.gmra.mxu0 %v140
    %v257 = vpop.f32.mrf.mxu0
    %v258 = vadd.f32 %v127, %v257
    %v259 = vpop.f32.mrf.mxu0
    %v260 = vadd.f32 %v127, %v259
    %261 = vmatmul.bf16.gmra.mxu0 %v143
    %v262 = vpop.f32.mrf.mxu0
    %v263 = vadd.f32 %v127, %v262
    %v264 = vpop.f32.mrf.mxu0
    %v265 = vadd.f32 %v127, %v264
    %266 = vmatmul.bf16.gmra.mxu0 %v146
    %v267 = vpop.f32.mrf.mxu0
    %v268 = vadd.f32 %v127, %v267
    %v269 = vpop.f32.mrf.mxu0
    %v270 = vadd.f32 %v127, %v269
    %271 = vmatmul.bf16.gmra.mxu0 %v149
    %v272 = vpop.f32.mrf.mxu0
    %v273 = vadd.f32 %v127, %v272
    %v274 = vpop.f32.mrf.mxu0
    %v275 = vadd.f32 %v127, %v274
    %276 = vmatmul.bf16.gmra.mxu0 %v152
    %v277 = vpop.f32.mrf.mxu0
    %v278 = vadd.f32 %v127, %v277
    %v279 = vpop.f32.mrf.mxu0
    %v280 = vadd.f32 %v127, %v279
    %281 = vmatmul.bf16.gmra.mxu0 %v155
    %v282 = vpop.f32.mrf.mxu0
    %v283 = vadd.f32 %v127, %v282
    %v284 = vpop.f32.mrf.mxu0
    %v285 = vadd.f32 %v127, %v284
    %286 = vmatmul.bf16.gmra.mxu0 %v158
    %v287 = vpop.f32.mrf.mxu0
    %v288 = vadd.f32 %v127, %v287
    %v289 = vpop.f32.mrf.mxu0
    %v290 = vadd.f32 %v127, %v289
    %291 = vmatmul.bf16.gmra.mxu0 %v161
    %v292 = vpop.f32.mrf.mxu0
    %v293 = vadd.f32 %v127, %v292
    %v294 = vpop.f32.mrf.mxu0
    %v295 = vadd.f32 %v127, %v294
    %296 = vmatmul.bf16.gmra.mxu0 %v164
    %v297 = vpop.f32.mrf.mxu0
    %v298 = vadd.f32 %v127, %v297
    %v299 = vpop.f32.mrf.mxu0
    %v300 = vadd.f32 %v127, %v299
    %301 = vmatmul.bf16.gmra.mxu0 %v167
    %v302 = vpop.f32.mrf.mxu0
    %v303 = vadd.f32 %v127, %v302
    %v304 = vpop.f32.mrf.mxu0
    %v305 = vadd.f32 %v127, %v304
    %306 = vmatmul.bf16.gmra.mxu0 %v170
    %v307 = vpop.f32.mrf.mxu0
    %v308 = vadd.f32 %v127, %v307
    %v309 = vpop.f32.mrf.mxu0
    %v310 = vadd.f32 %v127, %v309
    %311 = vmatmul.bf16.gmra.mxu0 %v173
    %v312 = vpop.f32.mrf.mxu0
    %v313 = vadd.f32 %v127, %v312
    %v314 = vpop.f32.mrf.mxu0
    %v315 = vadd.f32 %v127, %v314
    %316 = vmatmul.bf16.gmra.mxu0 %v176
    %v317 = vpop.f32.mrf.mxu0
    %v318 = vadd.f32 %v127, %v317
    %v319 = vpop.f32.mrf.mxu0
    %v320 = vadd.f32 %v127, %v319
    %321 = vmatmul.bf16.gmra.mxu0 %v179
    %v322 = vpop.f32.mrf.mxu0
    %v323 = vadd.f32 %v127, %v322
    %v324 = vpop.f32.mrf.mxu0
    %v325 = vadd.f32 %v127, %v324
    %326 = vmatmul.bf16.gmra.mxu0 %v182
    %v327 = vpop.f32.mrf.mxu0
    %v328 = vadd.f32 %v127, %v327
    %v329 = vpop.f32.mrf.mxu0
    %v330 = vadd.f32 %v127, %v329
    %331 = vmatmul.bf16.gmra.mxu0 %v185
    %v332 = vpop.f32.mrf.mxu0
    %v333 = vadd.f32 %v127, %v332
    %v334 = vpop.f32.mrf.mxu0
    %v335 = vadd.f32 %v127, %v334
    %336 = vmatmul.bf16.gmra.mxu0 %v188
    %v337 = vpop.f32.mrf.mxu0
    %v338 = vadd.f32 %v127, %v337
    %v339 = vpop.f32.mrf.mxu0
    %v340 = vadd.f32 %v127, %v339
    %341 = vmatmul.bf16.gmra.mxu0 %v191
    %v342 = vpop.f32.mrf.mxu0
    %v343 = vadd.f32 %v127, %v342
    %v344 = vpop.f32.mrf.mxu0
    %v345 = vadd.f32 %v127, %v344
    %346 = vmatmul.bf16.gmra.mxu0 %v194
    %v347 = vpop.f32.mrf.mxu0
    %v348 = vadd.f32 %v127, %v347
    %v349 = vpop.f32.mrf.mxu0
    %v350 = vadd.f32 %v127, %v349
    %351 = vmatmul.bf16.gmra.mxu0 %v197
    %v352 = vpop.f32.mrf.mxu0
    %v353 = vadd.f32 %v127, %v352
    %v354 = vpop.f32.mrf.mxu0
    %v355 = vadd.f32 %v127, %v354
    %356 = vmatmul.bf16.gmra.mxu0 %v200
    %v357 = vpop.f32.mrf.mxu0
    %v358 = vadd.f32 %v127, %v357
    %v359 = vpop.f32.mrf.mxu0
    %v360 = vadd.f32 %v127, %v359
    %361 = vmatmul.bf16.gmra.mxu0 %v203
    %v362 = vpop.f32.mrf.mxu0
    %v363 = vadd.f32 %v127, %v362
    %v364 = vpop.f32.mrf.mxu0
    %v365 = vadd.f32 %v127, %v364
    %366 = vmatmul.bf16.gmra.mxu0 %v206
    %v367 = vpop.f32.mrf.mxu0
    %v368 = vadd.f32 %v127, %v367
    %v369 = vpop.f32.mrf.mxu0
    %v370 = vadd.f32 %v127, %v369
    %371 = vmatmul.bf16.gmra.mxu0 %v209
    %v372 = vpop.f32.mrf.mxu0
    %v373 = vadd.f32 %v127, %v372
    %v374 = vpop.f32.mrf.mxu0
    %v375 = vadd.f32 %v127, %v374
    %376 = vmatmul.bf16.gmra.mxu0 %v212
    %v377 = vpop.f32.mrf.mxu0
    %v378 = vadd.f32 %v127, %v377
    %v379 = vpop.f32.mrf.mxu0
    %v380 = vadd.f32 %v127, %v379
    %381 = vmatmul.bf16.gmra.mxu0 %v215
    %v382 = vpop.f32.mrf.mxu0
    %v383 = vadd.f32 %v127, %v382
    %v384 = vpop.f32.mrf.mxu0
    %v385 = vadd.f32 %v127, %v384
    %386 = vmatmul.bf16.gmra.mxu0 %v218
    %v387 = vpop.f32.mrf.mxu0
    %v388 = vadd.f32 %v127, %v387
    %v389 = vpop.f32.mrf.mxu0
    %v390 = vadd.f32 %v127, %v389
    %391 = vmatmul.bf16.gmra.mxu0 %v221
    %v392 = vpop.f32.mrf.mxu0
    %v393 = vadd.f32 %v127, %v392
    %v394 = vpop.f32.mrf.mxu0
    %v395 = vadd.f32 %v127, %v394
    %396 = vmatmul.bf16.gmra.mxu0 %v224
    %v397 = vpop.f32.mrf.mxu0
    %v398 = vadd.f32 %v127, %v397
    %v399 = vpop.f32.mrf.mxu0
    %v400 = vadd.f32 %v127, %v399
    %401 = vdwg.mxu0
    %v402 = vmax.f32 %v243, 0.0
    %v403 = vmax.f32 %v245, 0.0
    %v404 = vmax.f32 %v248, 0.0
    %v405 = vmax.f32 %v250, 0.0
    %v406 = vmax.f32 %v253, 0.0
    %v407 = vmax.f32 %v255, 0.0
    %v408 = vmax.f32 %v258, 0.0
    %v409 = vmax.f32 %v260, 0.0
    %v410 = vmax.f32 %v263, 0.0
    %v411 = vmax.f32 %v265, 0.0
    %v412 = vmax.f32 %v268, 0.0
    %v413 = vmax.f32 %v270, 0.0
    %v414 = vmax.f32 %v273, 0.0
    %v415 = vmax.f32 %v275, 0.0
    %v416 = vmax.f32 %v278, 0.0
    %v417 = vmax.f32 %v280, 0.0
    %v418 = vmax.f32 %v283, 0.0
    %v419 = vmax.f32 %v285, 0.0
    %v420 = vmax.f32 %v288, 0.0
    %v421 = vmax.f32 %v290, 0.0
    %v422 = vmax.f32 %v293, 0.0
    %v423 = vmax.f32 %v295, 0.0
    %v424 = vmax.f32 %v298, 0.0
    %v425 = vmax.f32 %v300, 0.0
    %v426 = vmax.f32 %v303, 0.0
    %v427 = vmax.f32 %v305, 0.0
    %v428 = vmax.f32 %v308, 0.0
    %v429 = vmax.f32 %v310, 0.0
    %v430 = vmax.f32 %v313, 0.0
    %v431 = vmax.f32 %v315, 0.0
    %v432 = vmax.f32 %v318, 0.0
    %v433 = vmax.f32 %v320, 0.0
    %v434 = vmax.f32 %v323, 0.0
    %v435 = vmax.f32 %v325, 0.0
    %v436 = vmax.f32 %v328, 0.0
    %v437 = vmax.f32 %v330, 0.0
    %v438 = vmax.f32 %v333, 0.0
    %v439 = vmax.f32 %v335, 0.0
    %v440 = vmax.f32 %v338, 0.0
    %v441 = vmax.f32 %v340, 0.0
    %v442 = vmax.f32 %v343, 0.0
    %v443 = vmax.f32 %v345, 0.0
    %v444 = vmax.f32 %v348, 0.0
    %v445 = vmax.f32 %v350, 0.0
    %v446 = vmax.f32 %v353, 0.0
    %v447 = vmax.f32 %v355, 0.0
    %v448 = vmax.f32 %v358, 0.0
    %v449 = vmax.f32 %v360, 0.0
    %v450 = vmax.f32 %v363, 0.0
    %v451 = vmax.f32 %v365, 0.0
    %v452 = vmax.f32 %v368, 0.0
    %v453 = vmax.f32 %v370, 0.0
    %v454 = vmax.f32 %v373, 0.0
    %v455 = vmax.f32 %v375, 0.0
    %v456 = vmax.f32 %v378, 0.0
    %v457 = vmax.f32 %v380, 0.0
    %v458 = vmax.f32 %v383, 0.0
    %v459 = vmax.f32 %v385, 0.0
    %v460 = vmax.f32 %v388, 0.0
    %v461 = vmax.f32 %v390, 0.0
    %v462 = vmax.f32 %v393, 0.0
    %v463 = vmax.f32 %v395, 0.0
    %v464 = vmax.f32 %v398, 0.0
    %v465 = vmax.f32 %v400, 0.0
    %v466 = vpack.c.bf16 %v403, %v402
    %v467 = vpack.c.bf16 %v405, %v404
    %v468 = vpack.c.bf16 %v407, %v406
    %v469 = vpack.c.bf16 %v409, %v408
    %v470 = vpack.c.bf16 %v411, %v410
    %v471 = vpack.c.bf16 %v413, %v412
    %v472 = vpack.c.bf16 %v415, %v414
    %v473 = vpack.c.bf16 %v417, %v416
    %v474 = vpack.c.bf16 %v419, %v418
    %v475 = vpack.c.bf16 %v421, %v420
    %v476 = vpack.c.bf16 %v423, %v422
    %v477 = vpack.c.bf16 %v425, %v424
    %v478 = vpack.c.bf16 %v427, %v426
    %v479 = vpack.c.bf16 %v429, %v428
    %v480 = vpack.c.bf16 %v431, %v430
    %v481 = vpack.c.bf16 %v433, %v432
    %v482 = vpack.c.bf16 %v435, %v434
    %v483 = vpack.c.bf16 %v437, %v436
    %v484 = vpack.c.bf16 %v439, %v438
    %v485 = vpack.c.bf16 %v441, %v440
    %v486 = vpack.c.bf16 %v443, %v442
    %v487 = vpack.c.bf16 %v445, %v444
    %v488 = vpack.c.bf16 %v447, %v446
    %v489 = vpack.c.bf16 %v449, %v448
    %v490 = vpack.c.bf16 %v451, %v450
    %v491 = vpack.c.bf16 %v453, %v452
    %v492 = vpack.c.bf16 %v455, %v454
    %v493 = vpack.c.bf16 %v457, %v456
    %v494 = vpack.c.bf16 %v459, %v458
    %v495 = vpack.c.bf16 %v461, %v460
    %v496 = vpack.c.bf16 %v463, %v462
    %v497 = vpack.c.bf16 %v465, %v464
    %v498 = vld [vmem:[%s3] sm:$0xf]
    %v499 = vld [vmem:[%s3 + $0x4] sm:$0xf]
    %v500 = vld [vmem:[%s3 + $0x8] sm:$0xf]
    %v501 = vld [vmem:[%s3 + $0xc] sm:$0xf]
    %v502 = vld [vmem:[%s4] sm:$0x1]
    %v504 = vperm.slane %v502, 0
    %v510 = vunpack.c.l.b16 %v498
    %v511 = vunpack.c.l.b16 %v499
    %v512 = vunpack.c.l.b16 %v500
    %v513 = vunpack.c.l.b16 %v501
    %v514 = vpack.c.b16 %v511, %v510
    %v515 = vpack.c.b16 %v513, %v512
    %vm518 = vcmask 261120
    %v520 = vsel %vm518, %v466, 0
    %v523 = vsel %vm518, %v467, 0
    %v526 = vsel %vm518, %v468, 0
    %v529 = vsel %vm518, %v469, 0
    %v532 = vsel %vm518, %v470, 0
    %v535 = vsel %vm518, %v471, 0
    %v538 = vsel %vm518, %v472, 0
    %v541 = vsel %vm518, %v473, 0
    %v544 = vsel %vm518, %v474, 0
    %v547 = vsel %vm518, %v475, 0
    %v550 = vsel %vm518, %v476, 0
    %v553 = vsel %vm518, %v477, 0
    %v556 = vsel %vm518, %v478, 0
    %v559 = vsel %vm518, %v479, 0
    %v562 = vsel %vm518, %v480, 0
    %v565 = vsel %vm518, %v481, 0
    %v568 = vsel %vm518, %v482, 0
    %v571 = vsel %vm518, %v483, 0
    %v574 = vsel %vm518, %v484, 0
    %v577 = vsel %vm518, %v485, 0
    %v580 = vsel %vm518, %v486, 0
    %v583 = vsel %vm518, %v487, 0
    %v586 = vsel %vm518, %v488, 0
    %v589 = vsel %vm518, %v489, 0
    %v592 = vsel %vm518, %v490, 0
    %v595 = vsel %vm518, %v491, 0
    %v598 = vsel %vm518, %v492, 0
    %v601 = vsel %vm518, %v493, 0
    %v604 = vsel %vm518, %v494, 0
    %v607 = vsel %vm518, %v495, 0
    %v610 = vsel %vm518, %v496, 0
    %v613 = vsel %vm518, %v497, 0
    %615 = vmatpush.bf16.msra.mxu0 0
    %616 = vmatpush.bf16.msra.mxu0 0
    %617 = vmatpush.bf16.msra.mxu0 0
    %618 = vmatpush.bf16.msra.mxu0 0
    %619 = vmatpush.bf16.msra.mxu0 0
    %620 = vmatpush.bf16.msra.mxu0 0
    %621 = vmatpush.bf16.msra.mxu0 %v515
    %622 = vmatpush.bf16.msra.mxu0 %v514
    %623 = vmatmul.bf16.gmra.mxu0 %v520
    %v624 = vpop.f32.mrf.mxu0
    %v625 = vadd.f32 %v504, %v624
    %v626 = vpop.f32.mrf.mxu0
    %v627 = vadd.f32 %v504, %v626
    %628 = vmatmul.bf16.gmra.mxu0 %v523
    %v629 = vpop.f32.mrf.mxu0
    %v630 = vadd.f32 %v504, %v629
    %v631 = vpop.f32.mrf.mxu0
    %v632 = vadd.f32 %v504, %v631
    %633 = vmatmul.bf16.gmra.mxu0 %v526
    %v634 = vpop.f32.mrf.mxu0
    %v635 = vadd.f32 %v504, %v634
    %v636 = vpop.f32.mrf.mxu0
    %v637 = vadd.f32 %v504, %v636
    %638 = vmatmul.bf16.gmra.mxu0 %v529
    %v639 = vpop.f32.mrf.mxu0
    %v640 = vadd.f32 %v504, %v639
    %v641 = vpop.f32.mrf.mxu0
    %v642 = vadd.f32 %v504, %v641
    %643 = vmatmul.bf16.gmra.mxu0 %v532
    %v644 = vpop.f32.mrf.mxu0
    %v645 = vadd.f32 %v504, %v644
    %v646 = vpop.f32.mrf.mxu0
    %v647 = vadd.f32 %v504, %v646
    %648 = vmatmul.bf16.gmra.mxu0 %v535
    %v649 = vpop.f32.mrf.mxu0
    %v650 = vadd.f32 %v504, %v649
    %v651 = vpop.f32.mrf.mxu0
    %v652 = vadd.f32 %v504, %v651
    %653 = vmatmul.bf16.gmra.mxu0 %v538
    %v654 = vpop.f32.mrf.mxu0
    %v655 = vadd.f32 %v504, %v654
    %v656 = vpop.f32.mrf.mxu0
    %v657 = vadd.f32 %v504, %v656
    %658 = vmatmul.bf16.gmra.mxu0 %v541
    %v659 = vpop.f32.mrf.mxu0
    %v660 = vadd.f32 %v504, %v659
    %v661 = vpop.f32.mrf.mxu0
    %v662 = vadd.f32 %v504, %v661
    %663 = vmatmul.bf16.gmra.mxu0 %v544
    %v664 = vpop.f32.mrf.mxu0
    %v665 = vadd.f32 %v504, %v664
    %v666 = vpop.f32.mrf.mxu0
    %v667 = vadd.f32 %v504, %v666
    %668 = vmatmul.bf16.gmra.mxu0 %v547
    %v669 = vpop.f32.mrf.mxu0
    %v670 = vadd.f32 %v504, %v669
    %v671 = vpop.f32.mrf.mxu0
    %v672 = vadd.f32 %v504, %v671
    %673 = vmatmul.bf16.gmra.mxu0 %v550
    %v674 = vpop.f32.mrf.mxu0
    %v675 = vadd.f32 %v504, %v674
    %v676 = vpop.f32.mrf.mxu0
    %v677 = vadd.f32 %v504, %v676
    %678 = vmatmul.bf16.gmra.mxu0 %v553
    %v679 = vpop.f32.mrf.mxu0
    %v680 = vadd.f32 %v504, %v679
    %v681 = vpop.f32.mrf.mxu0
    %v682 = vadd.f32 %v504, %v681
    %683 = vmatmul.bf16.gmra.mxu0 %v556
    %v684 = vpop.f32.mrf.mxu0
    %v685 = vadd.f32 %v504, %v684
    %v686 = vpop.f32.mrf.mxu0
    %v687 = vadd.f32 %v504, %v686
    %688 = vmatmul.bf16.gmra.mxu0 %v559
    %v689 = vpop.f32.mrf.mxu0
    %v690 = vadd.f32 %v504, %v689
    %v691 = vpop.f32.mrf.mxu0
    %v692 = vadd.f32 %v504, %v691
    %693 = vmatmul.bf16.gmra.mxu0 %v562
    %v694 = vpop.f32.mrf.mxu0
    %v695 = vadd.f32 %v504, %v694
    %v696 = vpop.f32.mrf.mxu0
    %v697 = vadd.f32 %v504, %v696
    %698 = vmatmul.bf16.gmra.mxu0 %v565
    %v699 = vpop.f32.mrf.mxu0
    %v700 = vadd.f32 %v504, %v699
    %v701 = vpop.f32.mrf.mxu0
    %v702 = vadd.f32 %v504, %v701
    %703 = vmatmul.bf16.gmra.mxu0 %v568
    %v704 = vpop.f32.mrf.mxu0
    %v705 = vadd.f32 %v504, %v704
    %v706 = vpop.f32.mrf.mxu0
    %v707 = vadd.f32 %v504, %v706
    %708 = vmatmul.bf16.gmra.mxu0 %v571
    %v709 = vpop.f32.mrf.mxu0
    %v710 = vadd.f32 %v504, %v709
    %v711 = vpop.f32.mrf.mxu0
    %v712 = vadd.f32 %v504, %v711
    %713 = vmatmul.bf16.gmra.mxu0 %v574
    %v714 = vpop.f32.mrf.mxu0
    %v715 = vadd.f32 %v504, %v714
    %v716 = vpop.f32.mrf.mxu0
    %v717 = vadd.f32 %v504, %v716
    %718 = vmatmul.bf16.gmra.mxu0 %v577
    %v719 = vpop.f32.mrf.mxu0
    %v720 = vadd.f32 %v504, %v719
    %v721 = vpop.f32.mrf.mxu0
    %v722 = vadd.f32 %v504, %v721
    %723 = vmatmul.bf16.gmra.mxu0 %v580
    %v724 = vpop.f32.mrf.mxu0
    %v725 = vadd.f32 %v504, %v724
    %v726 = vpop.f32.mrf.mxu0
    %v727 = vadd.f32 %v504, %v726
    %728 = vmatmul.bf16.gmra.mxu0 %v583
    %v729 = vpop.f32.mrf.mxu0
    %v730 = vadd.f32 %v504, %v729
    %v731 = vpop.f32.mrf.mxu0
    %v732 = vadd.f32 %v504, %v731
    %733 = vmatmul.bf16.gmra.mxu0 %v586
    %v734 = vpop.f32.mrf.mxu0
    %v735 = vadd.f32 %v504, %v734
    %v736 = vpop.f32.mrf.mxu0
    %v737 = vadd.f32 %v504, %v736
    %738 = vmatmul.bf16.gmra.mxu0 %v589
    %v739 = vpop.f32.mrf.mxu0
    %v740 = vadd.f32 %v504, %v739
    %v741 = vpop.f32.mrf.mxu0
    %v742 = vadd.f32 %v504, %v741
    %743 = vmatmul.bf16.gmra.mxu0 %v592
    %v744 = vpop.f32.mrf.mxu0
    %v745 = vadd.f32 %v504, %v744
    %v746 = vpop.f32.mrf.mxu0
    %v747 = vadd.f32 %v504, %v746
    %748 = vmatmul.bf16.gmra.mxu0 %v595
    %v749 = vpop.f32.mrf.mxu0
    %v750 = vadd.f32 %v504, %v749
    %v751 = vpop.f32.mrf.mxu0
    %v752 = vadd.f32 %v504, %v751
    %753 = vmatmul.bf16.gmra.mxu0 %v598
    %v754 = vpop.f32.mrf.mxu0
    %v755 = vadd.f32 %v504, %v754
    %v756 = vpop.f32.mrf.mxu0
    %v757 = vadd.f32 %v504, %v756
    %758 = vmatmul.bf16.gmra.mxu0 %v601
    %v759 = vpop.f32.mrf.mxu0
    %v760 = vadd.f32 %v504, %v759
    %v761 = vpop.f32.mrf.mxu0
    %v762 = vadd.f32 %v504, %v761
    %763 = vmatmul.bf16.gmra.mxu0 %v604
    %v764 = vpop.f32.mrf.mxu0
    %v765 = vadd.f32 %v504, %v764
    %v766 = vpop.f32.mrf.mxu0
    %v767 = vadd.f32 %v504, %v766
    %768 = vmatmul.bf16.gmra.mxu0 %v607
    %v769 = vpop.f32.mrf.mxu0
    %v770 = vadd.f32 %v504, %v769
    %v771 = vpop.f32.mrf.mxu0
    %v772 = vadd.f32 %v504, %v771
    %773 = vmatmul.bf16.gmra.mxu0 %v610
    %v774 = vpop.f32.mrf.mxu0
    %v775 = vadd.f32 %v504, %v774
    %v776 = vpop.f32.mrf.mxu0
    %v777 = vadd.f32 %v504, %v776
    %778 = vmatmul.bf16.gmra.mxu0 %v613
    %v779 = vpop.f32.mrf.mxu0
    %v780 = vadd.f32 %v504, %v779
    %v781 = vpop.f32.mrf.mxu0
    %v782 = vadd.f32 %v504, %v781
    %783 = vdwg.mxu0
    %v784 = vmax.f32 %v625, 0.0
    %v785 = vmax.f32 %v627, 0.0
    %v786 = vmax.f32 %v630, 0.0
    %v787 = vmax.f32 %v632, 0.0
    %v788 = vmax.f32 %v635, 0.0
    %v789 = vmax.f32 %v637, 0.0
    %v790 = vmax.f32 %v640, 0.0
    %v791 = vmax.f32 %v642, 0.0
    %v792 = vmax.f32 %v645, 0.0
    %v793 = vmax.f32 %v647, 0.0
    %v794 = vmax.f32 %v650, 0.0
    %v795 = vmax.f32 %v652, 0.0
    %v796 = vmax.f32 %v655, 0.0
    %v797 = vmax.f32 %v657, 0.0
    %v798 = vmax.f32 %v660, 0.0
    %v799 = vmax.f32 %v662, 0.0
    %v800 = vmax.f32 %v665, 0.0
    %v801 = vmax.f32 %v667, 0.0
    %v802 = vmax.f32 %v670, 0.0
    %v803 = vmax.f32 %v672, 0.0
    %v804 = vmax.f32 %v675, 0.0
    %v805 = vmax.f32 %v677, 0.0
    %v806 = vmax.f32 %v680, 0.0
    %v807 = vmax.f32 %v682, 0.0
    %v808 = vmax.f32 %v685, 0.0
    %v809 = vmax.f32 %v687, 0.0
    %v810 = vmax.f32 %v690, 0.0
    %v811 = vmax.f32 %v692, 0.0
    %v812 = vmax.f32 %v695, 0.0
    %v813 = vmax.f32 %v697, 0.0
    %v814 = vmax.f32 %v700, 0.0
    %v815 = vmax.f32 %v702, 0.0
    %v816 = vmax.f32 %v705, 0.0
    %v817 = vmax.f32 %v707, 0.0
    %v818 = vmax.f32 %v710, 0.0
    %v819 = vmax.f32 %v712, 0.0
    %v820 = vmax.f32 %v715, 0.0
    %v821 = vmax.f32 %v717, 0.0
    %v822 = vmax.f32 %v720, 0.0
    %v823 = vmax.f32 %v722, 0.0
    %v824 = vmax.f32 %v725, 0.0
    %v825 = vmax.f32 %v727, 0.0
    %v826 = vmax.f32 %v730, 0.0
    %v827 = vmax.f32 %v732, 0.0
    %v828 = vmax.f32 %v735, 0.0
    %v829 = vmax.f32 %v737, 0.0
    %v830 = vmax.f32 %v740, 0.0
    %v831 = vmax.f32 %v742, 0.0
    %v832 = vmax.f32 %v745, 0.0
    %v833 = vmax.f32 %v747, 0.0
    %v834 = vmax.f32 %v750, 0.0
    %v835 = vmax.f32 %v752, 0.0
    %v836 = vmax.f32 %v755, 0.0
    %v837 = vmax.f32 %v757, 0.0
    %v838 = vmax.f32 %v760, 0.0
    %v839 = vmax.f32 %v762, 0.0
    %v840 = vmax.f32 %v765, 0.0
    %v841 = vmax.f32 %v767, 0.0
    %v842 = vmax.f32 %v770, 0.0
    %v843 = vmax.f32 %v772, 0.0
    %v844 = vmax.f32 %v775, 0.0
    %v845 = vmax.f32 %v777, 0.0
    %v846 = vmax.f32 %v780, 0.0
    %v847 = vmax.f32 %v782, 0.0
    %v848 = vpack.c.bf16 %v785, %v784
    %v849 = vpack.c.bf16 %v787, %v786
    %v850 = vpack.c.bf16 %v789, %v788
    %v851 = vpack.c.bf16 %v791, %v790
    %v852 = vpack.c.bf16 %v793, %v792
    %v853 = vpack.c.bf16 %v795, %v794
    %v854 = vpack.c.bf16 %v797, %v796
    %v855 = vpack.c.bf16 %v799, %v798
    %v856 = vpack.c.bf16 %v801, %v800
    %v857 = vpack.c.bf16 %v803, %v802
    %v858 = vpack.c.bf16 %v805, %v804
    %v859 = vpack.c.bf16 %v807, %v806
    %v860 = vpack.c.bf16 %v809, %v808
    %v861 = vpack.c.bf16 %v811, %v810
    %v862 = vpack.c.bf16 %v813, %v812
    %v863 = vpack.c.bf16 %v815, %v814
    %v864 = vpack.c.bf16 %v817, %v816
    %v865 = vpack.c.bf16 %v819, %v818
    %v866 = vpack.c.bf16 %v821, %v820
    %v867 = vpack.c.bf16 %v823, %v822
    %v868 = vpack.c.bf16 %v825, %v824
    %v869 = vpack.c.bf16 %v827, %v826
    %v870 = vpack.c.bf16 %v829, %v828
    %v871 = vpack.c.bf16 %v831, %v830
    %v872 = vpack.c.bf16 %v833, %v832
    %v873 = vpack.c.bf16 %v835, %v834
    %v874 = vpack.c.bf16 %v837, %v836
    %v875 = vpack.c.bf16 %v839, %v838
    %v876 = vpack.c.bf16 %v841, %v840
    %v877 = vpack.c.bf16 %v843, %v842
    %v878 = vpack.c.bf16 %v845, %v844
    %v879 = vpack.c.bf16 %v847, %v846
    %v880 = vld [vmem:[%s5] sm:$0xf]
    %v881 = vld [vmem:[%s5 + $0x4] sm:$0xf]
    %v882 = vld [vmem:[%s5 + $0x8] sm:$0xf]
    %v883 = vld [vmem:[%s5 + $0xc] sm:$0xf]
    %v884 = vld [vmem:[%s6] sm:$0x1]
    %v886 = vperm.slane %v884, 0
    %v892 = vunpack.c.l.b16 %v880
    %v893 = vunpack.c.l.b16 %v881
    %v894 = vunpack.c.l.b16 %v882
    %v895 = vunpack.c.l.b16 %v883
    %v896 = vpack.c.b16 %v893, %v892
    %v897 = vpack.c.b16 %v895, %v894
    %v901 = vsel %vm518, %v848, 0
    %v904 = vsel %vm518, %v849, 0
    %v907 = vsel %vm518, %v850, 0
    %v910 = vsel %vm518, %v851, 0
    %v913 = vsel %vm518, %v852, 0
    %v916 = vsel %vm518, %v853, 0
    %v919 = vsel %vm518, %v854, 0
    %v922 = vsel %vm518, %v855, 0
    %v925 = vsel %vm518, %v856, 0
    %v928 = vsel %vm518, %v857, 0
    %v931 = vsel %vm518, %v858, 0
    %v934 = vsel %vm518, %v859, 0
    %v937 = vsel %vm518, %v860, 0
    %v940 = vsel %vm518, %v861, 0
    %v943 = vsel %vm518, %v862, 0
    %v946 = vsel %vm518, %v863, 0
    %v949 = vsel %vm518, %v864, 0
    %v952 = vsel %vm518, %v865, 0
    %v955 = vsel %vm518, %v866, 0
    %v958 = vsel %vm518, %v867, 0
    %v961 = vsel %vm518, %v868, 0
    %v964 = vsel %vm518, %v869, 0
    %v967 = vsel %vm518, %v870, 0
    %v970 = vsel %vm518, %v871, 0
    %v973 = vsel %vm518, %v872, 0
    %v976 = vsel %vm518, %v873, 0
    %v979 = vsel %vm518, %v874, 0
    %v982 = vsel %vm518, %v875, 0
    %v985 = vsel %vm518, %v876, 0
    %v988 = vsel %vm518, %v877, 0
    %v991 = vsel %vm518, %v878, 0
    %v994 = vsel %vm518, %v879, 0
    %996 = vmatpush.bf16.msra.mxu0 0
    %997 = vmatpush.bf16.msra.mxu0 0
    %998 = vmatpush.bf16.msra.mxu0 0
    %999 = vmatpush.bf16.msra.mxu0 0
    %1000 = vmatpush.bf16.msra.mxu0 0
    %1001 = vmatpush.bf16.msra.mxu0 0
    %1002 = vmatpush.bf16.msra.mxu0 %v897
    %1003 = vmatpush.bf16.msra.mxu0 %v896
    %1004 = vmatmul.bf16.gmra.mxu0 %v901
    %v1005 = vpop.f32.mrf.mxu0
    %v1006 = vadd.f32 %v886, %v1005
    %v1007 = vpop.f32.mrf.mxu0
    %v1008 = vadd.f32 %v886, %v1007
    %1009 = vmatmul.bf16.gmra.mxu0 %v904
    %v1010 = vpop.f32.mrf.mxu0
    %v1011 = vadd.f32 %v886, %v1010
    %v1012 = vpop.f32.mrf.mxu0
    %v1013 = vadd.f32 %v886, %v1012
    %1014 = vmatmul.bf16.gmra.mxu0 %v907
    %v1015 = vpop.f32.mrf.mxu0
    %v1016 = vadd.f32 %v886, %v1015
    %v1017 = vpop.f32.mrf.mxu0
    %v1018 = vadd.f32 %v886, %v1017
    %1019 = vmatmul.bf16.gmra.mxu0 %v910
    %v1020 = vpop.f32.mrf.mxu0
    %v1021 = vadd.f32 %v886, %v1020
    %v1022 = vpop.f32.mrf.mxu0
    %v1023 = vadd.f32 %v886, %v1022
    %1024 = vmatmul.bf16.gmra.mxu0 %v913
    %v1025 = vpop.f32.mrf.mxu0
    %v1026 = vadd.f32 %v886, %v1025
    %v1027 = vpop.f32.mrf.mxu0
    %v1028 = vadd.f32 %v886, %v1027
    %1029 = vmatmul.bf16.gmra.mxu0 %v916
    %v1030 = vpop.f32.mrf.mxu0
    %v1031 = vadd.f32 %v886, %v1030
    %v1032 = vpop.f32.mrf.mxu0
    %v1033 = vadd.f32 %v886, %v1032
    %1034 = vmatmul.bf16.gmra.mxu0 %v919
    %v1035 = vpop.f32.mrf.mxu0
    %v1036 = vadd.f32 %v886, %v1035
    %v1037 = vpop.f32.mrf.mxu0
    %v1038 = vadd.f32 %v886, %v1037
    %1039 = vmatmul.bf16.gmra.mxu0 %v922
    %v1040 = vpop.f32.mrf.mxu0
    %v1041 = vadd.f32 %v886, %v1040
    %v1042 = vpop.f32.mrf.mxu0
    %v1043 = vadd.f32 %v886, %v1042
    %1044 = vmatmul.bf16.gmra.mxu0 %v925
    %v1045 = vpop.f32.mrf.mxu0
    %v1046 = vadd.f32 %v886, %v1045
    %v1047 = vpop.f32.mrf.mxu0
    %v1048 = vadd.f32 %v886, %v1047
    %1049 = vmatmul.bf16.gmra.mxu0 %v928
    %v1050 = vpop.f32.mrf.mxu0
    %v1051 = vadd.f32 %v886, %v1050
    %v1052 = vpop.f32.mrf.mxu0
    %v1053 = vadd.f32 %v886, %v1052
    %1054 = vmatmul.bf16.gmra.mxu0 %v931
    %v1055 = vpop.f32.mrf.mxu0
    %v1056 = vadd.f32 %v886, %v1055
    %v1057 = vpop.f32.mrf.mxu0
    %v1058 = vadd.f32 %v886, %v1057
    %1059 = vmatmul.bf16.gmra.mxu0 %v934
    %v1060 = vpop.f32.mrf.mxu0
    %v1061 = vadd.f32 %v886, %v1060
    %v1062 = vpop.f32.mrf.mxu0
    %v1063 = vadd.f32 %v886, %v1062
    %1064 = vmatmul.bf16.gmra.mxu0 %v937
    %v1065 = vpop.f32.mrf.mxu0
    %v1066 = vadd.f32 %v886, %v1065
    %v1067 = vpop.f32.mrf.mxu0
    %v1068 = vadd.f32 %v886, %v1067
    %1069 = vmatmul.bf16.gmra.mxu0 %v940
    %v1070 = vpop.f32.mrf.mxu0
    %v1071 = vadd.f32 %v886, %v1070
    %v1072 = vpop.f32.mrf.mxu0
    %v1073 = vadd.f32 %v886, %v1072
    %1074 = vmatmul.bf16.gmra.mxu0 %v943
    %v1075 = vpop.f32.mrf.mxu0
    %v1076 = vadd.f32 %v886, %v1075
    %v1077 = vpop.f32.mrf.mxu0
    %v1078 = vadd.f32 %v886, %v1077
    %1079 = vmatmul.bf16.gmra.mxu0 %v946
    %v1080 = vpop.f32.mrf.mxu0
    %v1081 = vadd.f32 %v886, %v1080
    %v1082 = vpop.f32.mrf.mxu0
    %v1083 = vadd.f32 %v886, %v1082
    %1084 = vmatmul.bf16.gmra.mxu0 %v949
    %v1085 = vpop.f32.mrf.mxu0
    %v1086 = vadd.f32 %v886, %v1085
    %v1087 = vpop.f32.mrf.mxu0
    %v1088 = vadd.f32 %v886, %v1087
    %1089 = vmatmul.bf16.gmra.mxu0 %v952
    %v1090 = vpop.f32.mrf.mxu0
    %v1091 = vadd.f32 %v886, %v1090
    %v1092 = vpop.f32.mrf.mxu0
    %v1093 = vadd.f32 %v886, %v1092
    %1094 = vmatmul.bf16.gmra.mxu0 %v955
    %v1095 = vpop.f32.mrf.mxu0
    %v1096 = vadd.f32 %v886, %v1095
    %v1097 = vpop.f32.mrf.mxu0
    %v1098 = vadd.f32 %v886, %v1097
    %1099 = vmatmul.bf16.gmra.mxu0 %v958
    %v1100 = vpop.f32.mrf.mxu0
    %v1101 = vadd.f32 %v886, %v1100
    %v1102 = vpop.f32.mrf.mxu0
    %v1103 = vadd.f32 %v886, %v1102
    %1104 = vmatmul.bf16.gmra.mxu0 %v961
    %v1105 = vpop.f32.mrf.mxu0
    %v1106 = vadd.f32 %v886, %v1105
    %v1107 = vpop.f32.mrf.mxu0
    %v1108 = vadd.f32 %v886, %v1107
    %1109 = vmatmul.bf16.gmra.mxu0 %v964
    %v1110 = vpop.f32.mrf.mxu0
    %v1111 = vadd.f32 %v886, %v1110
    %v1112 = vpop.f32.mrf.mxu0
    %v1113 = vadd.f32 %v886, %v1112
    %1114 = vmatmul.bf16.gmra.mxu0 %v967
    %v1115 = vpop.f32.mrf.mxu0
    %v1116 = vadd.f32 %v886, %v1115
    %v1117 = vpop.f32.mrf.mxu0
    %v1118 = vadd.f32 %v886, %v1117
    %1119 = vmatmul.bf16.gmra.mxu0 %v970
    %v1120 = vpop.f32.mrf.mxu0
    %v1121 = vadd.f32 %v886, %v1120
    %v1122 = vpop.f32.mrf.mxu0
    %v1123 = vadd.f32 %v886, %v1122
    %1124 = vmatmul.bf16.gmra.mxu0 %v973
    %v1125 = vpop.f32.mrf.mxu0
    %v1126 = vadd.f32 %v886, %v1125
    %v1127 = vpop.f32.mrf.mxu0
    %v1128 = vadd.f32 %v886, %v1127
    %1129 = vmatmul.bf16.gmra.mxu0 %v976
    %v1130 = vpop.f32.mrf.mxu0
    %v1131 = vadd.f32 %v886, %v1130
    %v1132 = vpop.f32.mrf.mxu0
    %v1133 = vadd.f32 %v886, %v1132
    %1134 = vmatmul.bf16.gmra.mxu0 %v979
    %v1135 = vpop.f32.mrf.mxu0
    %v1136 = vadd.f32 %v886, %v1135
    %v1137 = vpop.f32.mrf.mxu0
    %v1138 = vadd.f32 %v886, %v1137
    %1139 = vmatmul.bf16.gmra.mxu0 %v982
    %v1140 = vpop.f32.mrf.mxu0
    %v1141 = vadd.f32 %v886, %v1140
    %v1142 = vpop.f32.mrf.mxu0
    %v1143 = vadd.f32 %v886, %v1142
    %1144 = vmatmul.bf16.gmra.mxu0 %v985
    %v1145 = vpop.f32.mrf.mxu0
    %v1146 = vadd.f32 %v886, %v1145
    %v1147 = vpop.f32.mrf.mxu0
    %v1148 = vadd.f32 %v886, %v1147
    %1149 = vmatmul.bf16.gmra.mxu0 %v988
    %v1150 = vpop.f32.mrf.mxu0
    %v1151 = vadd.f32 %v886, %v1150
    %v1152 = vpop.f32.mrf.mxu0
    %v1153 = vadd.f32 %v886, %v1152
    %1154 = vmatmul.bf16.gmra.mxu0 %v991
    %v1155 = vpop.f32.mrf.mxu0
    %v1156 = vadd.f32 %v886, %v1155
    %v1157 = vpop.f32.mrf.mxu0
    %v1158 = vadd.f32 %v886, %v1157
    %1159 = vmatmul.bf16.gmra.mxu0 %v994
    %v1160 = vpop.f32.mrf.mxu0
    %v1161 = vadd.f32 %v886, %v1160
    %v1162 = vpop.f32.mrf.mxu0
    %v1163 = vadd.f32 %v886, %v1162
    %1164 = vdwg.mxu0
    %v1165 = vsub.f32 0.0, %v1006
    %v1166 = vsub.f32 0.0, %v1008
    %v1167 = vsub.f32 0.0, %v1011
    %v1168 = vsub.f32 0.0, %v1013
    %v1169 = vsub.f32 0.0, %v1016
    %v1170 = vsub.f32 0.0, %v1018
    %v1171 = vsub.f32 0.0, %v1021
    %v1172 = vsub.f32 0.0, %v1023
    %v1173 = vsub.f32 0.0, %v1026
    %v1174 = vsub.f32 0.0, %v1028
    %v1175 = vsub.f32 0.0, %v1031
    %v1176 = vsub.f32 0.0, %v1033
    %v1177 = vsub.f32 0.0, %v1036
    %v1178 = vsub.f32 0.0, %v1038
    %v1179 = vsub.f32 0.0, %v1041
    %v1180 = vsub.f32 0.0, %v1043
    %v1181 = vsub.f32 0.0, %v1046
    %v1182 = vsub.f32 0.0, %v1048
    %v1183 = vsub.f32 0.0, %v1051
    %v1184 = vsub.f32 0.0, %v1053
    %v1185 = vsub.f32 0.0, %v1056
    %v1186 = vsub.f32 0.0, %v1058
    %v1187 = vsub.f32 0.0, %v1061
    %v1188 = vsub.f32 0.0, %v1063
    %v1189 = vsub.f32 0.0, %v1066
    %v1190 = vsub.f32 0.0, %v1068
    %v1191 = vsub.f32 0.0, %v1071
    %v1192 = vsub.f32 0.0, %v1073
    %v1193 = vsub.f32 0.0, %v1076
    %v1194 = vsub.f32 0.0, %v1078
    %v1195 = vsub.f32 0.0, %v1081
    %v1196 = vsub.f32 0.0, %v1083
    %v1197 = vsub.f32 0.0, %v1086
    %v1198 = vsub.f32 0.0, %v1088
    %v1199 = vsub.f32 0.0, %v1091
    %v1200 = vsub.f32 0.0, %v1093
    %v1201 = vsub.f32 0.0, %v1096
    %v1202 = vsub.f32 0.0, %v1098
    %v1203 = vsub.f32 0.0, %v1101
    %v1204 = vsub.f32 0.0, %v1103
    %v1205 = vsub.f32 0.0, %v1106
    %v1206 = vsub.f32 0.0, %v1108
    %v1207 = vsub.f32 0.0, %v1111
    %v1208 = vsub.f32 0.0, %v1113
    %v1209 = vsub.f32 0.0, %v1116
    %v1210 = vsub.f32 0.0, %v1118
    %v1211 = vsub.f32 0.0, %v1121
    %v1212 = vsub.f32 0.0, %v1123
    %v1213 = vsub.f32 0.0, %v1126
    %v1214 = vsub.f32 0.0, %v1128
    %v1215 = vsub.f32 0.0, %v1131
    %v1216 = vsub.f32 0.0, %v1133
    %v1217 = vsub.f32 0.0, %v1136
    %v1218 = vsub.f32 0.0, %v1138
    %v1219 = vsub.f32 0.0, %v1141
    %v1220 = vsub.f32 0.0, %v1143
    %v1221 = vsub.f32 0.0, %v1146
    %v1222 = vsub.f32 0.0, %v1148
    %v1223 = vsub.f32 0.0, %v1151
    %v1224 = vsub.f32 0.0, %v1153
    %v1225 = vsub.f32 0.0, %v1156
    %v1226 = vsub.f32 0.0, %v1158
    %v1227 = vsub.f32 0.0, %v1161
    %v1228 = vsub.f32 0.0, %v1163
    %v1229 = vmul.f32 %v1165, 1.442695
    %v1230 = vpow.pop %v1229
    %v1231 = vmul.f32 %v1166, 1.442695
    %v1232 = vpow.pop %v1231
    %v1233 = vmul.f32 %v1167, 1.442695
    %v1234 = vpow.pop %v1233
    %v1235 = vmul.f32 %v1168, 1.442695
    %v1236 = vpow.pop %v1235
    %v1237 = vmul.f32 %v1169, 1.442695
    %v1238 = vpow.pop %v1237
    %v1239 = vmul.f32 %v1170, 1.442695
    %v1240 = vpow.pop %v1239
    %v1241 = vmul.f32 %v1171, 1.442695
    %v1242 = vpow.pop %v1241
    %v1243 = vmul.f32 %v1172, 1.442695
    %v1244 = vpow.pop %v1243
    %v1245 = vmul.f32 %v1173, 1.442695
    %v1246 = vpow.pop %v1245
    %v1247 = vmul.f32 %v1174, 1.442695
    %v1248 = vpow.pop %v1247
    %v1249 = vmul.f32 %v1175, 1.442695
    %v1250 = vpow.pop %v1249
    %v1251 = vmul.f32 %v1176, 1.442695
    %v1252 = vpow.pop %v1251
    %v1253 = vmul.f32 %v1177, 1.442695
    %v1254 = vpow.pop %v1253
    %v1255 = vmul.f32 %v1178, 1.442695
    %v1256 = vpow.pop %v1255
    %v1257 = vmul.f32 %v1179, 1.442695
    %v1258 = vpow.pop %v1257
    %v1259 = vmul.f32 %v1180, 1.442695
    %v1260 = vpow.pop %v1259
    %v1261 = vmul.f32 %v1181, 1.442695
    %v1262 = vpow.pop %v1261
    %v1263 = vmul.f32 %v1182, 1.442695
    %v1264 = vpow.pop %v1263
    %v1265 = vmul.f32 %v1183, 1.442695
    %v1266 = vpow.pop %v1265
    %v1267 = vmul.f32 %v1184, 1.442695
    %v1268 = vpow.pop %v1267
    %v1269 = vmul.f32 %v1185, 1.442695
    %v1270 = vpow.pop %v1269
    %v1271 = vmul.f32 %v1186, 1.442695
    %v1272 = vpow.pop %v1271
    %v1273 = vmul.f32 %v1187, 1.442695
    %v1274 = vpow.pop %v1273
    %v1275 = vmul.f32 %v1188, 1.442695
    %v1276 = vpow.pop %v1275
    %v1277 = vmul.f32 %v1189, 1.442695
    %v1278 = vpow.pop %v1277
    %v1279 = vmul.f32 %v1190, 1.442695
    %v1280 = vpow.pop %v1279
    %v1281 = vmul.f32 %v1191, 1.442695
    %v1282 = vpow.pop %v1281
    %v1283 = vmul.f32 %v1192, 1.442695
    %v1284 = vpow.pop %v1283
    %v1285 = vmul.f32 %v1193, 1.442695
    %v1286 = vpow.pop %v1285
    %v1287 = vmul.f32 %v1194, 1.442695
    %v1288 = vpow.pop %v1287
    %v1289 = vmul.f32 %v1195, 1.442695
    %v1290 = vpow.pop %v1289
    %v1291 = vmul.f32 %v1196, 1.442695
    %v1292 = vpow.pop %v1291
    %v1293 = vmul.f32 %v1197, 1.442695
    %v1294 = vpow.pop %v1293
    %v1295 = vmul.f32 %v1198, 1.442695
    %v1296 = vpow.pop %v1295
    %v1297 = vmul.f32 %v1199, 1.442695
    %v1298 = vpow.pop %v1297
    %v1299 = vmul.f32 %v1200, 1.442695
    %v1300 = vpow.pop %v1299
    %v1301 = vmul.f32 %v1201, 1.442695
    %v1302 = vpow.pop %v1301
    %v1303 = vmul.f32 %v1202, 1.442695
    %v1304 = vpow.pop %v1303
    %v1305 = vmul.f32 %v1203, 1.442695
    %v1306 = vpow.pop %v1305
    %v1307 = vmul.f32 %v1204, 1.442695
    %v1308 = vpow.pop %v1307
    %v1309 = vmul.f32 %v1205, 1.442695
    %v1310 = vpow.pop %v1309
    %v1311 = vmul.f32 %v1206, 1.442695
    %v1312 = vpow.pop %v1311
    %v1313 = vmul.f32 %v1207, 1.442695
    %v1314 = vpow.pop %v1313
    %v1315 = vmul.f32 %v1208, 1.442695
    %v1316 = vpow.pop %v1315
    %v1317 = vmul.f32 %v1209, 1.442695
    %v1318 = vpow.pop %v1317
    %v1319 = vmul.f32 %v1210, 1.442695
    %v1320 = vpow.pop %v1319
    %v1321 = vmul.f32 %v1211, 1.442695
    %v1322 = vpow.pop %v1321
    %v1323 = vmul.f32 %v1212, 1.442695
    %v1324 = vpow.pop %v1323
    %v1325 = vmul.f32 %v1213, 1.442695
    %v1326 = vpow.pop %v1325
    %v1327 = vmul.f32 %v1214, 1.442695
    %v1328 = vpow.pop %v1327
    %v1329 = vmul.f32 %v1215, 1.442695
    %v1330 = vpow.pop %v1329
    %v1331 = vmul.f32 %v1216, 1.442695
    %v1332 = vpow.pop %v1331
    %v1333 = vmul.f32 %v1217, 1.442695
    %v1334 = vpow.pop %v1333
    %v1335 = vmul.f32 %v1218, 1.442695
    %v1336 = vpow.pop %v1335
    %v1337 = vmul.f32 %v1219, 1.442695
    %v1338 = vpow.pop %v1337
    %v1339 = vmul.f32 %v1220, 1.442695
    %v1340 = vpow.pop %v1339
    %v1341 = vmul.f32 %v1221, 1.442695
    %v1342 = vpow.pop %v1341
    %v1343 = vmul.f32 %v1222, 1.442695
    %v1344 = vpow.pop %v1343
    %v1345 = vmul.f32 %v1223, 1.442695
    %v1346 = vpow.pop %v1345
    %v1347 = vmul.f32 %v1224, 1.442695
    %v1348 = vpow.pop %v1347
    %v1349 = vmul.f32 %v1225, 1.442695
    %v1350 = vpow.pop %v1349
    %v1351 = vmul.f32 %v1226, 1.442695
    %v1352 = vpow.pop %v1351
    %v1353 = vmul.f32 %v1227, 1.442695
    %v1354 = vpow.pop %v1353
    %v1355 = vmul.f32 %v1228, 1.442695
    %v1356 = vpow.pop %v1355
    %v1357 = vadd.f32 %v1230, 1.0
    %v1358 = vadd.f32 %v1232, 1.0
    %v1359 = vadd.f32 %v1234, 1.0
    %v1360 = vadd.f32 %v1236, 1.0
    %v1361 = vadd.f32 %v1238, 1.0
    %v1362 = vadd.f32 %v1240, 1.0
    %v1363 = vadd.f32 %v1242, 1.0
    %v1364 = vadd.f32 %v1244, 1.0
    %v1365 = vadd.f32 %v1246, 1.0
    %v1366 = vadd.f32 %v1248, 1.0
    %v1367 = vadd.f32 %v1250, 1.0
    %v1368 = vadd.f32 %v1252, 1.0
    %v1369 = vadd.f32 %v1254, 1.0
    %v1370 = vadd.f32 %v1256, 1.0
    %v1371 = vadd.f32 %v1258, 1.0
    %v1372 = vadd.f32 %v1260, 1.0
    %v1373 = vadd.f32 %v1262, 1.0
    %v1374 = vadd.f32 %v1264, 1.0
    %v1375 = vadd.f32 %v1266, 1.0
    %v1376 = vadd.f32 %v1268, 1.0
    %v1377 = vadd.f32 %v1270, 1.0
    %v1378 = vadd.f32 %v1272, 1.0
    %v1379 = vadd.f32 %v1274, 1.0
    %v1380 = vadd.f32 %v1276, 1.0
    %v1381 = vadd.f32 %v1278, 1.0
    %v1382 = vadd.f32 %v1280, 1.0
    %v1383 = vadd.f32 %v1282, 1.0
    %v1384 = vadd.f32 %v1284, 1.0
    %v1385 = vadd.f32 %v1286, 1.0
    %v1386 = vadd.f32 %v1288, 1.0
    %v1387 = vadd.f32 %v1290, 1.0
    %v1388 = vadd.f32 %v1292, 1.0
    %v1389 = vadd.f32 %v1294, 1.0
    %v1390 = vadd.f32 %v1296, 1.0
    %v1391 = vadd.f32 %v1298, 1.0
    %v1392 = vadd.f32 %v1300, 1.0
    %v1393 = vadd.f32 %v1302, 1.0
    %v1394 = vadd.f32 %v1304, 1.0
    %v1395 = vadd.f32 %v1306, 1.0
    %v1396 = vadd.f32 %v1308, 1.0
    %v1397 = vadd.f32 %v1310, 1.0
    %v1398 = vadd.f32 %v1312, 1.0
    %v1399 = vadd.f32 %v1314, 1.0
    %v1400 = vadd.f32 %v1316, 1.0
    %v1401 = vadd.f32 %v1318, 1.0
    %v1402 = vadd.f32 %v1320, 1.0
    %v1403 = vadd.f32 %v1322, 1.0
    %v1404 = vadd.f32 %v1324, 1.0
    %v1405 = vadd.f32 %v1326, 1.0
    %v1406 = vadd.f32 %v1328, 1.0
    %v1407 = vadd.f32 %v1330, 1.0
    %v1408 = vadd.f32 %v1332, 1.0
    %v1409 = vadd.f32 %v1334, 1.0
    %v1410 = vadd.f32 %v1336, 1.0
    %v1411 = vadd.f32 %v1338, 1.0
    %v1412 = vadd.f32 %v1340, 1.0
    %v1413 = vadd.f32 %v1342, 1.0
    %v1414 = vadd.f32 %v1344, 1.0
    %v1415 = vadd.f32 %v1346, 1.0
    %v1416 = vadd.f32 %v1348, 1.0
    %v1417 = vadd.f32 %v1350, 1.0
    %v1418 = vadd.f32 %v1352, 1.0
    %v1419 = vadd.f32 %v1354, 1.0
    %v1420 = vadd.f32 %v1356, 1.0
    %v1421 = vrcp.pop %v1357
    %v1422 = vmul.f32 %v1357, %v1421
    %v1423 = vsub.f32 1.0, %v1422
    %v1424 = vmul.f32 %v1421, %v1423
    %v1425 = vadd.f32 %v1421, %v1424
    %vm1426 = vweird.f32 %v1357
    %vm1427 = vweird.f32 %v1421
    %vm1428 = vmor %vm1426, %vm1427
    %v1429 = vsel %vm1428, %v1421, %v1425
    %v1430 = vand.u32 2147483647, %v1357
    %vm1431 = vcmp.eq.f32.partialorder %v1430, 8.507059e+37
    %v1432 = vand.u32 %v1357, 2147483648
    %v1433 = vor.u32 1.1754944e-38, %v1432
    %v1434 = vsel %vm1431, %v1433, %v1429
    %v1435 = vmul.f32 1.0, %v1434
    %v1436 = vrcp.pop %v1358
    %v1437 = vmul.f32 %v1358, %v1436
    %v1438 = vsub.f32 1.0, %v1437
    %v1439 = vmul.f32 %v1436, %v1438
    %v1440 = vadd.f32 %v1436, %v1439
    %vm1441 = vweird.f32 %v1358
    %vm1442 = vweird.f32 %v1436
    %vm1443 = vmor %vm1441, %vm1442
    %v1444 = vsel %vm1443, %v1436, %v1440
    %v1445 = vand.u32 2147483647, %v1358
    %vm1446 = vcmp.eq.f32.partialorder %v1445, 8.507059e+37
    %v1447 = vand.u32 %v1358, 2147483648
    %v1448 = vor.u32 1.1754944e-38, %v1447
    %v1449 = vsel %vm1446, %v1448, %v1444
    %v1450 = vmul.f32 1.0, %v1449
    %v1451 = vrcp.pop %v1359
    %v1452 = vmul.f32 %v1359, %v1451
    %v1453 = vsub.f32 1.0, %v1452
    %v1454 = vmul.f32 %v1451, %v1453
    %v1455 = vadd.f32 %v1451, %v1454
    %vm1456 = vweird.f32 %v1359
    %vm1457 = vweird.f32 %v1451
    %vm1458 = vmor %vm1456, %vm1457
    %v1459 = vsel %vm1458, %v1451, %v1455
    %v1460 = vand.u32 2147483647, %v1359
    %vm1461 = vcmp.eq.f32.partialorder %v1460, 8.507059e+37
    %v1462 = vand.u32 %v1359, 2147483648
    %v1463 = vor.u32 1.1754944e-38, %v1462
    %v1464 = vsel %vm1461, %v1463, %v1459
    %v1465 = vmul.f32 1.0, %v1464
    %v1466 = vrcp.pop %v1360
    %v1467 = vmul.f32 %v1360, %v1466
    %v1468 = vsub.f32 1.0, %v1467
    %v1469 = vmul.f32 %v1466, %v1468
    %v1470 = vadd.f32 %v1466, %v1469
    %vm1471 = vweird.f32 %v1360
    %vm1472 = vweird.f32 %v1466
    %vm1473 = vmor %vm1471, %vm1472
    %v1474 = vsel %vm1473, %v1466, %v1470
    %v1475 = vand.u32 2147483647, %v1360
    %vm1476 = vcmp.eq.f32.partialorder %v1475, 8.507059e+37
    %v1477 = vand.u32 %v1360, 2147483648
    %v1478 = vor.u32 1.1754944e-38, %v1477
    %v1479 = vsel %vm1476, %v1478, %v1474
    %v1480 = vmul.f32 1.0, %v1479
    %v1481 = vrcp.pop %v1361
    %v1482 = vmul.f32 %v1361, %v1481
    %v1483 = vsub.f32 1.0, %v1482
    %v1484 = vmul.f32 %v1481, %v1483
    %v1485 = vadd.f32 %v1481, %v1484
    %vm1486 = vweird.f32 %v1361
    %vm1487 = vweird.f32 %v1481
    %vm1488 = vmor %vm1486, %vm1487
    %v1489 = vsel %vm1488, %v1481, %v1485
    %v1490 = vand.u32 2147483647, %v1361
    %vm1491 = vcmp.eq.f32.partialorder %v1490, 8.507059e+37
    %v1492 = vand.u32 %v1361, 2147483648
    %v1493 = vor.u32 1.1754944e-38, %v1492
    %v1494 = vsel %vm1491, %v1493, %v1489
    %v1495 = vmul.f32 1.0, %v1494
    %v1496 = vrcp.pop %v1362
    %v1497 = vmul.f32 %v1362, %v1496
    %v1498 = vsub.f32 1.0, %v1497
    %v1499 = vmul.f32 %v1496, %v1498
    %v1500 = vadd.f32 %v1496, %v1499
    %vm1501 = vweird.f32 %v1362
    %vm1502 = vweird.f32 %v1496
    %vm1503 = vmor %vm1501, %vm1502
    %v1504 = vsel %vm1503, %v1496, %v1500
    %v1505 = vand.u32 2147483647, %v1362
    %vm1506 = vcmp.eq.f32.partialorder %v1505, 8.507059e+37
    %v1507 = vand.u32 %v1362, 2147483648
    %v1508 = vor.u32 1.1754944e-38, %v1507
    %v1509 = vsel %vm1506, %v1508, %v1504
    %v1510 = vmul.f32 1.0, %v1509
    %v1511 = vrcp.pop %v1363
    %v1512 = vmul.f32 %v1363, %v1511
    %v1513 = vsub.f32 1.0, %v1512
    %v1514 = vmul.f32 %v1511, %v1513
    %v1515 = vadd.f32 %v1511, %v1514
    %vm1516 = vweird.f32 %v1363
    %vm1517 = vweird.f32 %v1511
    %vm1518 = vmor %vm1516, %vm1517
    %v1519 = vsel %vm1518, %v1511, %v1515
    %v1520 = vand.u32 2147483647, %v1363
    %vm1521 = vcmp.eq.f32.partialorder %v1520, 8.507059e+37
    %v1522 = vand.u32 %v1363, 2147483648
    %v1523 = vor.u32 1.1754944e-38, %v1522
    %v1524 = vsel %vm1521, %v1523, %v1519
    %v1525 = vmul.f32 1.0, %v1524
    %v1526 = vrcp.pop %v1364
    %v1527 = vmul.f32 %v1364, %v1526
    %v1528 = vsub.f32 1.0, %v1527
    %v1529 = vmul.f32 %v1526, %v1528
    %v1530 = vadd.f32 %v1526, %v1529
    %vm1531 = vweird.f32 %v1364
    %vm1532 = vweird.f32 %v1526
    %vm1533 = vmor %vm1531, %vm1532
    %v1534 = vsel %vm1533, %v1526, %v1530
    %v1535 = vand.u32 2147483647, %v1364
    %vm1536 = vcmp.eq.f32.partialorder %v1535, 8.507059e+37
    %v1537 = vand.u32 %v1364, 2147483648
    %v1538 = vor.u32 1.1754944e-38, %v1537
    %v1539 = vsel %vm1536, %v1538, %v1534
    %v1540 = vmul.f32 1.0, %v1539
    %v1541 = vrcp.pop %v1365
    %v1542 = vmul.f32 %v1365, %v1541
    %v1543 = vsub.f32 1.0, %v1542
    %v1544 = vmul.f32 %v1541, %v1543
    %v1545 = vadd.f32 %v1541, %v1544
    %vm1546 = vweird.f32 %v1365
    %vm1547 = vweird.f32 %v1541
    %vm1548 = vmor %vm1546, %vm1547
    %v1549 = vsel %vm1548, %v1541, %v1545
    %v1550 = vand.u32 2147483647, %v1365
    %vm1551 = vcmp.eq.f32.partialorder %v1550, 8.507059e+37
    %v1552 = vand.u32 %v1365, 2147483648
    %v1553 = vor.u32 1.1754944e-38, %v1552
    %v1554 = vsel %vm1551, %v1553, %v1549
    %v1555 = vmul.f32 1.0, %v1554
    %v1556 = vrcp.pop %v1366
    %v1557 = vmul.f32 %v1366, %v1556
    %v1558 = vsub.f32 1.0, %v1557
    %v1559 = vmul.f32 %v1556, %v1558
    %v1560 = vadd.f32 %v1556, %v1559
    %vm1561 = vweird.f32 %v1366
    %vm1562 = vweird.f32 %v1556
    %vm1563 = vmor %vm1561, %vm1562
    %v1564 = vsel %vm1563, %v1556, %v1560
    %v1565 = vand.u32 2147483647, %v1366
    %vm1566 = vcmp.eq.f32.partialorder %v1565, 8.507059e+37
    %v1567 = vand.u32 %v1366, 2147483648
    %v1568 = vor.u32 1.1754944e-38, %v1567
    %v1569 = vsel %vm1566, %v1568, %v1564
    %v1570 = vmul.f32 1.0, %v1569
    %v1571 = vrcp.pop %v1367
    %v1572 = vmul.f32 %v1367, %v1571
    %v1573 = vsub.f32 1.0, %v1572
    %v1574 = vmul.f32 %v1571, %v1573
    %v1575 = vadd.f32 %v1571, %v1574
    %vm1576 = vweird.f32 %v1367
    %vm1577 = vweird.f32 %v1571
    %vm1578 = vmor %vm1576, %vm1577
    %v1579 = vsel %vm1578, %v1571, %v1575
    %v1580 = vand.u32 2147483647, %v1367
    %vm1581 = vcmp.eq.f32.partialorder %v1580, 8.507059e+37
    %v1582 = vand.u32 %v1367, 2147483648
    %v1583 = vor.u32 1.1754944e-38, %v1582
    %v1584 = vsel %vm1581, %v1583, %v1579
    %v1585 = vmul.f32 1.0, %v1584
    %v1586 = vrcp.pop %v1368
    %v1587 = vmul.f32 %v1368, %v1586
    %v1588 = vsub.f32 1.0, %v1587
    %v1589 = vmul.f32 %v1586, %v1588
    %v1590 = vadd.f32 %v1586, %v1589
    %vm1591 = vweird.f32 %v1368
    %vm1592 = vweird.f32 %v1586
    %vm1593 = vmor %vm1591, %vm1592
    %v1594 = vsel %vm1593, %v1586, %v1590
    %v1595 = vand.u32 2147483647, %v1368
    %vm1596 = vcmp.eq.f32.partialorder %v1595, 8.507059e+37
    %v1597 = vand.u32 %v1368, 2147483648
    %v1598 = vor.u32 1.1754944e-38, %v1597
    %v1599 = vsel %vm1596, %v1598, %v1594
    %v1600 = vmul.f32 1.0, %v1599
    %v1601 = vrcp.pop %v1369
    %v1602 = vmul.f32 %v1369, %v1601
    %v1603 = vsub.f32 1.0, %v1602
    %v1604 = vmul.f32 %v1601, %v1603
    %v1605 = vadd.f32 %v1601, %v1604
    %vm1606 = vweird.f32 %v1369
    %vm1607 = vweird.f32 %v1601
    %vm1608 = vmor %vm1606, %vm1607
    %v1609 = vsel %vm1608, %v1601, %v1605
    %v1610 = vand.u32 2147483647, %v1369
    %vm1611 = vcmp.eq.f32.partialorder %v1610, 8.507059e+37
    %v1612 = vand.u32 %v1369, 2147483648
    %v1613 = vor.u32 1.1754944e-38, %v1612
    %v1614 = vsel %vm1611, %v1613, %v1609
    %v1615 = vmul.f32 1.0, %v1614
    %v1616 = vrcp.pop %v1370
    %v1617 = vmul.f32 %v1370, %v1616
    %v1618 = vsub.f32 1.0, %v1617
    %v1619 = vmul.f32 %v1616, %v1618
    %v1620 = vadd.f32 %v1616, %v1619
    %vm1621 = vweird.f32 %v1370
    %vm1622 = vweird.f32 %v1616
    %vm1623 = vmor %vm1621, %vm1622
    %v1624 = vsel %vm1623, %v1616, %v1620
    %v1625 = vand.u32 2147483647, %v1370
    %vm1626 = vcmp.eq.f32.partialorder %v1625, 8.507059e+37
    %v1627 = vand.u32 %v1370, 2147483648
    %v1628 = vor.u32 1.1754944e-38, %v1627
    %v1629 = vsel %vm1626, %v1628, %v1624
    %v1630 = vmul.f32 1.0, %v1629
    %v1631 = vrcp.pop %v1371
    %v1632 = vmul.f32 %v1371, %v1631
    %v1633 = vsub.f32 1.0, %v1632
    %v1634 = vmul.f32 %v1631, %v1633
    %v1635 = vadd.f32 %v1631, %v1634
    %vm1636 = vweird.f32 %v1371
    %vm1637 = vweird.f32 %v1631
    %vm1638 = vmor %vm1636, %vm1637
    %v1639 = vsel %vm1638, %v1631, %v1635
    %v1640 = vand.u32 2147483647, %v1371
    %vm1641 = vcmp.eq.f32.partialorder %v1640, 8.507059e+37
    %v1642 = vand.u32 %v1371, 2147483648
    %v1643 = vor.u32 1.1754944e-38, %v1642
    %v1644 = vsel %vm1641, %v1643, %v1639
    %v1645 = vmul.f32 1.0, %v1644
    %v1646 = vrcp.pop %v1372
    %v1647 = vmul.f32 %v1372, %v1646
    %v1648 = vsub.f32 1.0, %v1647
    %v1649 = vmul.f32 %v1646, %v1648
    %v1650 = vadd.f32 %v1646, %v1649
    %vm1651 = vweird.f32 %v1372
    %vm1652 = vweird.f32 %v1646
    %vm1653 = vmor %vm1651, %vm1652
    %v1654 = vsel %vm1653, %v1646, %v1650
    %v1655 = vand.u32 2147483647, %v1372
    %vm1656 = vcmp.eq.f32.partialorder %v1655, 8.507059e+37
    %v1657 = vand.u32 %v1372, 2147483648
    %v1658 = vor.u32 1.1754944e-38, %v1657
    %v1659 = vsel %vm1656, %v1658, %v1654
    %v1660 = vmul.f32 1.0, %v1659
    %v1661 = vrcp.pop %v1373
    %v1662 = vmul.f32 %v1373, %v1661
    %v1663 = vsub.f32 1.0, %v1662
    %v1664 = vmul.f32 %v1661, %v1663
    %v1665 = vadd.f32 %v1661, %v1664
    %vm1666 = vweird.f32 %v1373
    %vm1667 = vweird.f32 %v1661
    %vm1668 = vmor %vm1666, %vm1667
    %v1669 = vsel %vm1668, %v1661, %v1665
    %v1670 = vand.u32 2147483647, %v1373
    %vm1671 = vcmp.eq.f32.partialorder %v1670, 8.507059e+37
    %v1672 = vand.u32 %v1373, 2147483648
    %v1673 = vor.u32 1.1754944e-38, %v1672
    %v1674 = vsel %vm1671, %v1673, %v1669
    %v1675 = vmul.f32 1.0, %v1674
    %v1676 = vrcp.pop %v1374
    %v1677 = vmul.f32 %v1374, %v1676
    %v1678 = vsub.f32 1.0, %v1677
    %v1679 = vmul.f32 %v1676, %v1678
    %v1680 = vadd.f32 %v1676, %v1679
    %vm1681 = vweird.f32 %v1374
    %vm1682 = vweird.f32 %v1676
    %vm1683 = vmor %vm1681, %vm1682
    %v1684 = vsel %vm1683, %v1676, %v1680
    %v1685 = vand.u32 2147483647, %v1374
    %vm1686 = vcmp.eq.f32.partialorder %v1685, 8.507059e+37
    %v1687 = vand.u32 %v1374, 2147483648
    %v1688 = vor.u32 1.1754944e-38, %v1687
    %v1689 = vsel %vm1686, %v1688, %v1684
    %v1690 = vmul.f32 1.0, %v1689
    %v1691 = vrcp.pop %v1375
    %v1692 = vmul.f32 %v1375, %v1691
    %v1693 = vsub.f32 1.0, %v1692
    %v1694 = vmul.f32 %v1691, %v1693
    %v1695 = vadd.f32 %v1691, %v1694
    %vm1696 = vweird.f32 %v1375
    %vm1697 = vweird.f32 %v1691
    %vm1698 = vmor %vm1696, %vm1697
    %v1699 = vsel %vm1698, %v1691, %v1695
    %v1700 = vand.u32 2147483647, %v1375
    %vm1701 = vcmp.eq.f32.partialorder %v1700, 8.507059e+37
    %v1702 = vand.u32 %v1375, 2147483648
    %v1703 = vor.u32 1.1754944e-38, %v1702
    %v1704 = vsel %vm1701, %v1703, %v1699
    %v1705 = vmul.f32 1.0, %v1704
    %v1706 = vrcp.pop %v1376
    %v1707 = vmul.f32 %v1376, %v1706
    %v1708 = vsub.f32 1.0, %v1707
    %v1709 = vmul.f32 %v1706, %v1708
    %v1710 = vadd.f32 %v1706, %v1709
    %vm1711 = vweird.f32 %v1376
    %vm1712 = vweird.f32 %v1706
    %vm1713 = vmor %vm1711, %vm1712
    %v1714 = vsel %vm1713, %v1706, %v1710
    %v1715 = vand.u32 2147483647, %v1376
    %vm1716 = vcmp.eq.f32.partialorder %v1715, 8.507059e+37
    %v1717 = vand.u32 %v1376, 2147483648
    %v1718 = vor.u32 1.1754944e-38, %v1717
    %v1719 = vsel %vm1716, %v1718, %v1714
    %v1720 = vmul.f32 1.0, %v1719
    %v1721 = vrcp.pop %v1377
    %v1722 = vmul.f32 %v1377, %v1721
    %v1723 = vsub.f32 1.0, %v1722
    %v1724 = vmul.f32 %v1721, %v1723
    %v1725 = vadd.f32 %v1721, %v1724
    %vm1726 = vweird.f32 %v1377
    %vm1727 = vweird.f32 %v1721
    %vm1728 = vmor %vm1726, %vm1727
    %v1729 = vsel %vm1728, %v1721, %v1725
    %v1730 = vand.u32 2147483647, %v1377
    %vm1731 = vcmp.eq.f32.partialorder %v1730, 8.507059e+37
    %v1732 = vand.u32 %v1377, 2147483648
    %v1733 = vor.u32 1.1754944e-38, %v1732
    %v1734 = vsel %vm1731, %v1733, %v1729
    %v1735 = vmul.f32 1.0, %v1734
    %v1736 = vrcp.pop %v1378
    %v1737 = vmul.f32 %v1378, %v1736
    %v1738 = vsub.f32 1.0, %v1737
    %v1739 = vmul.f32 %v1736, %v1738
    %v1740 = vadd.f32 %v1736, %v1739
    %vm1741 = vweird.f32 %v1378
    %vm1742 = vweird.f32 %v1736
    %vm1743 = vmor %vm1741, %vm1742
    %v1744 = vsel %vm1743, %v1736, %v1740
    %v1745 = vand.u32 2147483647, %v1378
    %vm1746 = vcmp.eq.f32.partialorder %v1745, 8.507059e+37
    %v1747 = vand.u32 %v1378, 2147483648
    %v1748 = vor.u32 1.1754944e-38, %v1747
    %v1749 = vsel %vm1746, %v1748, %v1744
    %v1750 = vmul.f32 1.0, %v1749
    %v1751 = vrcp.pop %v1379
    %v1752 = vmul.f32 %v1379, %v1751
    %v1753 = vsub.f32 1.0, %v1752
    %v1754 = vmul.f32 %v1751, %v1753
    %v1755 = vadd.f32 %v1751, %v1754
    %vm1756 = vweird.f32 %v1379
    %vm1757 = vweird.f32 %v1751
    %vm1758 = vmor %vm1756, %vm1757
    %v1759 = vsel %vm1758, %v1751, %v1755
    %v1760 = vand.u32 2147483647, %v1379
    %vm1761 = vcmp.eq.f32.partialorder %v1760, 8.507059e+37
    %v1762 = vand.u32 %v1379, 2147483648
    %v1763 = vor.u32 1.1754944e-38, %v1762
    %v1764 = vsel %vm1761, %v1763, %v1759
    %v1765 = vmul.f32 1.0, %v1764
    %v1766 = vrcp.pop %v1380
    %v1767 = vmul.f32 %v1380, %v1766
    %v1768 = vsub.f32 1.0, %v1767
    %v1769 = vmul.f32 %v1766, %v1768
    %v1770 = vadd.f32 %v1766, %v1769
    %vm1771 = vweird.f32 %v1380
    %vm1772 = vweird.f32 %v1766
    %vm1773 = vmor %vm1771, %vm1772
    %v1774 = vsel %vm1773, %v1766, %v1770
    %v1775 = vand.u32 2147483647, %v1380
    %vm1776 = vcmp.eq.f32.partialorder %v1775, 8.507059e+37
    %v1777 = vand.u32 %v1380, 2147483648
    %v1778 = vor.u32 1.1754944e-38, %v1777
    %v1779 = vsel %vm1776, %v1778, %v1774
    %v1780 = vmul.f32 1.0, %v1779
    %v1781 = vrcp.pop %v1381
    %v1782 = vmul.f32 %v1381, %v1781
    %v1783 = vsub.f32 1.0, %v1782
    %v1784 = vmul.f32 %v1781, %v1783
    %v1785 = vadd.f32 %v1781, %v1784
    %vm1786 = vweird.f32 %v1381
    %vm1787 = vweird.f32 %v1781
    %vm1788 = vmor %vm1786, %vm1787
    %v1789 = vsel %vm1788, %v1781, %v1785
    %v1790 = vand.u32 2147483647, %v1381
    %vm1791 = vcmp.eq.f32.partialorder %v1790, 8.507059e+37
    %v1792 = vand.u32 %v1381, 2147483648
    %v1793 = vor.u32 1.1754944e-38, %v1792
    %v1794 = vsel %vm1791, %v1793, %v1789
    %v1795 = vmul.f32 1.0, %v1794
    %v1796 = vrcp.pop %v1382
    %v1797 = vmul.f32 %v1382, %v1796
    %v1798 = vsub.f32 1.0, %v1797
    %v1799 = vmul.f32 %v1796, %v1798
    %v1800 = vadd.f32 %v1796, %v1799
    %vm1801 = vweird.f32 %v1382
    %vm1802 = vweird.f32 %v1796
    %vm1803 = vmor %vm1801, %vm1802
    %v1804 = vsel %vm1803, %v1796, %v1800
    %v1805 = vand.u32 2147483647, %v1382
    %vm1806 = vcmp.eq.f32.partialorder %v1805, 8.507059e+37
    %v1807 = vand.u32 %v1382, 2147483648
    %v1808 = vor.u32 1.1754944e-38, %v1807
    %v1809 = vsel %vm1806, %v1808, %v1804
    %v1810 = vmul.f32 1.0, %v1809
    %v1811 = vrcp.pop %v1383
    %v1812 = vmul.f32 %v1383, %v1811
    %v1813 = vsub.f32 1.0, %v1812
    %v1814 = vmul.f32 %v1811, %v1813
    %v1815 = vadd.f32 %v1811, %v1814
    %vm1816 = vweird.f32 %v1383
    %vm1817 = vweird.f32 %v1811
    %vm1818 = vmor %vm1816, %vm1817
    %v1819 = vsel %vm1818, %v1811, %v1815
    %v1820 = vand.u32 2147483647, %v1383
    %vm1821 = vcmp.eq.f32.partialorder %v1820, 8.507059e+37
    %v1822 = vand.u32 %v1383, 2147483648
    %v1823 = vor.u32 1.1754944e-38, %v1822
    %v1824 = vsel %vm1821, %v1823, %v1819
    %v1825 = vmul.f32 1.0, %v1824
    %v1826 = vrcp.pop %v1384
    %v1827 = vmul.f32 %v1384, %v1826
    %v1828 = vsub.f32 1.0, %v1827
    %v1829 = vmul.f32 %v1826, %v1828
    %v1830 = vadd.f32 %v1826, %v1829
    %vm1831 = vweird.f32 %v1384
    %vm1832 = vweird.f32 %v1826
    %vm1833 = vmor %vm1831, %vm1832
    %v1834 = vsel %vm1833, %v1826, %v1830
    %v1835 = vand.u32 2147483647, %v1384
    %vm1836 = vcmp.eq.f32.partialorder %v1835, 8.507059e+37
    %v1837 = vand.u32 %v1384, 2147483648
    %v1838 = vor.u32 1.1754944e-38, %v1837
    %v1839 = vsel %vm1836, %v1838, %v1834
    %v1840 = vmul.f32 1.0, %v1839
    %v1841 = vrcp.pop %v1385
    %v1842 = vmul.f32 %v1385, %v1841
    %v1843 = vsub.f32 1.0, %v1842
    %v1844 = vmul.f32 %v1841, %v1843
    %v1845 = vadd.f32 %v1841, %v1844
    %vm1846 = vweird.f32 %v1385
    %vm1847 = vweird.f32 %v1841
    %vm1848 = vmor %vm1846, %vm1847
    %v1849 = vsel %vm1848, %v1841, %v1845
    %v1850 = vand.u32 2147483647, %v1385
    %vm1851 = vcmp.eq.f32.partialorder %v1850, 8.507059e+37
    %v1852 = vand.u32 %v1385, 2147483648
    %v1853 = vor.u32 1.1754944e-38, %v1852
    %v1854 = vsel %vm1851, %v1853, %v1849
    %v1855 = vmul.f32 1.0, %v1854
    %v1856 = vrcp.pop %v1386
    %v1857 = vmul.f32 %v1386, %v1856
    %v1858 = vsub.f32 1.0, %v1857
    %v1859 = vmul.f32 %v1856, %v1858
    %v1860 = vadd.f32 %v1856, %v1859
    %vm1861 = vweird.f32 %v1386
    %vm1862 = vweird.f32 %v1856
    %vm1863 = vmor %vm1861, %vm1862
    %v1864 = vsel %vm1863, %v1856, %v1860
    %v1865 = vand.u32 2147483647, %v1386
    %vm1866 = vcmp.eq.f32.partialorder %v1865, 8.507059e+37
    %v1867 = vand.u32 %v1386, 2147483648
    %v1868 = vor.u32 1.1754944e-38, %v1867
    %v1869 = vsel %vm1866, %v1868, %v1864
    %v1870 = vmul.f32 1.0, %v1869
    %v1871 = vrcp.pop %v1387
    %v1872 = vmul.f32 %v1387, %v1871
    %v1873 = vsub.f32 1.0, %v1872
    %v1874 = vmul.f32 %v1871, %v1873
    %v1875 = vadd.f32 %v1871, %v1874
    %vm1876 = vweird.f32 %v1387
    %vm1877 = vweird.f32 %v1871
    %vm1878 = vmor %vm1876, %vm1877
    %v1879 = vsel %vm1878, %v1871, %v1875
    %v1880 = vand.u32 2147483647, %v1387
    %vm1881 = vcmp.eq.f32.partialorder %v1880, 8.507059e+37
    %v1882 = vand.u32 %v1387, 2147483648
    %v1883 = vor.u32 1.1754944e-38, %v1882
    %v1884 = vsel %vm1881, %v1883, %v1879
    %v1885 = vmul.f32 1.0, %v1884
    %v1886 = vrcp.pop %v1388
    %v1887 = vmul.f32 %v1388, %v1886
    %v1888 = vsub.f32 1.0, %v1887
    %v1889 = vmul.f32 %v1886, %v1888
    %v1890 = vadd.f32 %v1886, %v1889
    %vm1891 = vweird.f32 %v1388
    %vm1892 = vweird.f32 %v1886
    %vm1893 = vmor %vm1891, %vm1892
    %v1894 = vsel %vm1893, %v1886, %v1890
    %v1895 = vand.u32 2147483647, %v1388
    %vm1896 = vcmp.eq.f32.partialorder %v1895, 8.507059e+37
    %v1897 = vand.u32 %v1388, 2147483648
    %v1898 = vor.u32 1.1754944e-38, %v1897
    %v1899 = vsel %vm1896, %v1898, %v1894
    %v1900 = vmul.f32 1.0, %v1899
    %v1901 = vrcp.pop %v1389
    %v1902 = vmul.f32 %v1389, %v1901
    %v1903 = vsub.f32 1.0, %v1902
    %v1904 = vmul.f32 %v1901, %v1903
    %v1905 = vadd.f32 %v1901, %v1904
    %vm1906 = vweird.f32 %v1389
    %vm1907 = vweird.f32 %v1901
    %vm1908 = vmor %vm1906, %vm1907
    %v1909 = vsel %vm1908, %v1901, %v1905
    %v1910 = vand.u32 2147483647, %v1389
    %vm1911 = vcmp.eq.f32.partialorder %v1910, 8.507059e+37
    %v1912 = vand.u32 %v1389, 2147483648
    %v1913 = vor.u32 1.1754944e-38, %v1912
    %v1914 = vsel %vm1911, %v1913, %v1909
    %v1915 = vmul.f32 1.0, %v1914
    %v1916 = vrcp.pop %v1390
    %v1917 = vmul.f32 %v1390, %v1916
    %v1918 = vsub.f32 1.0, %v1917
    %v1919 = vmul.f32 %v1916, %v1918
    %v1920 = vadd.f32 %v1916, %v1919
    %vm1921 = vweird.f32 %v1390
    %vm1922 = vweird.f32 %v1916
    %vm1923 = vmor %vm1921, %vm1922
    %v1924 = vsel %vm1923, %v1916, %v1920
    %v1925 = vand.u32 2147483647, %v1390
    %vm1926 = vcmp.eq.f32.partialorder %v1925, 8.507059e+37
    %v1927 = vand.u32 %v1390, 2147483648
    %v1928 = vor.u32 1.1754944e-38, %v1927
    %v1929 = vsel %vm1926, %v1928, %v1924
    %v1930 = vmul.f32 1.0, %v1929
    %v1931 = vrcp.pop %v1391
    %v1932 = vmul.f32 %v1391, %v1931
    %v1933 = vsub.f32 1.0, %v1932
    %v1934 = vmul.f32 %v1931, %v1933
    %v1935 = vadd.f32 %v1931, %v1934
    %vm1936 = vweird.f32 %v1391
    %vm1937 = vweird.f32 %v1931
    %vm1938 = vmor %vm1936, %vm1937
    %v1939 = vsel %vm1938, %v1931, %v1935
    %v1940 = vand.u32 2147483647, %v1391
    %vm1941 = vcmp.eq.f32.partialorder %v1940, 8.507059e+37
    %v1942 = vand.u32 %v1391, 2147483648
    %v1943 = vor.u32 1.1754944e-38, %v1942
    %v1944 = vsel %vm1941, %v1943, %v1939
    %v1945 = vmul.f32 1.0, %v1944
    %v1946 = vrcp.pop %v1392
    %v1947 = vmul.f32 %v1392, %v1946
    %v1948 = vsub.f32 1.0, %v1947
    %v1949 = vmul.f32 %v1946, %v1948
    %v1950 = vadd.f32 %v1946, %v1949
    %vm1951 = vweird.f32 %v1392
    %vm1952 = vweird.f32 %v1946
    %vm1953 = vmor %vm1951, %vm1952
    %v1954 = vsel %vm1953, %v1946, %v1950
    %v1955 = vand.u32 2147483647, %v1392
    %vm1956 = vcmp.eq.f32.partialorder %v1955, 8.507059e+37
    %v1957 = vand.u32 %v1392, 2147483648
    %v1958 = vor.u32 1.1754944e-38, %v1957
    %v1959 = vsel %vm1956, %v1958, %v1954
    %v1960 = vmul.f32 1.0, %v1959
    %v1961 = vrcp.pop %v1393
    %v1962 = vmul.f32 %v1393, %v1961
    %v1963 = vsub.f32 1.0, %v1962
    %v1964 = vmul.f32 %v1961, %v1963
    %v1965 = vadd.f32 %v1961, %v1964
    %vm1966 = vweird.f32 %v1393
    %vm1967 = vweird.f32 %v1961
    %vm1968 = vmor %vm1966, %vm1967
    %v1969 = vsel %vm1968, %v1961, %v1965
    %v1970 = vand.u32 2147483647, %v1393
    %vm1971 = vcmp.eq.f32.partialorder %v1970, 8.507059e+37
    %v1972 = vand.u32 %v1393, 2147483648
    %v1973 = vor.u32 1.1754944e-38, %v1972
    %v1974 = vsel %vm1971, %v1973, %v1969
    %v1975 = vmul.f32 1.0, %v1974
    %v1976 = vrcp.pop %v1394
    %v1977 = vmul.f32 %v1394, %v1976
    %v1978 = vsub.f32 1.0, %v1977
    %v1979 = vmul.f32 %v1976, %v1978
    %v1980 = vadd.f32 %v1976, %v1979
    %vm1981 = vweird.f32 %v1394
    %vm1982 = vweird.f32 %v1976
    %vm1983 = vmor %vm1981, %vm1982
    %v1984 = vsel %vm1983, %v1976, %v1980
    %v1985 = vand.u32 2147483647, %v1394
    %vm1986 = vcmp.eq.f32.partialorder %v1985, 8.507059e+37
    %v1987 = vand.u32 %v1394, 2147483648
    %v1988 = vor.u32 1.1754944e-38, %v1987
    %v1989 = vsel %vm1986, %v1988, %v1984
    %v1990 = vmul.f32 1.0, %v1989
    %v1991 = vrcp.pop %v1395
    %v1992 = vmul.f32 %v1395, %v1991
    %v1993 = vsub.f32 1.0, %v1992
    %v1994 = vmul.f32 %v1991, %v1993
    %v1995 = vadd.f32 %v1991, %v1994
    %vm1996 = vweird.f32 %v1395
    %vm1997 = vweird.f32 %v1991
    %vm1998 = vmor %vm1996, %vm1997
    %v1999 = vsel %vm1998, %v1991, %v1995
    %v2000 = vand.u32 2147483647, %v1395
    %vm2001 = vcmp.eq.f32.partialorder %v2000, 8.507059e+37
    %v2002 = vand.u32 %v1395, 2147483648
    %v2003 = vor.u32 1.1754944e-38, %v2002
    %v2004 = vsel %vm2001, %v2003, %v1999
    %v2005 = vmul.f32 1.0, %v2004
    %v2006 = vrcp.pop %v1396
    %v2007 = vmul.f32 %v1396, %v2006
    %v2008 = vsub.f32 1.0, %v2007
    %v2009 = vmul.f32 %v2006, %v2008
    %v2010 = vadd.f32 %v2006, %v2009
    %vm2011 = vweird.f32 %v1396
    %vm2012 = vweird.f32 %v2006
    %vm2013 = vmor %vm2011, %vm2012
    %v2014 = vsel %vm2013, %v2006, %v2010
    %v2015 = vand.u32 2147483647, %v1396
    %vm2016 = vcmp.eq.f32.partialorder %v2015, 8.507059e+37
    %v2017 = vand.u32 %v1396, 2147483648
    %v2018 = vor.u32 1.1754944e-38, %v2017
    %v2019 = vsel %vm2016, %v2018, %v2014
    %v2020 = vmul.f32 1.0, %v2019
    %v2021 = vrcp.pop %v1397
    %v2022 = vmul.f32 %v1397, %v2021
    %v2023 = vsub.f32 1.0, %v2022
    %v2024 = vmul.f32 %v2021, %v2023
    %v2025 = vadd.f32 %v2021, %v2024
    %vm2026 = vweird.f32 %v1397
    %vm2027 = vweird.f32 %v2021
    %vm2028 = vmor %vm2026, %vm2027
    %v2029 = vsel %vm2028, %v2021, %v2025
    %v2030 = vand.u32 2147483647, %v1397
    %vm2031 = vcmp.eq.f32.partialorder %v2030, 8.507059e+37
    %v2032 = vand.u32 %v1397, 2147483648
    %v2033 = vor.u32 1.1754944e-38, %v2032
    %v2034 = vsel %vm2031, %v2033, %v2029
    %v2035 = vmul.f32 1.0, %v2034
    %v2036 = vrcp.pop %v1398
    %v2037 = vmul.f32 %v1398, %v2036
    %v2038 = vsub.f32 1.0, %v2037
    %v2039 = vmul.f32 %v2036, %v2038
    %v2040 = vadd.f32 %v2036, %v2039
    %vm2041 = vweird.f32 %v1398
    %vm2042 = vweird.f32 %v2036
    %vm2043 = vmor %vm2041, %vm2042
    %v2044 = vsel %vm2043, %v2036, %v2040
    %v2045 = vand.u32 2147483647, %v1398
    %vm2046 = vcmp.eq.f32.partialorder %v2045, 8.507059e+37
    %v2047 = vand.u32 %v1398, 2147483648
    %v2048 = vor.u32 1.1754944e-38, %v2047
    %v2049 = vsel %vm2046, %v2048, %v2044
    %v2050 = vmul.f32 1.0, %v2049
    %v2051 = vrcp.pop %v1399
    %v2052 = vmul.f32 %v1399, %v2051
    %v2053 = vsub.f32 1.0, %v2052
    %v2054 = vmul.f32 %v2051, %v2053
    %v2055 = vadd.f32 %v2051, %v2054
    %vm2056 = vweird.f32 %v1399
    %vm2057 = vweird.f32 %v2051
    %vm2058 = vmor %vm2056, %vm2057
    %v2059 = vsel %vm2058, %v2051, %v2055
    %v2060 = vand.u32 2147483647, %v1399
    %vm2061 = vcmp.eq.f32.partialorder %v2060, 8.507059e+37
    %v2062 = vand.u32 %v1399, 2147483648
    %v2063 = vor.u32 1.1754944e-38, %v2062
    %v2064 = vsel %vm2061, %v2063, %v2059
    %v2065 = vmul.f32 1.0, %v2064
    %v2066 = vrcp.pop %v1400
    %v2067 = vmul.f32 %v1400, %v2066
    %v2068 = vsub.f32 1.0, %v2067
    %v2069 = vmul.f32 %v2066, %v2068
    %v2070 = vadd.f32 %v2066, %v2069
    %vm2071 = vweird.f32 %v1400
    %vm2072 = vweird.f32 %v2066
    %vm2073 = vmor %vm2071, %vm2072
    %v2074 = vsel %vm2073, %v2066, %v2070
    %v2075 = vand.u32 2147483647, %v1400
    %vm2076 = vcmp.eq.f32.partialorder %v2075, 8.507059e+37
    %v2077 = vand.u32 %v1400, 2147483648
    %v2078 = vor.u32 1.1754944e-38, %v2077
    %v2079 = vsel %vm2076, %v2078, %v2074
    %v2080 = vmul.f32 1.0, %v2079
    %v2081 = vrcp.pop %v1401
    %v2082 = vmul.f32 %v1401, %v2081
    %v2083 = vsub.f32 1.0, %v2082
    %v2084 = vmul.f32 %v2081, %v2083
    %v2085 = vadd.f32 %v2081, %v2084
    %vm2086 = vweird.f32 %v1401
    %vm2087 = vweird.f32 %v2081
    %vm2088 = vmor %vm2086, %vm2087
    %v2089 = vsel %vm2088, %v2081, %v2085
    %v2090 = vand.u32 2147483647, %v1401
    %vm2091 = vcmp.eq.f32.partialorder %v2090, 8.507059e+37
    %v2092 = vand.u32 %v1401, 2147483648
    %v2093 = vor.u32 1.1754944e-38, %v2092
    %v2094 = vsel %vm2091, %v2093, %v2089
    %v2095 = vmul.f32 1.0, %v2094
    %v2096 = vrcp.pop %v1402
    %v2097 = vmul.f32 %v1402, %v2096
    %v2098 = vsub.f32 1.0, %v2097
    %v2099 = vmul.f32 %v2096, %v2098
    %v2100 = vadd.f32 %v2096, %v2099
    %vm2101 = vweird.f32 %v1402
    %vm2102 = vweird.f32 %v2096
    %vm2103 = vmor %vm2101, %vm2102
    %v2104 = vsel %vm2103, %v2096, %v2100
    %v2105 = vand.u32 2147483647, %v1402
    %vm2106 = vcmp.eq.f32.partialorder %v2105, 8.507059e+37
    %v2107 = vand.u32 %v1402, 2147483648
    %v2108 = vor.u32 1.1754944e-38, %v2107
    %v2109 = vsel %vm2106, %v2108, %v2104
    %v2110 = vmul.f32 1.0, %v2109
    %v2111 = vrcp.pop %v1403
    %v2112 = vmul.f32 %v1403, %v2111
    %v2113 = vsub.f32 1.0, %v2112
    %v2114 = vmul.f32 %v2111, %v2113
    %v2115 = vadd.f32 %v2111, %v2114
    %vm2116 = vweird.f32 %v1403
    %vm2117 = vweird.f32 %v2111
    %vm2118 = vmor %vm2116, %vm2117
    %v2119 = vsel %vm2118, %v2111, %v2115
    %v2120 = vand.u32 2147483647, %v1403
    %vm2121 = vcmp.eq.f32.partialorder %v2120, 8.507059e+37
    %v2122 = vand.u32 %v1403, 2147483648
    %v2123 = vor.u32 1.1754944e-38, %v2122
    %v2124 = vsel %vm2121, %v2123, %v2119
    %v2125 = vmul.f32 1.0, %v2124
    %v2126 = vrcp.pop %v1404
    %v2127 = vmul.f32 %v1404, %v2126
    %v2128 = vsub.f32 1.0, %v2127
    %v2129 = vmul.f32 %v2126, %v2128
    %v2130 = vadd.f32 %v2126, %v2129
    %vm2131 = vweird.f32 %v1404
    %vm2132 = vweird.f32 %v2126
    %vm2133 = vmor %vm2131, %vm2132
    %v2134 = vsel %vm2133, %v2126, %v2130
    %v2135 = vand.u32 2147483647, %v1404
    %vm2136 = vcmp.eq.f32.partialorder %v2135, 8.507059e+37
    %v2137 = vand.u32 %v1404, 2147483648
    %v2138 = vor.u32 1.1754944e-38, %v2137
    %v2139 = vsel %vm2136, %v2138, %v2134
    %v2140 = vmul.f32 1.0, %v2139
    %v2141 = vrcp.pop %v1405
    %v2142 = vmul.f32 %v1405, %v2141
    %v2143 = vsub.f32 1.0, %v2142
    %v2144 = vmul.f32 %v2141, %v2143
    %v2145 = vadd.f32 %v2141, %v2144
    %vm2146 = vweird.f32 %v1405
    %vm2147 = vweird.f32 %v2141
    %vm2148 = vmor %vm2146, %vm2147
    %v2149 = vsel %vm2148, %v2141, %v2145
    %v2150 = vand.u32 2147483647, %v1405
    %vm2151 = vcmp.eq.f32.partialorder %v2150, 8.507059e+37
    %v2152 = vand.u32 %v1405, 2147483648
    %v2153 = vor.u32 1.1754944e-38, %v2152
    %v2154 = vsel %vm2151, %v2153, %v2149
    %v2155 = vmul.f32 1.0, %v2154
    %v2156 = vrcp.pop %v1406
    %v2157 = vmul.f32 %v1406, %v2156
    %v2158 = vsub.f32 1.0, %v2157
    %v2159 = vmul.f32 %v2156, %v2158
    %v2160 = vadd.f32 %v2156, %v2159
    %vm2161 = vweird.f32 %v1406
    %vm2162 = vweird.f32 %v2156
    %vm2163 = vmor %vm2161, %vm2162
    %v2164 = vsel %vm2163, %v2156, %v2160
    %v2165 = vand.u32 2147483647, %v1406
    %vm2166 = vcmp.eq.f32.partialorder %v2165, 8.507059e+37
    %v2167 = vand.u32 %v1406, 2147483648
    %v2168 = vor.u32 1.1754944e-38, %v2167
    %v2169 = vsel %vm2166, %v2168, %v2164
    %v2170 = vmul.f32 1.0, %v2169
    %v2171 = vrcp.pop %v1407
    %v2172 = vmul.f32 %v1407, %v2171
    %v2173 = vsub.f32 1.0, %v2172
    %v2174 = vmul.f32 %v2171, %v2173
    %v2175 = vadd.f32 %v2171, %v2174
    %vm2176 = vweird.f32 %v1407
    %vm2177 = vweird.f32 %v2171
    %vm2178 = vmor %vm2176, %vm2177
    %v2179 = vsel %vm2178, %v2171, %v2175
    %v2180 = vand.u32 2147483647, %v1407
    %vm2181 = vcmp.eq.f32.partialorder %v2180, 8.507059e+37
    %v2182 = vand.u32 %v1407, 2147483648
    %v2183 = vor.u32 1.1754944e-38, %v2182
    %v2184 = vsel %vm2181, %v2183, %v2179
    %v2185 = vmul.f32 1.0, %v2184
    %v2186 = vrcp.pop %v1408
    %v2187 = vmul.f32 %v1408, %v2186
    %v2188 = vsub.f32 1.0, %v2187
    %v2189 = vmul.f32 %v2186, %v2188
    %v2190 = vadd.f32 %v2186, %v2189
    %vm2191 = vweird.f32 %v1408
    %vm2192 = vweird.f32 %v2186
    %vm2193 = vmor %vm2191, %vm2192
    %v2194 = vsel %vm2193, %v2186, %v2190
    %v2195 = vand.u32 2147483647, %v1408
    %vm2196 = vcmp.eq.f32.partialorder %v2195, 8.507059e+37
    %v2197 = vand.u32 %v1408, 2147483648
    %v2198 = vor.u32 1.1754944e-38, %v2197
    %v2199 = vsel %vm2196, %v2198, %v2194
    %v2200 = vmul.f32 1.0, %v2199
    %v2201 = vrcp.pop %v1409
    %v2202 = vmul.f32 %v1409, %v2201
    %v2203 = vsub.f32 1.0, %v2202
    %v2204 = vmul.f32 %v2201, %v2203
    %v2205 = vadd.f32 %v2201, %v2204
    %vm2206 = vweird.f32 %v1409
    %vm2207 = vweird.f32 %v2201
    %vm2208 = vmor %vm2206, %vm2207
    %v2209 = vsel %vm2208, %v2201, %v2205
    %v2210 = vand.u32 2147483647, %v1409
    %vm2211 = vcmp.eq.f32.partialorder %v2210, 8.507059e+37
    %v2212 = vand.u32 %v1409, 2147483648
    %v2213 = vor.u32 1.1754944e-38, %v2212
    %v2214 = vsel %vm2211, %v2213, %v2209
    %v2215 = vmul.f32 1.0, %v2214
    %v2216 = vrcp.pop %v1410
    %v2217 = vmul.f32 %v1410, %v2216
    %v2218 = vsub.f32 1.0, %v2217
    %v2219 = vmul.f32 %v2216, %v2218
    %v2220 = vadd.f32 %v2216, %v2219
    %vm2221 = vweird.f32 %v1410
    %vm2222 = vweird.f32 %v2216
    %vm2223 = vmor %vm2221, %vm2222
    %v2224 = vsel %vm2223, %v2216, %v2220
    %v2225 = vand.u32 2147483647, %v1410
    %vm2226 = vcmp.eq.f32.partialorder %v2225, 8.507059e+37
    %v2227 = vand.u32 %v1410, 2147483648
    %v2228 = vor.u32 1.1754944e-38, %v2227
    %v2229 = vsel %vm2226, %v2228, %v2224
    %v2230 = vmul.f32 1.0, %v2229
    %v2231 = vrcp.pop %v1411
    %v2232 = vmul.f32 %v1411, %v2231
    %v2233 = vsub.f32 1.0, %v2232
    %v2234 = vmul.f32 %v2231, %v2233
    %v2235 = vadd.f32 %v2231, %v2234
    %vm2236 = vweird.f32 %v1411
    %vm2237 = vweird.f32 %v2231
    %vm2238 = vmor %vm2236, %vm2237
    %v2239 = vsel %vm2238, %v2231, %v2235
    %v2240 = vand.u32 2147483647, %v1411
    %vm2241 = vcmp.eq.f32.partialorder %v2240, 8.507059e+37
    %v2242 = vand.u32 %v1411, 2147483648
    %v2243 = vor.u32 1.1754944e-38, %v2242
    %v2244 = vsel %vm2241, %v2243, %v2239
    %v2245 = vmul.f32 1.0, %v2244
    %v2246 = vrcp.pop %v1412
    %v2247 = vmul.f32 %v1412, %v2246
    %v2248 = vsub.f32 1.0, %v2247
    %v2249 = vmul.f32 %v2246, %v2248
    %v2250 = vadd.f32 %v2246, %v2249
    %vm2251 = vweird.f32 %v1412
    %vm2252 = vweird.f32 %v2246
    %vm2253 = vmor %vm2251, %vm2252
    %v2254 = vsel %vm2253, %v2246, %v2250
    %v2255 = vand.u32 2147483647, %v1412
    %vm2256 = vcmp.eq.f32.partialorder %v2255, 8.507059e+37
    %v2257 = vand.u32 %v1412, 2147483648
    %v2258 = vor.u32 1.1754944e-38, %v2257
    %v2259 = vsel %vm2256, %v2258, %v2254
    %v2260 = vmul.f32 1.0, %v2259
    %v2261 = vrcp.pop %v1413
    %v2262 = vmul.f32 %v1413, %v2261
    %v2263 = vsub.f32 1.0, %v2262
    %v2264 = vmul.f32 %v2261, %v2263
    %v2265 = vadd.f32 %v2261, %v2264
    %vm2266 = vweird.f32 %v1413
    %vm2267 = vweird.f32 %v2261
    %vm2268 = vmor %vm2266, %vm2267
    %v2269 = vsel %vm2268, %v2261, %v2265
    %v2270 = vand.u32 2147483647, %v1413
    %vm2271 = vcmp.eq.f32.partialorder %v2270, 8.507059e+37
    %v2272 = vand.u32 %v1413, 2147483648
    %v2273 = vor.u32 1.1754944e-38, %v2272
    %v2274 = vsel %vm2271, %v2273, %v2269
    %v2275 = vmul.f32 1.0, %v2274
    %v2276 = vrcp.pop %v1414
    %v2277 = vmul.f32 %v1414, %v2276
    %v2278 = vsub.f32 1.0, %v2277
    %v2279 = vmul.f32 %v2276, %v2278
    %v2280 = vadd.f32 %v2276, %v2279
    %vm2281 = vweird.f32 %v1414
    %vm2282 = vweird.f32 %v2276
    %vm2283 = vmor %vm2281, %vm2282
    %v2284 = vsel %vm2283, %v2276, %v2280
    %v2285 = vand.u32 2147483647, %v1414
    %vm2286 = vcmp.eq.f32.partialorder %v2285, 8.507059e+37
    %v2287 = vand.u32 %v1414, 2147483648
    %v2288 = vor.u32 1.1754944e-38, %v2287
    %v2289 = vsel %vm2286, %v2288, %v2284
    %v2290 = vmul.f32 1.0, %v2289
    %v2291 = vrcp.pop %v1415
    %v2292 = vmul.f32 %v1415, %v2291
    %v2293 = vsub.f32 1.0, %v2292
    %v2294 = vmul.f32 %v2291, %v2293
    %v2295 = vadd.f32 %v2291, %v2294
    %vm2296 = vweird.f32 %v1415
    %vm2297 = vweird.f32 %v2291
    %vm2298 = vmor %vm2296, %vm2297
    %v2299 = vsel %vm2298, %v2291, %v2295
    %v2300 = vand.u32 2147483647, %v1415
    %vm2301 = vcmp.eq.f32.partialorder %v2300, 8.507059e+37
    %v2302 = vand.u32 %v1415, 2147483648
    %v2303 = vor.u32 1.1754944e-38, %v2302
    %v2304 = vsel %vm2301, %v2303, %v2299
    %v2305 = vmul.f32 1.0, %v2304
    %v2306 = vrcp.pop %v1416
    %v2307 = vmul.f32 %v1416, %v2306
    %v2308 = vsub.f32 1.0, %v2307
    %v2309 = vmul.f32 %v2306, %v2308
    %v2310 = vadd.f32 %v2306, %v2309
    %vm2311 = vweird.f32 %v1416
    %vm2312 = vweird.f32 %v2306
    %vm2313 = vmor %vm2311, %vm2312
    %v2314 = vsel %vm2313, %v2306, %v2310
    %v2315 = vand.u32 2147483647, %v1416
    %vm2316 = vcmp.eq.f32.partialorder %v2315, 8.507059e+37
    %v2317 = vand.u32 %v1416, 2147483648
    %v2318 = vor.u32 1.1754944e-38, %v2317
    %v2319 = vsel %vm2316, %v2318, %v2314
    %v2320 = vmul.f32 1.0, %v2319
    %v2321 = vrcp.pop %v1417
    %v2322 = vmul.f32 %v1417, %v2321
    %v2323 = vsub.f32 1.0, %v2322
    %v2324 = vmul.f32 %v2321, %v2323
    %v2325 = vadd.f32 %v2321, %v2324
    %vm2326 = vweird.f32 %v1417
    %vm2327 = vweird.f32 %v2321
    %vm2328 = vmor %vm2326, %vm2327
    %v2329 = vsel %vm2328, %v2321, %v2325
    %v2330 = vand.u32 2147483647, %v1417
    %vm2331 = vcmp.eq.f32.partialorder %v2330, 8.507059e+37
    %v2332 = vand.u32 %v1417, 2147483648
    %v2333 = vor.u32 1.1754944e-38, %v2332
    %v2334 = vsel %vm2331, %v2333, %v2329
    %v2335 = vmul.f32 1.0, %v2334
    %v2336 = vrcp.pop %v1418
    %v2337 = vmul.f32 %v1418, %v2336
    %v2338 = vsub.f32 1.0, %v2337
    %v2339 = vmul.f32 %v2336, %v2338
    %v2340 = vadd.f32 %v2336, %v2339
    %vm2341 = vweird.f32 %v1418
    %vm2342 = vweird.f32 %v2336
    %vm2343 = vmor %vm2341, %vm2342
    %v2344 = vsel %vm2343, %v2336, %v2340
    %v2345 = vand.u32 2147483647, %v1418
    %vm2346 = vcmp.eq.f32.partialorder %v2345, 8.507059e+37
    %v2347 = vand.u32 %v1418, 2147483648
    %v2348 = vor.u32 1.1754944e-38, %v2347
    %v2349 = vsel %vm2346, %v2348, %v2344
    %v2350 = vmul.f32 1.0, %v2349
    %v2351 = vrcp.pop %v1419
    %v2352 = vmul.f32 %v1419, %v2351
    %v2353 = vsub.f32 1.0, %v2352
    %v2354 = vmul.f32 %v2351, %v2353
    %v2355 = vadd.f32 %v2351, %v2354
    %vm2356 = vweird.f32 %v1419
    %vm2357 = vweird.f32 %v2351
    %vm2358 = vmor %vm2356, %vm2357
    %v2359 = vsel %vm2358, %v2351, %v2355
    %v2360 = vand.u32 2147483647, %v1419
    %vm2361 = vcmp.eq.f32.partialorder %v2360, 8.507059e+37
    %v2362 = vand.u32 %v1419, 2147483648
    %v2363 = vor.u32 1.1754944e-38, %v2362
    %v2364 = vsel %vm2361, %v2363, %v2359
    %v2365 = vmul.f32 1.0, %v2364
    %v2366 = vrcp.pop %v1420
    %v2367 = vmul.f32 %v1420, %v2366
    %v2368 = vsub.f32 1.0, %v2367
    %v2369 = vmul.f32 %v2366, %v2368
    %v2370 = vadd.f32 %v2366, %v2369
    %vm2371 = vweird.f32 %v1420
    %vm2372 = vweird.f32 %v2366
    %vm2373 = vmor %vm2371, %vm2372
    %v2374 = vsel %vm2373, %v2366, %v2370
    %v2375 = vand.u32 2147483647, %v1420
    %vm2376 = vcmp.eq.f32.partialorder %v2375, 8.507059e+37
    %v2377 = vand.u32 %v1420, 2147483648
    %v2378 = vor.u32 1.1754944e-38, %v2377
    %v2379 = vsel %vm2376, %v2378, %v2374
    %v2380 = vmul.f32 1.0, %v2379
    %v2381 = vmax.f32 %v1006, 0.0
    %v2382 = vmax.f32 %v1008, 0.0
    %v2383 = vmax.f32 %v1011, 0.0
    %v2384 = vmax.f32 %v1013, 0.0
    %v2385 = vmax.f32 %v1016, 0.0
    %v2386 = vmax.f32 %v1018, 0.0
    %v2387 = vmax.f32 %v1021, 0.0
    %v2388 = vmax.f32 %v1023, 0.0
    %v2389 = vmax.f32 %v1026, 0.0
    %v2390 = vmax.f32 %v1028, 0.0
    %v2391 = vmax.f32 %v1031, 0.0
    %v2392 = vmax.f32 %v1033, 0.0
    %v2393 = vmax.f32 %v1036, 0.0
    %v2394 = vmax.f32 %v1038, 0.0
    %v2395 = vmax.f32 %v1041, 0.0
    %v2396 = vmax.f32 %v1043, 0.0
    %v2397 = vmax.f32 %v1046, 0.0
    %v2398 = vmax.f32 %v1048, 0.0
    %v2399 = vmax.f32 %v1051, 0.0
    %v2400 = vmax.f32 %v1053, 0.0
    %v2401 = vmax.f32 %v1056, 0.0
    %v2402 = vmax.f32 %v1058, 0.0
    %v2403 = vmax.f32 %v1061, 0.0
    %v2404 = vmax.f32 %v1063, 0.0
    %v2405 = vmax.f32 %v1066, 0.0
    %v2406 = vmax.f32 %v1068, 0.0
    %v2407 = vmax.f32 %v1071, 0.0
    %v2408 = vmax.f32 %v1073, 0.0
    %v2409 = vmax.f32 %v1076, 0.0
    %v2410 = vmax.f32 %v1078, 0.0
    %v2411 = vmax.f32 %v1081, 0.0
    %v2412 = vmax.f32 %v1083, 0.0
    %v2413 = vmax.f32 %v1086, 0.0
    %v2414 = vmax.f32 %v1088, 0.0
    %v2415 = vmax.f32 %v1091, 0.0
    %v2416 = vmax.f32 %v1093, 0.0
    %v2417 = vmax.f32 %v1096, 0.0
    %v2418 = vmax.f32 %v1098, 0.0
    %v2419 = vmax.f32 %v1101, 0.0
    %v2420 = vmax.f32 %v1103, 0.0
    %v2421 = vmax.f32 %v1106, 0.0
    %v2422 = vmax.f32 %v1108, 0.0
    %v2423 = vmax.f32 %v1111, 0.0
    %v2424 = vmax.f32 %v1113, 0.0
    %v2425 = vmax.f32 %v1116, 0.0
    %v2426 = vmax.f32 %v1118, 0.0
    %v2427 = vmax.f32 %v1121, 0.0
    %v2428 = vmax.f32 %v1123, 0.0
    %v2429 = vmax.f32 %v1126, 0.0
    %v2430 = vmax.f32 %v1128, 0.0
    %v2431 = vmax.f32 %v1131, 0.0
    %v2432 = vmax.f32 %v1133, 0.0
    %v2433 = vmax.f32 %v1136, 0.0
    %v2434 = vmax.f32 %v1138, 0.0
    %v2435 = vmax.f32 %v1141, 0.0
    %v2436 = vmax.f32 %v1143, 0.0
    %v2437 = vmax.f32 %v1146, 0.0
    %v2438 = vmax.f32 %v1148, 0.0
    %v2439 = vmax.f32 %v1151, 0.0
    %v2440 = vmax.f32 %v1153, 0.0
    %v2441 = vmax.f32 %v1156, 0.0
    %v2442 = vmax.f32 %v1158, 0.0
    %v2443 = vmax.f32 %v1161, 0.0
    %v2444 = vmax.f32 %v1163, 0.0
    %v2445 = vand.u32 2147483647, %v1006
    %v2446 = vand.u32 2147483647, %v1008
    %v2447 = vand.u32 2147483647, %v1011
    %v2448 = vand.u32 2147483647, %v1013
    %v2449 = vand.u32 2147483647, %v1016
    %v2450 = vand.u32 2147483647, %v1018
    %v2451 = vand.u32 2147483647, %v1021
    %v2452 = vand.u32 2147483647, %v1023
    %v2453 = vand.u32 2147483647, %v1026
    %v2454 = vand.u32 2147483647, %v1028
    %v2455 = vand.u32 2147483647, %v1031
    %v2456 = vand.u32 2147483647, %v1033
    %v2457 = vand.u32 2147483647, %v1036
    %v2458 = vand.u32 2147483647, %v1038
    %v2459 = vand.u32 2147483647, %v1041
    %v2460 = vand.u32 2147483647, %v1043
    %v2461 = vand.u32 2147483647, %v1046
    %v2462 = vand.u32 2147483647, %v1048
    %v2463 = vand.u32 2147483647, %v1051
    %v2464 = vand.u32 2147483647, %v1053
    %v2465 = vand.u32 2147483647, %v1056
    %v2466 = vand.u32 2147483647, %v1058
    %v2467 = vand.u32 2147483647, %v1061
    %v2468 = vand.u32 2147483647, %v1063
    %v2469 = vand.u32 2147483647, %v1066
    %v2470 = vand.u32 2147483647, %v1068
    %v2471 = vand.u32 2147483647, %v1071
    %v2472 = vand.u32 2147483647, %v1073
    %v2473 = vand.u32 2147483647, %v1076
    %v2474 = vand.u32 2147483647, %v1078
    %v2475 = vand.u32 2147483647, %v1081
    %v2476 = vand.u32 2147483647, %v1083
    %v2477 = vand.u32 2147483647, %v1086
    %v2478 = vand.u32 2147483647, %v1088
    %v2479 = vand.u32 2147483647, %v1091
    %v2480 = vand.u32 2147483647, %v1093
    %v2481 = vand.u32 2147483647, %v1096
    %v2482 = vand.u32 2147483647, %v1098
    %v2483 = vand.u32 2147483647, %v1101
    %v2484 = vand.u32 2147483647, %v1103
    %v2485 = vand.u32 2147483647, %v1106
    %v2486 = vand.u32 2147483647, %v1108
    %v2487 = vand.u32 2147483647, %v1111
    %v2488 = vand.u32 2147483647, %v1113
    %v2489 = vand.u32 2147483647, %v1116
    %v2490 = vand.u32 2147483647, %v1118
    %v2491 = vand.u32 2147483647, %v1121
    %v2492 = vand.u32 2147483647, %v1123
    %v2493 = vand.u32 2147483647, %v1126
    %v2494 = vand.u32 2147483647, %v1128
    %v2495 = vand.u32 2147483647, %v1131
    %v2496 = vand.u32 2147483647, %v1133
    %v2497 = vand.u32 2147483647, %v1136
    %v2498 = vand.u32 2147483647, %v1138
    %v2499 = vand.u32 2147483647, %v1141
    %v2500 = vand.u32 2147483647, %v1143
    %v2501 = vand.u32 2147483647, %v1146
    %v2502 = vand.u32 2147483647, %v1148
    %v2503 = vand.u32 2147483647, %v1151
    %v2504 = vand.u32 2147483647, %v1153
    %v2505 = vand.u32 2147483647, %v1156
    %v2506 = vand.u32 2147483647, %v1158
    %v2507 = vand.u32 2147483647, %v1161
    %v2508 = vand.u32 2147483647, %v1163
    %v2509 = vsub.f32 0.0, %v2445
    %v2510 = vsub.f32 0.0, %v2446
    %v2511 = vsub.f32 0.0, %v2447
    %v2512 = vsub.f32 0.0, %v2448
    %v2513 = vsub.f32 0.0, %v2449
    %v2514 = vsub.f32 0.0, %v2450
    %v2515 = vsub.f32 0.0, %v2451
    %v2516 = vsub.f32 0.0, %v2452
    %v2517 = vsub.f32 0.0, %v2453
    %v2518 = vsub.f32 0.0, %v2454
    %v2519 = vsub.f32 0.0, %v2455
    %v2520 = vsub.f32 0.0, %v2456
    %v2521 = vsub.f32 0.0, %v2457
    %v2522 = vsub.f32 0.0, %v2458
    %v2523 = vsub.f32 0.0, %v2459
    %v2524 = vsub.f32 0.0, %v2460
    %v2525 = vsub.f32 0.0, %v2461
    %v2526 = vsub.f32 0.0, %v2462
    %v2527 = vsub.f32 0.0, %v2463
    %v2528 = vsub.f32 0.0, %v2464
    %v2529 = vsub.f32 0.0, %v2465
    %v2530 = vsub.f32 0.0, %v2466
    %v2531 = vsub.f32 0.0, %v2467
    %v2532 = vsub.f32 0.0, %v2468
    %v2533 = vsub.f32 0.0, %v2469
    %v2534 = vsub.f32 0.0, %v2470
    %v2535 = vsub.f32 0.0, %v2471
    %v2536 = vsub.f32 0.0, %v2472
    %v2537 = vsub.f32 0.0, %v2473
    %v2538 = vsub.f32 0.0, %v2474
    %v2539 = vsub.f32 0.0, %v2475
    %v2540 = vsub.f32 0.0, %v2476
    %v2541 = vsub.f32 0.0, %v2477
    %v2542 = vsub.f32 0.0, %v2478
    %v2543 = vsub.f32 0.0, %v2479
    %v2544 = vsub.f32 0.0, %v2480
    %v2545 = vsub.f32 0.0, %v2481
    %v2546 = vsub.f32 0.0, %v2482
    %v2547 = vsub.f32 0.0, %v2483
    %v2548 = vsub.f32 0.0, %v2484
    %v2549 = vsub.f32 0.0, %v2485
    %v2550 = vsub.f32 0.0, %v2486
    %v2551 = vsub.f32 0.0, %v2487
    %v2552 = vsub.f32 0.0, %v2488
    %v2553 = vsub.f32 0.0, %v2489
    %v2554 = vsub.f32 0.0, %v2490
    %v2555 = vsub.f32 0.0, %v2491
    %v2556 = vsub.f32 0.0, %v2492
    %v2557 = vsub.f32 0.0, %v2493
    %v2558 = vsub.f32 0.0, %v2494
    %v2559 = vsub.f32 0.0, %v2495
    %v2560 = vsub.f32 0.0, %v2496
    %v2561 = vsub.f32 0.0, %v2497
    %v2562 = vsub.f32 0.0, %v2498
    %v2563 = vsub.f32 0.0, %v2499
    %v2564 = vsub.f32 0.0, %v2500
    %v2565 = vsub.f32 0.0, %v2501
    %v2566 = vsub.f32 0.0, %v2502
    %v2567 = vsub.f32 0.0, %v2503
    %v2568 = vsub.f32 0.0, %v2504
    %v2569 = vsub.f32 0.0, %v2505
    %v2570 = vsub.f32 0.0, %v2506
    %v2571 = vsub.f32 0.0, %v2507
    %v2572 = vsub.f32 0.0, %v2508
    %v2573 = vmul.f32 %v2509, 1.442695
    %v2574 = vpow.pop %v2573
    %v2575 = vmul.f32 %v2510, 1.442695
    %v2576 = vpow.pop %v2575
    %v2577 = vmul.f32 %v2511, 1.442695
    %v2578 = vpow.pop %v2577
    %v2579 = vmul.f32 %v2512, 1.442695
    %v2580 = vpow.pop %v2579
    %v2581 = vmul.f32 %v2513, 1.442695
    %v2582 = vpow.pop %v2581
    %v2583 = vmul.f32 %v2514, 1.442695
    %v2584 = vpow.pop %v2583
    %v2585 = vmul.f32 %v2515, 1.442695
    %v2586 = vpow.pop %v2585
    %v2587 = vmul.f32 %v2516, 1.442695
    %v2588 = vpow.pop %v2587
    %v2589 = vmul.f32 %v2517, 1.442695
    %v2590 = vpow.pop %v2589
    %v2591 = vmul.f32 %v2518, 1.442695
    %v2592 = vpow.pop %v2591
    %v2593 = vmul.f32 %v2519, 1.442695
    %v2594 = vpow.pop %v2593
    %v2595 = vmul.f32 %v2520, 1.442695
    %v2596 = vpow.pop %v2595
    %v2597 = vmul.f32 %v2521, 1.442695
    %v2598 = vpow.pop %v2597
    %v2599 = vmul.f32 %v2522, 1.442695
    %v2600 = vpow.pop %v2599
    %v2601 = vmul.f32 %v2523, 1.442695
    %v2602 = vpow.pop %v2601
    %v2603 = vmul.f32 %v2524, 1.442695
    %v2604 = vpow.pop %v2603
    %v2605 = vmul.f32 %v2525, 1.442695
    %v2606 = vpow.pop %v2605
    %v2607 = vmul.f32 %v2526, 1.442695
    %v2608 = vpow.pop %v2607
    %v2609 = vmul.f32 %v2527, 1.442695
    %v2610 = vpow.pop %v2609
    %v2611 = vmul.f32 %v2528, 1.442695
    %v2612 = vpow.pop %v2611
    %v2613 = vmul.f32 %v2529, 1.442695
    %v2614 = vpow.pop %v2613
    %v2615 = vmul.f32 %v2530, 1.442695
    %v2616 = vpow.pop %v2615
    %v2617 = vmul.f32 %v2531, 1.442695
    %v2618 = vpow.pop %v2617
    %v2619 = vmul.f32 %v2532, 1.442695
    %v2620 = vpow.pop %v2619
    %v2621 = vmul.f32 %v2533, 1.442695
    %v2622 = vpow.pop %v2621
    %v2623 = vmul.f32 %v2534, 1.442695
    %v2624 = vpow.pop %v2623
    %v2625 = vmul.f32 %v2535, 1.442695
    %v2626 = vpow.pop %v2625
    %v2627 = vmul.f32 %v2536, 1.442695
    %v2628 = vpow.pop %v2627
    %v2629 = vmul.f32 %v2537, 1.442695
    %v2630 = vpow.pop %v2629
    %v2631 = vmul.f32 %v2538, 1.442695
    %v2632 = vpow.pop %v2631
    %v2633 = vmul.f32 %v2539, 1.442695
    %v2634 = vpow.pop %v2633
    %v2635 = vmul.f32 %v2540, 1.442695
    %v2636 = vpow.pop %v2635
    %v2637 = vmul.f32 %v2541, 1.442695
    %v2638 = vpow.pop %v2637
    %v2639 = vmul.f32 %v2542, 1.442695
    %v2640 = vpow.pop %v2639
    %v2641 = vmul.f32 %v2543, 1.442695
    %v2642 = vpow.pop %v2641
    %v2643 = vmul.f32 %v2544, 1.442695
    %v2644 = vpow.pop %v2643
    %v2645 = vmul.f32 %v2545, 1.442695
    %v2646 = vpow.pop %v2645
    %v2647 = vmul.f32 %v2546, 1.442695
    %v2648 = vpow.pop %v2647
    %v2649 = vmul.f32 %v2547, 1.442695
    %v2650 = vpow.pop %v2649
    %v2651 = vmul.f32 %v2548, 1.442695
    %v2652 = vpow.pop %v2651
    %v2653 = vmul.f32 %v2549, 1.442695
    %v2654 = vpow.pop %v2653
    %v2655 = vmul.f32 %v2550, 1.442695
    %v2656 = vpow.pop %v2655
    %v2657 = vmul.f32 %v2551, 1.442695
    %v2658 = vpow.pop %v2657
    %v2659 = vmul.f32 %v2552, 1.442695
    %v2660 = vpow.pop %v2659
    %v2661 = vmul.f32 %v2553, 1.442695
    %v2662 = vpow.pop %v2661
    %v2663 = vmul.f32 %v2554, 1.442695
    %v2664 = vpow.pop %v2663
    %v2665 = vmul.f32 %v2555, 1.442695
    %v2666 = vpow.pop %v2665
    %v2667 = vmul.f32 %v2556, 1.442695
    %v2668 = vpow.pop %v2667
    %v2669 = vmul.f32 %v2557, 1.442695
    %v2670 = vpow.pop %v2669
    %v2671 = vmul.f32 %v2558, 1.442695
    %v2672 = vpow.pop %v2671
    %v2673 = vmul.f32 %v2559, 1.442695
    %v2674 = vpow.pop %v2673
    %v2675 = vmul.f32 %v2560, 1.442695
    %v2676 = vpow.pop %v2675
    %v2677 = vmul.f32 %v2561, 1.442695
    %v2678 = vpow.pop %v2677
    %v2679 = vmul.f32 %v2562, 1.442695
    %v2680 = vpow.pop %v2679
    %v2681 = vmul.f32 %v2563, 1.442695
    %v2682 = vpow.pop %v2681
    %v2683 = vmul.f32 %v2564, 1.442695
    %v2684 = vpow.pop %v2683
    %v2685 = vmul.f32 %v2565, 1.442695
    %v2686 = vpow.pop %v2685
    %v2687 = vmul.f32 %v2566, 1.442695
    %v2688 = vpow.pop %v2687
    %v2689 = vmul.f32 %v2567, 1.442695
    %v2690 = vpow.pop %v2689
    %v2691 = vmul.f32 %v2568, 1.442695
    %v2692 = vpow.pop %v2691
    %v2693 = vmul.f32 %v2569, 1.442695
    %v2694 = vpow.pop %v2693
    %v2695 = vmul.f32 %v2570, 1.442695
    %v2696 = vpow.pop %v2695
    %v2697 = vmul.f32 %v2571, 1.442695
    %v2698 = vpow.pop %v2697
    %v2699 = vmul.f32 %v2572, 1.442695
    %v2700 = vpow.pop %v2699
    %v2701 = vadd.f32 %v2574, 1.0
    %v2702 = vadd.f32 %v2576, 1.0
    %v2703 = vadd.f32 %v2578, 1.0
    %v2704 = vadd.f32 %v2580, 1.0
    %v2705 = vadd.f32 %v2582, 1.0
    %v2706 = vadd.f32 %v2584, 1.0
    %v2707 = vadd.f32 %v2586, 1.0
    %v2708 = vadd.f32 %v2588, 1.0
    %v2709 = vadd.f32 %v2590, 1.0
    %v2710 = vadd.f32 %v2592, 1.0
    %v2711 = vadd.f32 %v2594, 1.0
    %v2712 = vadd.f32 %v2596, 1.0
    %v2713 = vadd.f32 %v2598, 1.0
    %v2714 = vadd.f32 %v2600, 1.0
    %v2715 = vadd.f32 %v2602, 1.0
    %v2716 = vadd.f32 %v2604, 1.0
    %v2717 = vadd.f32 %v2606, 1.0
    %v2718 = vadd.f32 %v2608, 1.0
    %v2719 = vadd.f32 %v2610, 1.0
    %v2720 = vadd.f32 %v2612, 1.0
    %v2721 = vadd.f32 %v2614, 1.0
    %v2722 = vadd.f32 %v2616, 1.0
    %v2723 = vadd.f32 %v2618, 1.0
    %v2724 = vadd.f32 %v2620, 1.0
    %v2725 = vadd.f32 %v2622, 1.0
    %v2726 = vadd.f32 %v2624, 1.0
    %v2727 = vadd.f32 %v2626, 1.0
    %v2728 = vadd.f32 %v2628, 1.0
    %v2729 = vadd.f32 %v2630, 1.0
    %v2730 = vadd.f32 %v2632, 1.0
    %v2731 = vadd.f32 %v2634, 1.0
    %v2732 = vadd.f32 %v2636, 1.0
    %v2733 = vadd.f32 %v2638, 1.0
    %v2734 = vadd.f32 %v2640, 1.0
    %v2735 = vadd.f32 %v2642, 1.0
    %v2736 = vadd.f32 %v2644, 1.0
    %v2737 = vadd.f32 %v2646, 1.0
    %v2738 = vadd.f32 %v2648, 1.0
    %v2739 = vadd.f32 %v2650, 1.0
    %v2740 = vadd.f32 %v2652, 1.0
    %v2741 = vadd.f32 %v2654, 1.0
    %v2742 = vadd.f32 %v2656, 1.0
    %v2743 = vadd.f32 %v2658, 1.0
    %v2744 = vadd.f32 %v2660, 1.0
    %v2745 = vadd.f32 %v2662, 1.0
    %v2746 = vadd.f32 %v2664, 1.0
    %v2747 = vadd.f32 %v2666, 1.0
    %v2748 = vadd.f32 %v2668, 1.0
    %v2749 = vadd.f32 %v2670, 1.0
    %v2750 = vadd.f32 %v2672, 1.0
    %v2751 = vadd.f32 %v2674, 1.0
    %v2752 = vadd.f32 %v2676, 1.0
    %v2753 = vadd.f32 %v2678, 1.0
    %v2754 = vadd.f32 %v2680, 1.0
    %v2755 = vadd.f32 %v2682, 1.0
    %v2756 = vadd.f32 %v2684, 1.0
    %v2757 = vadd.f32 %v2686, 1.0
    %v2758 = vadd.f32 %v2688, 1.0
    %v2759 = vadd.f32 %v2690, 1.0
    %v2760 = vadd.f32 %v2692, 1.0
    %v2761 = vadd.f32 %v2694, 1.0
    %v2762 = vadd.f32 %v2696, 1.0
    %v2763 = vadd.f32 %v2698, 1.0
    %v2764 = vadd.f32 %v2700, 1.0
    %v2765 = vlog2.pop %v2701
    %v2766 = vmul.f32 %v2765, 0.6931472
    %v2767 = vlog2.pop %v2702
    %v2768 = vmul.f32 %v2767, 0.6931472
    %v2769 = vlog2.pop %v2703
    %v2770 = vmul.f32 %v2769, 0.6931472
    %v2771 = vlog2.pop %v2704
    %v2772 = vmul.f32 %v2771, 0.6931472
    %v2773 = vlog2.pop %v2705
    %v2774 = vmul.f32 %v2773, 0.6931472
    %v2775 = vlog2.pop %v2706
    %v2776 = vmul.f32 %v2775, 0.6931472
    %v2777 = vlog2.pop %v2707
    %v2778 = vmul.f32 %v2777, 0.6931472
    %v2779 = vlog2.pop %v2708
    %v2780 = vmul.f32 %v2779, 0.6931472
    %v2781 = vlog2.pop %v2709
    %v2782 = vmul.f32 %v2781, 0.6931472
    %v2783 = vlog2.pop %v2710
    %v2784 = vmul.f32 %v2783, 0.6931472
    %v2785 = vlog2.pop %v2711
    %v2786 = vmul.f32 %v2785, 0.6931472
    %v2787 = vlog2.pop %v2712
    %v2788 = vmul.f32 %v2787, 0.6931472
    %v2789 = vlog2.pop %v2713
    %v2790 = vmul.f32 %v2789, 0.6931472
    %v2791 = vlog2.pop %v2714
    %v2792 = vmul.f32 %v2791, 0.6931472
    %v2793 = vlog2.pop %v2715
    %v2794 = vmul.f32 %v2793, 0.6931472
    %v2795 = vlog2.pop %v2716
    %v2796 = vmul.f32 %v2795, 0.6931472
    %v2797 = vlog2.pop %v2717
    %v2798 = vmul.f32 %v2797, 0.6931472
    %v2799 = vlog2.pop %v2718
    %v2800 = vmul.f32 %v2799, 0.6931472
    %v2801 = vlog2.pop %v2719
    %v2802 = vmul.f32 %v2801, 0.6931472
    %v2803 = vlog2.pop %v2720
    %v2804 = vmul.f32 %v2803, 0.6931472
    %v2805 = vlog2.pop %v2721
    %v2806 = vmul.f32 %v2805, 0.6931472
    %v2807 = vlog2.pop %v2722
    %v2808 = vmul.f32 %v2807, 0.6931472
    %v2809 = vlog2.pop %v2723
    %v2810 = vmul.f32 %v2809, 0.6931472
    %v2811 = vlog2.pop %v2724
    %v2812 = vmul.f32 %v2811, 0.6931472
    %v2813 = vlog2.pop %v2725
    %v2814 = vmul.f32 %v2813, 0.6931472
    %v2815 = vlog2.pop %v2726
    %v2816 = vmul.f32 %v2815, 0.6931472
    %v2817 = vlog2.pop %v2727
    %v2818 = vmul.f32 %v2817, 0.6931472
    %v2819 = vlog2.pop %v2728
    %v2820 = vmul.f32 %v2819, 0.6931472
    %v2821 = vlog2.pop %v2729
    %v2822 = vmul.f32 %v2821, 0.6931472
    %v2823 = vlog2.pop %v2730
    %v2824 = vmul.f32 %v2823, 0.6931472
    %v2825 = vlog2.pop %v2731
    %v2826 = vmul.f32 %v2825, 0.6931472
    %v2827 = vlog2.pop %v2732
    %v2828 = vmul.f32 %v2827, 0.6931472
    %v2829 = vlog2.pop %v2733
    %v2830 = vmul.f32 %v2829, 0.6931472
    %v2831 = vlog2.pop %v2734
    %v2832 = vmul.f32 %v2831, 0.6931472
    %v2833 = vlog2.pop %v2735
    %v2834 = vmul.f32 %v2833, 0.6931472
    %v2835 = vlog2.pop %v2736
    %v2836 = vmul.f32 %v2835, 0.6931472
    %v2837 = vlog2.pop %v2737
    %v2838 = vmul.f32 %v2837, 0.6931472
    %v2839 = vlog2.pop %v2738
    %v2840 = vmul.f32 %v2839, 0.6931472
    %v2841 = vlog2.pop %v2739
    %v2842 = vmul.f32 %v2841, 0.6931472
    %v2843 = vlog2.pop %v2740
    %v2844 = vmul.f32 %v2843, 0.6931472
    %v2845 = vlog2.pop %v2741
    %v2846 = vmul.f32 %v2845, 0.6931472
    %v2847 = vlog2.pop %v2742
    %v2848 = vmul.f32 %v2847, 0.6931472
    %v2849 = vlog2.pop %v2743
    %v2850 = vmul.f32 %v2849, 0.6931472
    %v2851 = vlog2.pop %v2744
    %v2852 = vmul.f32 %v2851, 0.6931472
    %v2853 = vlog2.pop %v2745
    %v2854 = vmul.f32 %v2853, 0.6931472
    %v2855 = vlog2.pop %v2746
    %v2856 = vmul.f32 %v2855, 0.6931472
    %v2857 = vlog2.pop %v2747
    %v2858 = vmul.f32 %v2857, 0.6931472
    %v2859 = vlog2.pop %v2748
    %v2860 = vmul.f32 %v2859, 0.6931472
    %v2861 = vlog2.pop %v2749
    %v2862 = vmul.f32 %v2861, 0.6931472
    %v2863 = vlog2.pop %v2750
    %v2864 = vmul.f32 %v2863, 0.6931472
    %v2865 = vlog2.pop %v2751
    %v2866 = vmul.f32 %v2865, 0.6931472
    %v2867 = vlog2.pop %v2752
    %v2868 = vmul.f32 %v2867, 0.6931472
    %v2869 = vlog2.pop %v2753
    %v2870 = vmul.f32 %v2869, 0.6931472
    %v2871 = vlog2.pop %v2754
    %v2872 = vmul.f32 %v2871, 0.6931472
    %v2873 = vlog2.pop %v2755
    %v2874 = vmul.f32 %v2873, 0.6931472
    %v2875 = vlog2.pop %v2756
    %v2876 = vmul.f32 %v2875, 0.6931472
    %v2877 = vlog2.pop %v2757
    %v2878 = vmul.f32 %v2877, 0.6931472
    %v2879 = vlog2.pop %v2758
    %v2880 = vmul.f32 %v2879, 0.6931472
    %v2881 = vlog2.pop %v2759
    %v2882 = vmul.f32 %v2881, 0.6931472
    %v2883 = vlog2.pop %v2760
    %v2884 = vmul.f32 %v2883, 0.6931472
    %v2885 = vlog2.pop %v2761
    %v2886 = vmul.f32 %v2885, 0.6931472
    %v2887 = vlog2.pop %v2762
    %v2888 = vmul.f32 %v2887, 0.6931472
    %v2889 = vlog2.pop %v2763
    %v2890 = vmul.f32 %v2889, 0.6931472
    %v2891 = vlog2.pop %v2764
    %v2892 = vmul.f32 %v2891, 0.6931472
    %v2893 = vadd.f32 %v2381, %v2766
    %v2894 = vadd.f32 %v2382, %v2768
    %v2895 = vadd.f32 %v2383, %v2770
    %v2896 = vadd.f32 %v2384, %v2772
    %v2897 = vadd.f32 %v2385, %v2774
    %v2898 = vadd.f32 %v2386, %v2776
    %v2899 = vadd.f32 %v2387, %v2778
    %v2900 = vadd.f32 %v2388, %v2780
    %v2901 = vadd.f32 %v2389, %v2782
    %v2902 = vadd.f32 %v2390, %v2784
    %v2903 = vadd.f32 %v2391, %v2786
    %v2904 = vadd.f32 %v2392, %v2788
    %v2905 = vadd.f32 %v2393, %v2790
    %v2906 = vadd.f32 %v2394, %v2792
    %v2907 = vadd.f32 %v2395, %v2794
    %v2908 = vadd.f32 %v2396, %v2796
    %v2909 = vadd.f32 %v2397, %v2798
    %v2910 = vadd.f32 %v2398, %v2800
    %v2911 = vadd.f32 %v2399, %v2802
    %v2912 = vadd.f32 %v2400, %v2804
    %v2913 = vadd.f32 %v2401, %v2806
    %v2914 = vadd.f32 %v2402, %v2808
    %v2915 = vadd.f32 %v2403, %v2810
    %v2916 = vadd.f32 %v2404, %v2812
    %v2917 = vadd.f32 %v2405, %v2814
    %v2918 = vadd.f32 %v2406, %v2816
    %v2919 = vadd.f32 %v2407, %v2818
    %v2920 = vadd.f32 %v2408, %v2820
    %v2921 = vadd.f32 %v2409, %v2822
    %v2922 = vadd.f32 %v2410, %v2824
    %v2923 = vadd.f32 %v2411, %v2826
    %v2924 = vadd.f32 %v2412, %v2828
    %v2925 = vadd.f32 %v2413, %v2830
    %v2926 = vadd.f32 %v2414, %v2832
    %v2927 = vadd.f32 %v2415, %v2834
    %v2928 = vadd.f32 %v2416, %v2836
    %v2929 = vadd.f32 %v2417, %v2838
    %v2930 = vadd.f32 %v2418, %v2840
    %v2931 = vadd.f32 %v2419, %v2842
    %v2932 = vadd.f32 %v2420, %v2844
    %v2933 = vadd.f32 %v2421, %v2846
    %v2934 = vadd.f32 %v2422, %v2848
    %v2935 = vadd.f32 %v2423, %v2850
    %v2936 = vadd.f32 %v2424, %v2852
    %v2937 = vadd.f32 %v2425, %v2854
    %v2938 = vadd.f32 %v2426, %v2856
    %v2939 = vadd.f32 %v2427, %v2858
    %v2940 = vadd.f32 %v2428, %v2860
    %v2941 = vadd.f32 %v2429, %v2862
    %v2942 = vadd.f32 %v2430, %v2864
    %v2943 = vadd.f32 %v2431, %v2866
    %v2944 = vadd.f32 %v2432, %v2868
    %v2945 = vadd.f32 %v2433, %v2870
    %v2946 = vadd.f32 %v2434, %v2872
    %v2947 = vadd.f32 %v2435, %v2874
    %v2948 = vadd.f32 %v2436, %v2876
    %v2949 = vadd.f32 %v2437, %v2878
    %v2950 = vadd.f32 %v2438, %v2880
    %v2951 = vadd.f32 %v2439, %v2882
    %v2952 = vadd.f32 %v2440, %v2884
    %v2953 = vadd.f32 %v2441, %v2886
    %v2954 = vadd.f32 %v2442, %v2888
    %v2955 = vadd.f32 %v2443, %v2890
    %v2956 = vadd.f32 %v2444, %v2892
    %v2957 = vadd.f32 %v2893, 0.1
    %v2958 = vadd.f32 %v2894, 0.1
    %v2959 = vadd.f32 %v2895, 0.1
    %v2960 = vadd.f32 %v2896, 0.1
    %v2961 = vadd.f32 %v2897, 0.1
    %v2962 = vadd.f32 %v2898, 0.1
    %v2963 = vadd.f32 %v2899, 0.1
    %v2964 = vadd.f32 %v2900, 0.1
    %v2965 = vadd.f32 %v2901, 0.1
    %v2966 = vadd.f32 %v2902, 0.1
    %v2967 = vadd.f32 %v2903, 0.1
    %v2968 = vadd.f32 %v2904, 0.1
    %v2969 = vadd.f32 %v2905, 0.1
    %v2970 = vadd.f32 %v2906, 0.1
    %v2971 = vadd.f32 %v2907, 0.1
    %v2972 = vadd.f32 %v2908, 0.1
    %v2973 = vadd.f32 %v2909, 0.1
    %v2974 = vadd.f32 %v2910, 0.1
    %v2975 = vadd.f32 %v2911, 0.1
    %v2976 = vadd.f32 %v2912, 0.1
    %v2977 = vadd.f32 %v2913, 0.1
    %v2978 = vadd.f32 %v2914, 0.1
    %v2979 = vadd.f32 %v2915, 0.1
    %v2980 = vadd.f32 %v2916, 0.1
    %v2981 = vadd.f32 %v2917, 0.1
    %v2982 = vadd.f32 %v2918, 0.1
    %v2983 = vadd.f32 %v2919, 0.1
    %v2984 = vadd.f32 %v2920, 0.1
    %v2985 = vadd.f32 %v2921, 0.1
    %v2986 = vadd.f32 %v2922, 0.1
    %v2987 = vadd.f32 %v2923, 0.1
    %v2988 = vadd.f32 %v2924, 0.1
    %v2989 = vadd.f32 %v2925, 0.1
    %v2990 = vadd.f32 %v2926, 0.1
    %v2991 = vadd.f32 %v2927, 0.1
    %v2992 = vadd.f32 %v2928, 0.1
    %v2993 = vadd.f32 %v2929, 0.1
    %v2994 = vadd.f32 %v2930, 0.1
    %v2995 = vadd.f32 %v2931, 0.1
    %v2996 = vadd.f32 %v2932, 0.1
    %v2997 = vadd.f32 %v2933, 0.1
    %v2998 = vadd.f32 %v2934, 0.1
    %v2999 = vadd.f32 %v2935, 0.1
    %v3000 = vadd.f32 %v2936, 0.1
    %v3001 = vadd.f32 %v2937, 0.1
    %v3002 = vadd.f32 %v2938, 0.1
    %v3003 = vadd.f32 %v2939, 0.1
    %v3004 = vadd.f32 %v2940, 0.1
    %v3005 = vadd.f32 %v2941, 0.1
    %v3006 = vadd.f32 %v2942, 0.1
    %v3007 = vadd.f32 %v2943, 0.1
    %v3008 = vadd.f32 %v2944, 0.1
    %v3009 = vadd.f32 %v2945, 0.1
    %v3010 = vadd.f32 %v2946, 0.1
    %v3011 = vadd.f32 %v2947, 0.1
    %v3012 = vadd.f32 %v2948, 0.1
    %v3013 = vadd.f32 %v2949, 0.1
    %v3014 = vadd.f32 %v2950, 0.1
    %v3015 = vadd.f32 %v2951, 0.1
    %v3016 = vadd.f32 %v2952, 0.1
    %v3017 = vadd.f32 %v2953, 0.1
    %v3018 = vadd.f32 %v2954, 0.1
    %v3019 = vadd.f32 %v2955, 0.1
    %v3020 = vadd.f32 %v2956, 0.1
    %v3021 = vsel %vm129, %v1006, -inf
    %3022 = vmax.xlane.f32.xlu0 %v3021
    %v3023 = vpop.xlane.xlu0 %3022
    %v3024 = vsel %vm129, %v1008, -inf
    %3025 = vmax.xlane.f32.xlu0 %v3024
    %v3026 = vpop.xlane.xlu0 %3025
    %v3027 = vsel %vm129, %v1011, -inf
    %3028 = vmax.xlane.f32.xlu0 %v3027
    %v3029 = vpop.xlane.xlu0 %3028
    %v3030 = vsel %vm129, %v1013, -inf
    %3031 = vmax.xlane.f32.xlu0 %v3030
    %v3032 = vpop.xlane.xlu0 %3031
    %v3033 = vsel %vm129, %v1016, -inf
    %3034 = vmax.xlane.f32.xlu0 %v3033
    %v3035 = vpop.xlane.xlu0 %3034
    %v3036 = vsel %vm129, %v1018, -inf
    %3037 = vmax.xlane.f32.xlu0 %v3036
    %v3038 = vpop.xlane.xlu0 %3037
    %v3039 = vsel %vm129, %v1021, -inf
    %3040 = vmax.xlane.f32.xlu0 %v3039
    %v3041 = vpop.xlane.xlu0 %3040
    %v3042 = vsel %vm129, %v1023, -inf
    %3043 = vmax.xlane.f32.xlu0 %v3042
    %v3044 = vpop.xlane.xlu0 %3043
    %v3045 = vsel %vm129, %v1026, -inf
    %3046 = vmax.xlane.f32.xlu0 %v3045
    %v3047 = vpop.xlane.xlu0 %3046
    %v3048 = vsel %vm129, %v1028, -inf
    %3049 = vmax.xlane.f32.xlu0 %v3048
    %v3050 = vpop.xlane.xlu0 %3049
    %v3051 = vsel %vm129, %v1031, -inf
    %3052 = vmax.xlane.f32.xlu0 %v3051
    %v3053 = vpop.xlane.xlu0 %3052
    %v3054 = vsel %vm129, %v1033, -inf
    %3055 = vmax.xlane.f32.xlu0 %v3054
    %v3056 = vpop.xlane.xlu0 %3055
    %v3057 = vsel %vm129, %v1036, -inf
    %3058 = vmax.xlane.f32.xlu0 %v3057
    %v3059 = vpop.xlane.xlu0 %3058
    %v3060 = vsel %vm129, %v1038, -inf
    %3061 = vmax.xlane.f32.xlu0 %v3060
    %v3062 = vpop.xlane.xlu0 %3061
    %v3063 = vsel %vm129, %v1041, -inf
    %3064 = vmax.xlane.f32.xlu0 %v3063
    %v3065 = vpop.xlane.xlu0 %3064
    %v3066 = vsel %vm129, %v1043, -inf
    %3067 = vmax.xlane.f32.xlu0 %v3066
    %v3068 = vpop.xlane.xlu0 %3067
    %v3069 = vsel %vm129, %v1046, -inf
    %3070 = vmax.xlane.f32.xlu0 %v3069
    %v3071 = vpop.xlane.xlu0 %3070
    %v3072 = vsel %vm129, %v1048, -inf
    %3073 = vmax.xlane.f32.xlu0 %v3072
    %v3074 = vpop.xlane.xlu0 %3073
    %v3075 = vsel %vm129, %v1051, -inf
    %3076 = vmax.xlane.f32.xlu0 %v3075
    %v3077 = vpop.xlane.xlu0 %3076
    %v3078 = vsel %vm129, %v1053, -inf
    %3079 = vmax.xlane.f32.xlu0 %v3078
    %v3080 = vpop.xlane.xlu0 %3079
    %v3081 = vsel %vm129, %v1056, -inf
    %3082 = vmax.xlane.f32.xlu0 %v3081
    %v3083 = vpop.xlane.xlu0 %3082
    %v3084 = vsel %vm129, %v1058, -inf
    %3085 = vmax.xlane.f32.xlu0 %v3084
    %v3086 = vpop.xlane.xlu0 %3085
    %v3087 = vsel %vm129, %v1061, -inf
    %3088 = vmax.xlane.f32.xlu0 %v3087
    %v3089 = vpop.xlane.xlu0 %3088
    %v3090 = vsel %vm129, %v1063, -inf
    %3091 = vmax.xlane.f32.xlu0 %v3090
    %v3092 = vpop.xlane.xlu0 %3091
    %v3093 = vsel %vm129, %v1066, -inf
    %3094 = vmax.xlane.f32.xlu0 %v3093
    %v3095 = vpop.xlane.xlu0 %3094
    %v3096 = vsel %vm129, %v1068, -inf
    %3097 = vmax.xlane.f32.xlu0 %v3096
    %v3098 = vpop.xlane.xlu0 %3097
    %v3099 = vsel %vm129, %v1071, -inf
    %3100 = vmax.xlane.f32.xlu0 %v3099
    %v3101 = vpop.xlane.xlu0 %3100
    %v3102 = vsel %vm129, %v1073, -inf
    %3103 = vmax.xlane.f32.xlu0 %v3102
    %v3104 = vpop.xlane.xlu0 %3103
    %v3105 = vsel %vm129, %v1076, -inf
    %3106 = vmax.xlane.f32.xlu0 %v3105
    %v3107 = vpop.xlane.xlu0 %3106
    %v3108 = vsel %vm129, %v1078, -inf
    %3109 = vmax.xlane.f32.xlu0 %v3108
    %v3110 = vpop.xlane.xlu0 %3109
    %v3111 = vsel %vm129, %v1081, -inf
    %3112 = vmax.xlane.f32.xlu0 %v3111
    %v3113 = vpop.xlane.xlu0 %3112
    %v3114 = vsel %vm129, %v1083, -inf
    %3115 = vmax.xlane.f32.xlu0 %v3114
    %v3116 = vpop.xlane.xlu0 %3115
    %v3117 = vsel %vm129, %v1086, -inf
    %3118 = vmax.xlane.f32.xlu0 %v3117
    %v3119 = vpop.xlane.xlu0 %3118
    %v3120 = vsel %vm129, %v1088, -inf
    %3121 = vmax.xlane.f32.xlu0 %v3120
    %v3122 = vpop.xlane.xlu0 %3121
    %v3123 = vsel %vm129, %v1091, -inf
    %3124 = vmax.xlane.f32.xlu0 %v3123
    %v3125 = vpop.xlane.xlu0 %3124
    %v3126 = vsel %vm129, %v1093, -inf
    %3127 = vmax.xlane.f32.xlu0 %v3126
    %v3128 = vpop.xlane.xlu0 %3127
    %v3129 = vsel %vm129, %v1096, -inf
    %3130 = vmax.xlane.f32.xlu0 %v3129
    %v3131 = vpop.xlane.xlu0 %3130
    %v3132 = vsel %vm129, %v1098, -inf
    %3133 = vmax.xlane.f32.xlu0 %v3132
    %v3134 = vpop.xlane.xlu0 %3133
    %v3135 = vsel %vm129, %v1101, -inf
    %3136 = vmax.xlane.f32.xlu0 %v3135
    %v3137 = vpop.xlane.xlu0 %3136
    %v3138 = vsel %vm129, %v1103, -inf
    %3139 = vmax.xlane.f32.xlu0 %v3138
    %v3140 = vpop.xlane.xlu0 %3139
    %v3141 = vsel %vm129, %v1106, -inf
    %3142 = vmax.xlane.f32.xlu0 %v3141
    %v3143 = vpop.xlane.xlu0 %3142
    %v3144 = vsel %vm129, %v1108, -inf
    %3145 = vmax.xlane.f32.xlu0 %v3144
    %v3146 = vpop.xlane.xlu0 %3145
    %v3147 = vsel %vm129, %v1111, -inf
    %3148 = vmax.xlane.f32.xlu0 %v3147
    %v3149 = vpop.xlane.xlu0 %3148
    %v3150 = vsel %vm129, %v1113, -inf
    %3151 = vmax.xlane.f32.xlu0 %v3150
    %v3152 = vpop.xlane.xlu0 %3151
    %v3153 = vsel %vm129, %v1116, -inf
    %3154 = vmax.xlane.f32.xlu0 %v3153
    %v3155 = vpop.xlane.xlu0 %3154
    %v3156 = vsel %vm129, %v1118, -inf
    %3157 = vmax.xlane.f32.xlu0 %v3156
    %v3158 = vpop.xlane.xlu0 %3157
    %v3159 = vsel %vm129, %v1121, -inf
    %3160 = vmax.xlane.f32.xlu0 %v3159
    %v3161 = vpop.xlane.xlu0 %3160
    %v3162 = vsel %vm129, %v1123, -inf
    %3163 = vmax.xlane.f32.xlu0 %v3162
    %v3164 = vpop.xlane.xlu0 %3163
    %v3165 = vsel %vm129, %v1126, -inf
    %3166 = vmax.xlane.f32.xlu0 %v3165
    %v3167 = vpop.xlane.xlu0 %3166
    %v3168 = vsel %vm129, %v1128, -inf
    %3169 = vmax.xlane.f32.xlu0 %v3168
    %v3170 = vpop.xlane.xlu0 %3169
    %v3171 = vsel %vm129, %v1131, -inf
    %3172 = vmax.xlane.f32.xlu0 %v3171
    %v3173 = vpop.xlane.xlu0 %3172
    %v3174 = vsel %vm129, %v1133, -inf
    %3175 = vmax.xlane.f32.xlu0 %v3174
    %v3176 = vpop.xlane.xlu0 %3175
    %v3177 = vsel %vm129, %v1136, -inf
    %3178 = vmax.xlane.f32.xlu0 %v3177
    %v3179 = vpop.xlane.xlu0 %3178
    %v3180 = vsel %vm129, %v1138, -inf
    %3181 = vmax.xlane.f32.xlu0 %v3180
    %v3182 = vpop.xlane.xlu0 %3181
    %v3183 = vsel %vm129, %v1141, -inf
    %3184 = vmax.xlane.f32.xlu0 %v3183
    %v3185 = vpop.xlane.xlu0 %3184
    %v3186 = vsel %vm129, %v1143, -inf
    %3187 = vmax.xlane.f32.xlu0 %v3186
    %v3188 = vpop.xlane.xlu0 %3187
    %v3189 = vsel %vm129, %v1146, -inf
    %3190 = vmax.xlane.f32.xlu0 %v3189
    %v3191 = vpop.xlane.xlu0 %3190
    %v3192 = vsel %vm129, %v1148, -inf
    %3193 = vmax.xlane.f32.xlu0 %v3192
    %v3194 = vpop.xlane.xlu0 %3193
    %v3195 = vsel %vm129, %v1151, -inf
    %3196 = vmax.xlane.f32.xlu0 %v3195
    %v3197 = vpop.xlane.xlu0 %3196
    %v3198 = vsel %vm129, %v1153, -inf
    %3199 = vmax.xlane.f32.xlu0 %v3198
    %v3200 = vpop.xlane.xlu0 %3199
    %v3201 = vsel %vm129, %v1156, -inf
    %3202 = vmax.xlane.f32.xlu0 %v3201
    %v3203 = vpop.xlane.xlu0 %3202
    %v3204 = vsel %vm129, %v1158, -inf
    %3205 = vmax.xlane.f32.xlu0 %v3204
    %v3206 = vpop.xlane.xlu0 %3205
    %v3207 = vsel %vm129, %v1161, -inf
    %3208 = vmax.xlane.f32.xlu0 %v3207
    %v3209 = vpop.xlane.xlu0 %3208
    %v3210 = vsel %vm129, %v1163, -inf
    %3211 = vmax.xlane.f32.xlu0 %v3210
    %v3212 = vpop.xlane.xlu0 %3211
    %v3213 = vlaneseq
    %v3214 = vand.u32 %v3213, 127
    %v3215 = vcvt.s32.f32 %v3214
    %vm3216 = vcmp.ge.f32.partialorder %v1006, %v3023
    %vm3217 = vcmp.ge.f32.partialorder %v1008, %v3026
    %vm3218 = vcmp.ge.f32.partialorder %v1011, %v3029
    %vm3219 = vcmp.ge.f32.partialorder %v1013, %v3032
    %vm3220 = vcmp.ge.f32.partialorder %v1016, %v3035
    %vm3221 = vcmp.ge.f32.partialorder %v1018, %v3038
    %vm3222 = vcmp.ge.f32.partialorder %v1021, %v3041
    %vm3223 = vcmp.ge.f32.partialorder %v1023, %v3044
    %vm3224 = vcmp.ge.f32.partialorder %v1026, %v3047
    %vm3225 = vcmp.ge.f32.partialorder %v1028, %v3050
    %vm3226 = vcmp.ge.f32.partialorder %v1031, %v3053
    %vm3227 = vcmp.ge.f32.partialorder %v1033, %v3056
    %vm3228 = vcmp.ge.f32.partialorder %v1036, %v3059
    %vm3229 = vcmp.ge.f32.partialorder %v1038, %v3062
    %vm3230 = vcmp.ge.f32.partialorder %v1041, %v3065
    %vm3231 = vcmp.ge.f32.partialorder %v1043, %v3068
    %vm3232 = vcmp.ge.f32.partialorder %v1046, %v3071
    %vm3233 = vcmp.ge.f32.partialorder %v1048, %v3074
    %vm3234 = vcmp.ge.f32.partialorder %v1051, %v3077
    %vm3235 = vcmp.ge.f32.partialorder %v1053, %v3080
    %vm3236 = vcmp.ge.f32.partialorder %v1056, %v3083
    %vm3237 = vcmp.ge.f32.partialorder %v1058, %v3086
    %vm3238 = vcmp.ge.f32.partialorder %v1061, %v3089
    %vm3239 = vcmp.ge.f32.partialorder %v1063, %v3092
    %vm3240 = vcmp.ge.f32.partialorder %v1066, %v3095
    %vm3241 = vcmp.ge.f32.partialorder %v1068, %v3098
    %vm3242 = vcmp.ge.f32.partialorder %v1071, %v3101
    %vm3243 = vcmp.ge.f32.partialorder %v1073, %v3104
    %vm3244 = vcmp.ge.f32.partialorder %v1076, %v3107
    %vm3245 = vcmp.ge.f32.partialorder %v1078, %v3110
    %vm3246 = vcmp.ge.f32.partialorder %v1081, %v3113
    %vm3247 = vcmp.ge.f32.partialorder %v1083, %v3116
    %vm3248 = vcmp.ge.f32.partialorder %v1086, %v3119
    %vm3249 = vcmp.ge.f32.partialorder %v1088, %v3122
    %vm3250 = vcmp.ge.f32.partialorder %v1091, %v3125
    %vm3251 = vcmp.ge.f32.partialorder %v1093, %v3128
    %vm3252 = vcmp.ge.f32.partialorder %v1096, %v3131
    %vm3253 = vcmp.ge.f32.partialorder %v1098, %v3134
    %vm3254 = vcmp.ge.f32.partialorder %v1101, %v3137
    %vm3255 = vcmp.ge.f32.partialorder %v1103, %v3140
    %vm3256 = vcmp.ge.f32.partialorder %v1106, %v3143
    %vm3257 = vcmp.ge.f32.partialorder %v1108, %v3146
    %vm3258 = vcmp.ge.f32.partialorder %v1111, %v3149
    %vm3259 = vcmp.ge.f32.partialorder %v1113, %v3152
    %vm3260 = vcmp.ge.f32.partialorder %v1116, %v3155
    %vm3261 = vcmp.ge.f32.partialorder %v1118, %v3158
    %vm3262 = vcmp.ge.f32.partialorder %v1121, %v3161
    %vm3263 = vcmp.ge.f32.partialorder %v1123, %v3164
    %vm3264 = vcmp.ge.f32.partialorder %v1126, %v3167
    %vm3265 = vcmp.ge.f32.partialorder %v1128, %v3170
    %vm3266 = vcmp.ge.f32.partialorder %v1131, %v3173
    %vm3267 = vcmp.ge.f32.partialorder %v1133, %v3176
    %vm3268 = vcmp.ge.f32.partialorder %v1136, %v3179
    %vm3269 = vcmp.ge.f32.partialorder %v1138, %v3182
    %vm3270 = vcmp.ge.f32.partialorder %v1141, %v3185
    %vm3271 = vcmp.ge.f32.partialorder %v1143, %v3188
    %vm3272 = vcmp.ge.f32.partialorder %v1146, %v3191
    %vm3273 = vcmp.ge.f32.partialorder %v1148, %v3194
    %vm3274 = vcmp.ge.f32.partialorder %v1151, %v3197
    %vm3275 = vcmp.ge.f32.partialorder %v1153, %v3200
    %vm3276 = vcmp.ge.f32.partialorder %v1156, %v3203
    %vm3277 = vcmp.ge.f32.partialorder %v1158, %v3206
    %vm3278 = vcmp.ge.f32.partialorder %v1161, %v3209
    %vm3279 = vcmp.ge.f32.partialorder %v1163, %v3212
    %v3280 = vsel %vm3216, %v3215, 5.0
    %v3281 = vsel %vm3217, %v3215, 5.0
    %v3282 = vsel %vm3218, %v3215, 5.0
    %v3283 = vsel %vm3219, %v3215, 5.0
    %v3284 = vsel %vm3220, %v3215, 5.0
    %v3285 = vsel %vm3221, %v3215, 5.0
    %v3286 = vsel %vm3222, %v3215, 5.0
    %v3287 = vsel %vm3223, %v3215, 5.0
    %v3288 = vsel %vm3224, %v3215, 5.0
    %v3289 = vsel %vm3225, %v3215, 5.0
    %v3290 = vsel %vm3226, %v3215, 5.0
    %v3291 = vsel %vm3227, %v3215, 5.0
    %v3292 = vsel %vm3228, %v3215, 5.0
    %v3293 = vsel %vm3229, %v3215, 5.0
    %v3294 = vsel %vm3230, %v3215, 5.0
    %v3295 = vsel %vm3231, %v3215, 5.0
    %v3296 = vsel %vm3232, %v3215, 5.0
    %v3297 = vsel %vm3233, %v3215, 5.0
    %v3298 = vsel %vm3234, %v3215, 5.0
    %v3299 = vsel %vm3235, %v3215, 5.0
    %v3300 = vsel %vm3236, %v3215, 5.0
    %v3301 = vsel %vm3237, %v3215, 5.0
    %v3302 = vsel %vm3238, %v3215, 5.0
    %v3303 = vsel %vm3239, %v3215, 5.0
    %v3304 = vsel %vm3240, %v3215, 5.0
    %v3305 = vsel %vm3241, %v3215, 5.0
    %v3306 = vsel %vm3242, %v3215, 5.0
    %v3307 = vsel %vm3243, %v3215, 5.0
    %v3308 = vsel %vm3244, %v3215, 5.0
    %v3309 = vsel %vm3245, %v3215, 5.0
    %v3310 = vsel %vm3246, %v3215, 5.0
    %v3311 = vsel %vm3247, %v3215, 5.0
    %v3312 = vsel %vm3248, %v3215, 5.0
    %v3313 = vsel %vm3249, %v3215, 5.0
    %v3314 = vsel %vm3250, %v3215, 5.0
    %v3315 = vsel %vm3251, %v3215, 5.0
    %v3316 = vsel %vm3252, %v3215, 5.0
    %v3317 = vsel %vm3253, %v3215, 5.0
    %v3318 = vsel %vm3254, %v3215, 5.0
    %v3319 = vsel %vm3255, %v3215, 5.0
    %v3320 = vsel %vm3256, %v3215, 5.0
    %v3321 = vsel %vm3257, %v3215, 5.0
    %v3322 = vsel %vm3258, %v3215, 5.0
    %v3323 = vsel %vm3259, %v3215, 5.0
    %v3324 = vsel %vm3260, %v3215, 5.0
    %v3325 = vsel %vm3261, %v3215, 5.0
    %v3326 = vsel %vm3262, %v3215, 5.0
    %v3327 = vsel %vm3263, %v3215, 5.0
    %v3328 = vsel %vm3264, %v3215, 5.0
    %v3329 = vsel %vm3265, %v3215, 5.0
    %v3330 = vsel %vm3266, %v3215, 5.0
    %v3331 = vsel %vm3267, %v3215, 5.0
    %v3332 = vsel %vm3268, %v3215, 5.0
    %v3333 = vsel %vm3269, %v3215, 5.0
    %v3334 = vsel %vm3270, %v3215, 5.0
    %v3335 = vsel %vm3271, %v3215, 5.0
    %v3336 = vsel %vm3272, %v3215, 5.0
    %v3337 = vsel %vm3273, %v3215, 5.0
    %v3338 = vsel %vm3274, %v3215, 5.0
    %v3339 = vsel %vm3275, %v3215, 5.0
    %v3340 = vsel %vm3276, %v3215, 5.0
    %v3341 = vsel %vm3277, %v3215, 5.0
    %v3342 = vsel %vm3278, %v3215, 5.0
    %v3343 = vsel %vm3279, %v3215, 5.0
    %v3344 = vsel %vm129, %v3280, inf
    %3345 = vmin.xlane.f32.xlu0 %v3344
    %v3346 = vpop.xlane.xlu0 %3345
    %v3347 = vsel %vm129, %v3281, inf
    %3348 = vmin.xlane.f32.xlu0 %v3347
    %v3349 = vpop.xlane.xlu0 %3348
    %v3350 = vsel %vm129, %v3282, inf
    %3351 = vmin.xlane.f32.xlu0 %v3350
    %v3352 = vpop.xlane.xlu0 %3351
    %v3353 = vsel %vm129, %v3283, inf
    %3354 = vmin.xlane.f32.xlu0 %v3353
    %v3355 = vpop.xlane.xlu0 %3354
    %v3356 = vsel %vm129, %v3284, inf
    %3357 = vmin.xlane.f32.xlu0 %v3356
    %v3358 = vpop.xlane.xlu0 %3357
    %v3359 = vsel %vm129, %v3285, inf
    %3360 = vmin.xlane.f32.xlu0 %v3359
    %v3361 = vpop.xlane.xlu0 %3360
    %v3362 = vsel %vm129, %v3286, inf
    %3363 = vmin.xlane.f32.xlu0 %v3362
    %v3364 = vpop.xlane.xlu0 %3363
    %v3365 = vsel %vm129, %v3287, inf
    %3366 = vmin.xlane.f32.xlu0 %v3365
    %v3367 = vpop.xlane.xlu0 %3366
    %v3368 = vsel %vm129, %v3288, inf
    %3369 = vmin.xlane.f32.xlu0 %v3368
    %v3370 = vpop.xlane.xlu0 %3369
    %v3371 = vsel %vm129, %v3289, inf
    %3372 = vmin.xlane.f32.xlu0 %v3371
    %v3373 = vpop.xlane.xlu0 %3372
    %v3374 = vsel %vm129, %v3290, inf
    %3375 = vmin.xlane.f32.xlu0 %v3374
    %v3376 = vpop.xlane.xlu0 %3375
    %v3377 = vsel %vm129, %v3291, inf
    %3378 = vmin.xlane.f32.xlu0 %v3377
    %v3379 = vpop.xlane.xlu0 %3378
    %v3380 = vsel %vm129, %v3292, inf
    %3381 = vmin.xlane.f32.xlu0 %v3380
    %v3382 = vpop.xlane.xlu0 %3381
    %v3383 = vsel %vm129, %v3293, inf
    %3384 = vmin.xlane.f32.xlu0 %v3383
    %v3385 = vpop.xlane.xlu0 %3384
    %v3386 = vsel %vm129, %v3294, inf
    %3387 = vmin.xlane.f32.xlu0 %v3386
    %v3388 = vpop.xlane.xlu0 %3387
    %v3389 = vsel %vm129, %v3295, inf
    %3390 = vmin.xlane.f32.xlu0 %v3389
    %v3391 = vpop.xlane.xlu0 %3390
    %v3392 = vsel %vm129, %v3296, inf
    %3393 = vmin.xlane.f32.xlu0 %v3392
    %v3394 = vpop.xlane.xlu0 %3393
    %v3395 = vsel %vm129, %v3297, inf
    %3396 = vmin.xlane.f32.xlu0 %v3395
    %v3397 = vpop.xlane.xlu0 %3396
    %v3398 = vsel %vm129, %v3298, inf
    %3399 = vmin.xlane.f32.xlu0 %v3398
    %v3400 = vpop.xlane.xlu0 %3399
    %v3401 = vsel %vm129, %v3299, inf
    %3402 = vmin.xlane.f32.xlu0 %v3401
    %v3403 = vpop.xlane.xlu0 %3402
    %v3404 = vsel %vm129, %v3300, inf
    %3405 = vmin.xlane.f32.xlu0 %v3404
    %v3406 = vpop.xlane.xlu0 %3405
    %v3407 = vsel %vm129, %v3301, inf
    %3408 = vmin.xlane.f32.xlu0 %v3407
    %v3409 = vpop.xlane.xlu0 %3408
    %v3410 = vsel %vm129, %v3302, inf
    %3411 = vmin.xlane.f32.xlu0 %v3410
    %v3412 = vpop.xlane.xlu0 %3411
    %v3413 = vsel %vm129, %v3303, inf
    %3414 = vmin.xlane.f32.xlu0 %v3413
    %v3415 = vpop.xlane.xlu0 %3414
    %v3416 = vsel %vm129, %v3304, inf
    %3417 = vmin.xlane.f32.xlu0 %v3416
    %v3418 = vpop.xlane.xlu0 %3417
    %v3419 = vsel %vm129, %v3305, inf
    %3420 = vmin.xlane.f32.xlu0 %v3419
    %v3421 = vpop.xlane.xlu0 %3420
    %v3422 = vsel %vm129, %v3306, inf
    %3423 = vmin.xlane.f32.xlu0 %v3422
    %v3424 = vpop.xlane.xlu0 %3423
    %v3425 = vsel %vm129, %v3307, inf
    %3426 = vmin.xlane.f32.xlu0 %v3425
    %v3427 = vpop.xlane.xlu0 %3426
    %v3428 = vsel %vm129, %v3308, inf
    %3429 = vmin.xlane.f32.xlu0 %v3428
    %v3430 = vpop.xlane.xlu0 %3429
    %v3431 = vsel %vm129, %v3309, inf
    %3432 = vmin.xlane.f32.xlu0 %v3431
    %v3433 = vpop.xlane.xlu0 %3432
    %v3434 = vsel %vm129, %v3310, inf
    %3435 = vmin.xlane.f32.xlu0 %v3434
    %v3436 = vpop.xlane.xlu0 %3435
    %v3437 = vsel %vm129, %v3311, inf
    %3438 = vmin.xlane.f32.xlu0 %v3437
    %v3439 = vpop.xlane.xlu0 %3438
    %v3440 = vsel %vm129, %v3312, inf
    %3441 = vmin.xlane.f32.xlu0 %v3440
    %v3442 = vpop.xlane.xlu0 %3441
    %v3443 = vsel %vm129, %v3313, inf
    %3444 = vmin.xlane.f32.xlu0 %v3443
    %v3445 = vpop.xlane.xlu0 %3444
    %v3446 = vsel %vm129, %v3314, inf
    %3447 = vmin.xlane.f32.xlu0 %v3446
    %v3448 = vpop.xlane.xlu0 %3447
    %v3449 = vsel %vm129, %v3315, inf
    %3450 = vmin.xlane.f32.xlu0 %v3449
    %v3451 = vpop.xlane.xlu0 %3450
    %v3452 = vsel %vm129, %v3316, inf
    %3453 = vmin.xlane.f32.xlu0 %v3452
    %v3454 = vpop.xlane.xlu0 %3453
    %v3455 = vsel %vm129, %v3317, inf
    %3456 = vmin.xlane.f32.xlu0 %v3455
    %v3457 = vpop.xlane.xlu0 %3456
    %v3458 = vsel %vm129, %v3318, inf
    %3459 = vmin.xlane.f32.xlu0 %v3458
    %v3460 = vpop.xlane.xlu0 %3459
    %v3461 = vsel %vm129, %v3319, inf
    %3462 = vmin.xlane.f32.xlu0 %v3461
    %v3463 = vpop.xlane.xlu0 %3462
    %v3464 = vsel %vm129, %v3320, inf
    %3465 = vmin.xlane.f32.xlu0 %v3464
    %v3466 = vpop.xlane.xlu0 %3465
    %v3467 = vsel %vm129, %v3321, inf
    %3468 = vmin.xlane.f32.xlu0 %v3467
    %v3469 = vpop.xlane.xlu0 %3468
    %v3470 = vsel %vm129, %v3322, inf
    %3471 = vmin.xlane.f32.xlu0 %v3470
    %v3472 = vpop.xlane.xlu0 %3471
    %v3473 = vsel %vm129, %v3323, inf
    %3474 = vmin.xlane.f32.xlu0 %v3473
    %v3475 = vpop.xlane.xlu0 %3474
    %v3476 = vsel %vm129, %v3324, inf
    %3477 = vmin.xlane.f32.xlu0 %v3476
    %v3478 = vpop.xlane.xlu0 %3477
    %v3479 = vsel %vm129, %v3325, inf
    %3480 = vmin.xlane.f32.xlu0 %v3479
    %v3481 = vpop.xlane.xlu0 %3480
    %v3482 = vsel %vm129, %v3326, inf
    %3483 = vmin.xlane.f32.xlu0 %v3482
    %v3484 = vpop.xlane.xlu0 %3483
    %v3485 = vsel %vm129, %v3327, inf
    %3486 = vmin.xlane.f32.xlu0 %v3485
    %v3487 = vpop.xlane.xlu0 %3486
    %v3488 = vsel %vm129, %v3328, inf
    %3489 = vmin.xlane.f32.xlu0 %v3488
    %v3490 = vpop.xlane.xlu0 %3489
    %v3491 = vsel %vm129, %v3329, inf
    %3492 = vmin.xlane.f32.xlu0 %v3491
    %v3493 = vpop.xlane.xlu0 %3492
    %v3494 = vsel %vm129, %v3330, inf
    %3495 = vmin.xlane.f32.xlu0 %v3494
    %v3496 = vpop.xlane.xlu0 %3495
    %v3497 = vsel %vm129, %v3331, inf
    %3498 = vmin.xlane.f32.xlu0 %v3497
    %v3499 = vpop.xlane.xlu0 %3498
    %v3500 = vsel %vm129, %v3332, inf
    %3501 = vmin.xlane.f32.xlu0 %v3500
    %v3502 = vpop.xlane.xlu0 %3501
    %v3503 = vsel %vm129, %v3333, inf
    %3504 = vmin.xlane.f32.xlu0 %v3503
    %v3505 = vpop.xlane.xlu0 %3504
    %v3506 = vsel %vm129, %v3334, inf
    %3507 = vmin.xlane.f32.xlu0 %v3506
    %v3508 = vpop.xlane.xlu0 %3507
    %v3509 = vsel %vm129, %v3335, inf
    %3510 = vmin.xlane.f32.xlu0 %v3509
    %v3511 = vpop.xlane.xlu0 %3510
    %v3512 = vsel %vm129, %v3336, inf
    %3513 = vmin.xlane.f32.xlu0 %v3512
    %v3514 = vpop.xlane.xlu0 %3513
    %v3515 = vsel %vm129, %v3337, inf
    %3516 = vmin.xlane.f32.xlu0 %v3515
    %v3517 = vpop.xlane.xlu0 %3516
    %v3518 = vsel %vm129, %v3338, inf
    %3519 = vmin.xlane.f32.xlu0 %v3518
    %v3520 = vpop.xlane.xlu0 %3519
    %v3521 = vsel %vm129, %v3339, inf
    %3522 = vmin.xlane.f32.xlu0 %v3521
    %v3523 = vpop.xlane.xlu0 %3522
    %v3524 = vsel %vm129, %v3340, inf
    %3525 = vmin.xlane.f32.xlu0 %v3524
    %v3526 = vpop.xlane.xlu0 %3525
    %v3527 = vsel %vm129, %v3341, inf
    %3528 = vmin.xlane.f32.xlu0 %v3527
    %v3529 = vpop.xlane.xlu0 %3528
    %v3530 = vsel %vm129, %v3342, inf
    %3531 = vmin.xlane.f32.xlu0 %v3530
    %v3532 = vpop.xlane.xlu0 %3531
    %v3533 = vsel %vm129, %v3343, inf
    %3534 = vmin.xlane.f32.xlu0 %v3533
    %v3535 = vpop.xlane.xlu0 %3534
    %3600 = vrot.lane.b32.xlu0 %v1006, 1
    %v3601 = vpop.permute.xlu0 %3600
    %3602 = vrot.lane.b32.xlu0 %v1008, 1
    %v3603 = vpop.permute.xlu0 %3602
    %3604 = vrot.lane.b32.xlu0 %v1011, 1
    %v3605 = vpop.permute.xlu0 %3604
    %3606 = vrot.lane.b32.xlu0 %v1013, 1
    %v3607 = vpop.permute.xlu0 %3606
    %3608 = vrot.lane.b32.xlu0 %v1016, 1
    %v3609 = vpop.permute.xlu0 %3608
    %3610 = vrot.lane.b32.xlu0 %v1018, 1
    %v3611 = vpop.permute.xlu0 %3610
    %3612 = vrot.lane.b32.xlu0 %v1021, 1
    %v3613 = vpop.permute.xlu0 %3612
    %3614 = vrot.lane.b32.xlu0 %v1023, 1
    %v3615 = vpop.permute.xlu0 %3614
    %3616 = vrot.lane.b32.xlu0 %v1026, 1
    %v3617 = vpop.permute.xlu0 %3616
    %3618 = vrot.lane.b32.xlu0 %v1028, 1
    %v3619 = vpop.permute.xlu0 %3618
    %3620 = vrot.lane.b32.xlu0 %v1031, 1
    %v3621 = vpop.permute.xlu0 %3620
    %3622 = vrot.lane.b32.xlu0 %v1033, 1
    %v3623 = vpop.permute.xlu0 %3622
    %3624 = vrot.lane.b32.xlu0 %v1036, 1
    %v3625 = vpop.permute.xlu0 %3624
    %3626 = vrot.lane.b32.xlu0 %v1038, 1
    %v3627 = vpop.permute.xlu0 %3626
    %3628 = vrot.lane.b32.xlu0 %v1041, 1
    %v3629 = vpop.permute.xlu0 %3628
    %3630 = vrot.lane.b32.xlu0 %v1043, 1
    %v3631 = vpop.permute.xlu0 %3630
    %3632 = vrot.lane.b32.xlu0 %v1046, 1
    %v3633 = vpop.permute.xlu0 %3632
    %3634 = vrot.lane.b32.xlu0 %v1048, 1
    %v3635 = vpop.permute.xlu0 %3634
    %3636 = vrot.lane.b32.xlu0 %v1051, 1
    %v3637 = vpop.permute.xlu0 %3636
    %3638 = vrot.lane.b32.xlu0 %v1053, 1
    %v3639 = vpop.permute.xlu0 %3638
    %3640 = vrot.lane.b32.xlu0 %v1056, 1
    %v3641 = vpop.permute.xlu0 %3640
    %3642 = vrot.lane.b32.xlu0 %v1058, 1
    %v3643 = vpop.permute.xlu0 %3642
    %3644 = vrot.lane.b32.xlu0 %v1061, 1
    %v3645 = vpop.permute.xlu0 %3644
    %3646 = vrot.lane.b32.xlu0 %v1063, 1
    %v3647 = vpop.permute.xlu0 %3646
    %3648 = vrot.lane.b32.xlu0 %v1066, 1
    %v3649 = vpop.permute.xlu0 %3648
    %3650 = vrot.lane.b32.xlu0 %v1068, 1
    %v3651 = vpop.permute.xlu0 %3650
    %3652 = vrot.lane.b32.xlu0 %v1071, 1
    %v3653 = vpop.permute.xlu0 %3652
    %3654 = vrot.lane.b32.xlu0 %v1073, 1
    %v3655 = vpop.permute.xlu0 %3654
    %3656 = vrot.lane.b32.xlu0 %v1076, 1
    %v3657 = vpop.permute.xlu0 %3656
    %3658 = vrot.lane.b32.xlu0 %v1078, 1
    %v3659 = vpop.permute.xlu0 %3658
    %3660 = vrot.lane.b32.xlu0 %v1081, 1
    %v3661 = vpop.permute.xlu0 %3660
    %3662 = vrot.lane.b32.xlu0 %v1083, 1
    %v3663 = vpop.permute.xlu0 %3662
    %3664 = vrot.lane.b32.xlu0 %v1086, 1
    %v3665 = vpop.permute.xlu0 %3664
    %3666 = vrot.lane.b32.xlu0 %v1088, 1
    %v3667 = vpop.permute.xlu0 %3666
    %3668 = vrot.lane.b32.xlu0 %v1091, 1
    %v3669 = vpop.permute.xlu0 %3668
    %3670 = vrot.lane.b32.xlu0 %v1093, 1
    %v3671 = vpop.permute.xlu0 %3670
    %3672 = vrot.lane.b32.xlu0 %v1096, 1
    %v3673 = vpop.permute.xlu0 %3672
    %3674 = vrot.lane.b32.xlu0 %v1098, 1
    %v3675 = vpop.permute.xlu0 %3674
    %3676 = vrot.lane.b32.xlu0 %v1101, 1
    %v3677 = vpop.permute.xlu0 %3676
    %3678 = vrot.lane.b32.xlu0 %v1103, 1
    %v3679 = vpop.permute.xlu0 %3678
    %3680 = vrot.lane.b32.xlu0 %v1106, 1
    %v3681 = vpop.permute.xlu0 %3680
    %3682 = vrot.lane.b32.xlu0 %v1108, 1
    %v3683 = vpop.permute.xlu0 %3682
    %3684 = vrot.lane.b32.xlu0 %v1111, 1
    %v3685 = vpop.permute.xlu0 %3684
    %3686 = vrot.lane.b32.xlu0 %v1113, 1
    %v3687 = vpop.permute.xlu0 %3686
    %3688 = vrot.lane.b32.xlu0 %v1116, 1
    %v3689 = vpop.permute.xlu0 %3688
    %3690 = vrot.lane.b32.xlu0 %v1118, 1
    %v3691 = vpop.permute.xlu0 %3690
    %3692 = vrot.lane.b32.xlu0 %v1121, 1
    %v3693 = vpop.permute.xlu0 %3692
    %3694 = vrot.lane.b32.xlu0 %v1123, 1
    %v3695 = vpop.permute.xlu0 %3694
    %3696 = vrot.lane.b32.xlu0 %v1126, 1
    %v3697 = vpop.permute.xlu0 %3696
    %3698 = vrot.lane.b32.xlu0 %v1128, 1
    %v3699 = vpop.permute.xlu0 %3698
    %3700 = vrot.lane.b32.xlu0 %v1131, 1
    %v3701 = vpop.permute.xlu0 %3700
    %3702 = vrot.lane.b32.xlu0 %v1133, 1
    %v3703 = vpop.permute.xlu0 %3702
    %3704 = vrot.lane.b32.xlu0 %v1136, 1
    %v3705 = vpop.permute.xlu0 %3704
    %3706 = vrot.lane.b32.xlu0 %v1138, 1
    %v3707 = vpop.permute.xlu0 %3706
    %3708 = vrot.lane.b32.xlu0 %v1141, 1
    %v3709 = vpop.permute.xlu0 %3708
    %3710 = vrot.lane.b32.xlu0 %v1143, 1
    %v3711 = vpop.permute.xlu0 %3710
    %3712 = vrot.lane.b32.xlu0 %v1146, 1
    %v3713 = vpop.permute.xlu0 %3712
    %3714 = vrot.lane.b32.xlu0 %v1148, 1
    %v3715 = vpop.permute.xlu0 %3714
    %3716 = vrot.lane.b32.xlu0 %v1151, 1
    %v3717 = vpop.permute.xlu0 %3716
    %3718 = vrot.lane.b32.xlu0 %v1153, 1
    %v3719 = vpop.permute.xlu0 %3718
    %3720 = vrot.lane.b32.xlu0 %v1156, 1
    %v3721 = vpop.permute.xlu0 %3720
    %3722 = vrot.lane.b32.xlu0 %v1158, 1
    %v3723 = vpop.permute.xlu0 %3722
    %3724 = vrot.lane.b32.xlu0 %v1161, 1
    %v3725 = vpop.permute.xlu0 %3724
    %3726 = vrot.lane.b32.xlu0 %v1163, 1
    %v3727 = vpop.permute.xlu0 %3726
    %v3792 = vsub.f32 %v1006, %v3601
    %v3793 = vsub.f32 %v1008, %v3603
    %v3794 = vsub.f32 %v1011, %v3605
    %v3795 = vsub.f32 %v1013, %v3607
    %v3796 = vsub.f32 %v1016, %v3609
    %v3797 = vsub.f32 %v1018, %v3611
    %v3798 = vsub.f32 %v1021, %v3613
    %v3799 = vsub.f32 %v1023, %v3615
    %v3800 = vsub.f32 %v1026, %v3617
    %v3801 = vsub.f32 %v1028, %v3619
    %v3802 = vsub.f32 %v1031, %v3621
    %v3803 = vsub.f32 %v1033, %v3623
    %v3804 = vsub.f32 %v1036, %v3625
    %v3805 = vsub.f32 %v1038, %v3627
    %v3806 = vsub.f32 %v1041, %v3629
    %v3807 = vsub.f32 %v1043, %v3631
    %v3808 = vsub.f32 %v1046, %v3633
    %v3809 = vsub.f32 %v1048, %v3635
    %v3810 = vsub.f32 %v1051, %v3637
    %v3811 = vsub.f32 %v1053, %v3639
    %v3812 = vsub.f32 %v1056, %v3641
    %v3813 = vsub.f32 %v1058, %v3643
    %v3814 = vsub.f32 %v1061, %v3645
    %v3815 = vsub.f32 %v1063, %v3647
    %v3816 = vsub.f32 %v1066, %v3649
    %v3817 = vsub.f32 %v1068, %v3651
    %v3818 = vsub.f32 %v1071, %v3653
    %v3819 = vsub.f32 %v1073, %v3655
    %v3820 = vsub.f32 %v1076, %v3657
    %v3821 = vsub.f32 %v1078, %v3659
    %v3822 = vsub.f32 %v1081, %v3661
    %v3823 = vsub.f32 %v1083, %v3663
    %v3824 = vsub.f32 %v1086, %v3665
    %v3825 = vsub.f32 %v1088, %v3667
    %v3826 = vsub.f32 %v1091, %v3669
    %v3827 = vsub.f32 %v1093, %v3671
    %v3828 = vsub.f32 %v1096, %v3673
    %v3829 = vsub.f32 %v1098, %v3675
    %v3830 = vsub.f32 %v1101, %v3677
    %v3831 = vsub.f32 %v1103, %v3679
    %v3832 = vsub.f32 %v1106, %v3681
    %v3833 = vsub.f32 %v1108, %v3683
    %v3834 = vsub.f32 %v1111, %v3685
    %v3835 = vsub.f32 %v1113, %v3687
    %v3836 = vsub.f32 %v1116, %v3689
    %v3837 = vsub.f32 %v1118, %v3691
    %v3838 = vsub.f32 %v1121, %v3693
    %v3839 = vsub.f32 %v1123, %v3695
    %v3840 = vsub.f32 %v1126, %v3697
    %v3841 = vsub.f32 %v1128, %v3699
    %v3842 = vsub.f32 %v1131, %v3701
    %v3843 = vsub.f32 %v1133, %v3703
    %v3844 = vsub.f32 %v1136, %v3705
    %v3845 = vsub.f32 %v1138, %v3707
    %v3846 = vsub.f32 %v1141, %v3709
    %v3847 = vsub.f32 %v1143, %v3711
    %v3848 = vsub.f32 %v1146, %v3713
    %v3849 = vsub.f32 %v1148, %v3715
    %v3850 = vsub.f32 %v1151, %v3717
    %v3851 = vsub.f32 %v1153, %v3719
    %v3852 = vsub.f32 %v1156, %v3721
    %v3853 = vsub.f32 %v1158, %v3723
    %v3854 = vsub.f32 %v1161, %v3725
    %v3855 = vsub.f32 %v1163, %v3727
    %v3856 = vsub.f32 0.0, %v3792
    %v3857 = vsub.f32 0.0, %v3793
    %v3858 = vsub.f32 0.0, %v3794
    %v3859 = vsub.f32 0.0, %v3795
    %v3860 = vsub.f32 0.0, %v3796
    %v3861 = vsub.f32 0.0, %v3797
    %v3862 = vsub.f32 0.0, %v3798
    %v3863 = vsub.f32 0.0, %v3799
    %v3864 = vsub.f32 0.0, %v3800
    %v3865 = vsub.f32 0.0, %v3801
    %v3866 = vsub.f32 0.0, %v3802
    %v3867 = vsub.f32 0.0, %v3803
    %v3868 = vsub.f32 0.0, %v3804
    %v3869 = vsub.f32 0.0, %v3805
    %v3870 = vsub.f32 0.0, %v3806
    %v3871 = vsub.f32 0.0, %v3807
    %v3872 = vsub.f32 0.0, %v3808
    %v3873 = vsub.f32 0.0, %v3809
    %v3874 = vsub.f32 0.0, %v3810
    %v3875 = vsub.f32 0.0, %v3811
    %v3876 = vsub.f32 0.0, %v3812
    %v3877 = vsub.f32 0.0, %v3813
    %v3878 = vsub.f32 0.0, %v3814
    %v3879 = vsub.f32 0.0, %v3815
    %v3880 = vsub.f32 0.0, %v3816
    %v3881 = vsub.f32 0.0, %v3817
    %v3882 = vsub.f32 0.0, %v3818
    %v3883 = vsub.f32 0.0, %v3819
    %v3884 = vsub.f32 0.0, %v3820
    %v3885 = vsub.f32 0.0, %v3821
    %v3886 = vsub.f32 0.0, %v3822
    %v3887 = vsub.f32 0.0, %v3823
    %v3888 = vsub.f32 0.0, %v3824
    %v3889 = vsub.f32 0.0, %v3825
    %v3890 = vsub.f32 0.0, %v3826
    %v3891 = vsub.f32 0.0, %v3827
    %v3892 = vsub.f32 0.0, %v3828
    %v3893 = vsub.f32 0.0, %v3829
    %v3894 = vsub.f32 0.0, %v3830
    %v3895 = vsub.f32 0.0, %v3831
    %v3896 = vsub.f32 0.0, %v3832
    %v3897 = vsub.f32 0.0, %v3833
    %v3898 = vsub.f32 0.0, %v3834
    %v3899 = vsub.f32 0.0, %v3835
    %v3900 = vsub.f32 0.0, %v3836
    %v3901 = vsub.f32 0.0, %v3837
    %v3902 = vsub.f32 0.0, %v3838
    %v3903 = vsub.f32 0.0, %v3839
    %v3904 = vsub.f32 0.0, %v3840
    %v3905 = vsub.f32 0.0, %v3841
    %v3906 = vsub.f32 0.0, %v3842
    %v3907 = vsub.f32 0.0, %v3843
    %v3908 = vsub.f32 0.0, %v3844
    %v3909 = vsub.f32 0.0, %v3845
    %v3910 = vsub.f32 0.0, %v3846
    %v3911 = vsub.f32 0.0, %v3847
    %v3912 = vsub.f32 0.0, %v3848
    %v3913 = vsub.f32 0.0, %v3849
    %v3914 = vsub.f32 0.0, %v3850
    %v3915 = vsub.f32 0.0, %v3851
    %v3916 = vsub.f32 0.0, %v3852
    %v3917 = vsub.f32 0.0, %v3853
    %v3918 = vsub.f32 0.0, %v3854
    %v3919 = vsub.f32 0.0, %v3855
    %v3920 = vmul.f32 %v3856, 1.442695
    %v3921 = vpow.pop %v3920
    %v3922 = vmul.f32 %v3857, 1.442695
    %v3923 = vpow.pop %v3922
    %v3924 = vmul.f32 %v3858, 1.442695
    %v3925 = vpow.pop %v3924
    %v3926 = vmul.f32 %v3859, 1.442695
    %v3927 = vpow.pop %v3926
    %v3928 = vmul.f32 %v3860, 1.442695
    %v3929 = vpow.pop %v3928
    %v3930 = vmul.f32 %v3861, 1.442695
    %v3931 = vpow.pop %v3930
    %v3932 = vmul.f32 %v3862, 1.442695
    %v3933 = vpow.pop %v3932
    %v3934 = vmul.f32 %v3863, 1.442695
    %v3935 = vpow.pop %v3934
    %v3936 = vmul.f32 %v3864, 1.442695
    %v3937 = vpow.pop %v3936
    %v3938 = vmul.f32 %v3865, 1.442695
    %v3939 = vpow.pop %v3938
    %v3940 = vmul.f32 %v3866, 1.442695
    %v3941 = vpow.pop %v3940
    %v3942 = vmul.f32 %v3867, 1.442695
    %v3943 = vpow.pop %v3942
    %v3944 = vmul.f32 %v3868, 1.442695
    %v3945 = vpow.pop %v3944
    %v3946 = vmul.f32 %v3869, 1.442695
    %v3947 = vpow.pop %v3946
    %v3948 = vmul.f32 %v3870, 1.442695
    %v3949 = vpow.pop %v3948
    %v3950 = vmul.f32 %v3871, 1.442695
    %v3951 = vpow.pop %v3950
    %v3952 = vmul.f32 %v3872, 1.442695
    %v3953 = vpow.pop %v3952
    %v3954 = vmul.f32 %v3873, 1.442695
    %v3955 = vpow.pop %v3954
    %v3956 = vmul.f32 %v3874, 1.442695
    %v3957 = vpow.pop %v3956
    %v3958 = vmul.f32 %v3875, 1.442695
    %v3959 = vpow.pop %v3958
    %v3960 = vmul.f32 %v3876, 1.442695
    %v3961 = vpow.pop %v3960
    %v3962 = vmul.f32 %v3877, 1.442695
    %v3963 = vpow.pop %v3962
    %v3964 = vmul.f32 %v3878, 1.442695
    %v3965 = vpow.pop %v3964
    %v3966 = vmul.f32 %v3879, 1.442695
    %v3967 = vpow.pop %v3966
    %v3968 = vmul.f32 %v3880, 1.442695
    %v3969 = vpow.pop %v3968
    %v3970 = vmul.f32 %v3881, 1.442695
    %v3971 = vpow.pop %v3970
    %v3972 = vmul.f32 %v3882, 1.442695
    %v3973 = vpow.pop %v3972
    %v3974 = vmul.f32 %v3883, 1.442695
    %v3975 = vpow.pop %v3974
    %v3976 = vmul.f32 %v3884, 1.442695
    %v3977 = vpow.pop %v3976
    %v3978 = vmul.f32 %v3885, 1.442695
    %v3979 = vpow.pop %v3978
    %v3980 = vmul.f32 %v3886, 1.442695
    %v3981 = vpow.pop %v3980
    %v3982 = vmul.f32 %v3887, 1.442695
    %v3983 = vpow.pop %v3982
    %v3984 = vmul.f32 %v3888, 1.442695
    %v3985 = vpow.pop %v3984
    %v3986 = vmul.f32 %v3889, 1.442695
    %v3987 = vpow.pop %v3986
    %v3988 = vmul.f32 %v3890, 1.442695
    %v3989 = vpow.pop %v3988
    %v3990 = vmul.f32 %v3891, 1.442695
    %v3991 = vpow.pop %v3990
    %v3992 = vmul.f32 %v3892, 1.442695
    %v3993 = vpow.pop %v3992
    %v3994 = vmul.f32 %v3893, 1.442695
    %v3995 = vpow.pop %v3994
    %v3996 = vmul.f32 %v3894, 1.442695
    %v3997 = vpow.pop %v3996
    %v3998 = vmul.f32 %v3895, 1.442695
    %v3999 = vpow.pop %v3998
    %v4000 = vmul.f32 %v3896, 1.442695
    %v4001 = vpow.pop %v4000
    %v4002 = vmul.f32 %v3897, 1.442695
    %v4003 = vpow.pop %v4002
    %v4004 = vmul.f32 %v3898, 1.442695
    %v4005 = vpow.pop %v4004
    %v4006 = vmul.f32 %v3899, 1.442695
    %v4007 = vpow.pop %v4006
    %v4008 = vmul.f32 %v3900, 1.442695
    %v4009 = vpow.pop %v4008
    %v4010 = vmul.f32 %v3901, 1.442695
    %v4011 = vpow.pop %v4010
    %v4012 = vmul.f32 %v3902, 1.442695
    %v4013 = vpow.pop %v4012
    %v4014 = vmul.f32 %v3903, 1.442695
    %v4015 = vpow.pop %v4014
    %v4016 = vmul.f32 %v3904, 1.442695
    %v4017 = vpow.pop %v4016
    %v4018 = vmul.f32 %v3905, 1.442695
    %v4019 = vpow.pop %v4018
    %v4020 = vmul.f32 %v3906, 1.442695
    %v4021 = vpow.pop %v4020
    %v4022 = vmul.f32 %v3907, 1.442695
    %v4023 = vpow.pop %v4022
    %v4024 = vmul.f32 %v3908, 1.442695
    %v4025 = vpow.pop %v4024
    %v4026 = vmul.f32 %v3909, 1.442695
    %v4027 = vpow.pop %v4026
    %v4028 = vmul.f32 %v3910, 1.442695
    %v4029 = vpow.pop %v4028
    %v4030 = vmul.f32 %v3911, 1.442695
    %v4031 = vpow.pop %v4030
    %v4032 = vmul.f32 %v3912, 1.442695
    %v4033 = vpow.pop %v4032
    %v4034 = vmul.f32 %v3913, 1.442695
    %v4035 = vpow.pop %v4034
    %v4036 = vmul.f32 %v3914, 1.442695
    %v4037 = vpow.pop %v4036
    %v4038 = vmul.f32 %v3915, 1.442695
    %v4039 = vpow.pop %v4038
    %v4040 = vmul.f32 %v3916, 1.442695
    %v4041 = vpow.pop %v4040
    %v4042 = vmul.f32 %v3917, 1.442695
    %v4043 = vpow.pop %v4042
    %v4044 = vmul.f32 %v3918, 1.442695
    %v4045 = vpow.pop %v4044
    %v4046 = vmul.f32 %v3919, 1.442695
    %v4047 = vpow.pop %v4046
    %v4048 = vadd.f32 %v3921, 1.0
    %v4049 = vadd.f32 %v3923, 1.0
    %v4050 = vadd.f32 %v3925, 1.0
    %v4051 = vadd.f32 %v3927, 1.0
    %v4052 = vadd.f32 %v3929, 1.0
    %v4053 = vadd.f32 %v3931, 1.0
    %v4054 = vadd.f32 %v3933, 1.0
    %v4055 = vadd.f32 %v3935, 1.0
    %v4056 = vadd.f32 %v3937, 1.0
    %v4057 = vadd.f32 %v3939, 1.0
    %v4058 = vadd.f32 %v3941, 1.0
    %v4059 = vadd.f32 %v3943, 1.0
    %v4060 = vadd.f32 %v3945, 1.0
    %v4061 = vadd.f32 %v3947, 1.0
    %v4062 = vadd.f32 %v3949, 1.0
    %v4063 = vadd.f32 %v3951, 1.0
    %v4064 = vadd.f32 %v3953, 1.0
    %v4065 = vadd.f32 %v3955, 1.0
    %v4066 = vadd.f32 %v3957, 1.0
    %v4067 = vadd.f32 %v3959, 1.0
    %v4068 = vadd.f32 %v3961, 1.0
    %v4069 = vadd.f32 %v3963, 1.0
    %v4070 = vadd.f32 %v3965, 1.0
    %v4071 = vadd.f32 %v3967, 1.0
    %v4072 = vadd.f32 %v3969, 1.0
    %v4073 = vadd.f32 %v3971, 1.0
    %v4074 = vadd.f32 %v3973, 1.0
    %v4075 = vadd.f32 %v3975, 1.0
    %v4076 = vadd.f32 %v3977, 1.0
    %v4077 = vadd.f32 %v3979, 1.0
    %v4078 = vadd.f32 %v3981, 1.0
    %v4079 = vadd.f32 %v3983, 1.0
    %v4080 = vadd.f32 %v3985, 1.0
    %v4081 = vadd.f32 %v3987, 1.0
    %v4082 = vadd.f32 %v3989, 1.0
    %v4083 = vadd.f32 %v3991, 1.0
    %v4084 = vadd.f32 %v3993, 1.0
    %v4085 = vadd.f32 %v3995, 1.0
    %v4086 = vadd.f32 %v3997, 1.0
    %v4087 = vadd.f32 %v3999, 1.0
    %v4088 = vadd.f32 %v4001, 1.0
    %v4089 = vadd.f32 %v4003, 1.0
    %v4090 = vadd.f32 %v4005, 1.0
    %v4091 = vadd.f32 %v4007, 1.0
    %v4092 = vadd.f32 %v4009, 1.0
    %v4093 = vadd.f32 %v4011, 1.0
    %v4094 = vadd.f32 %v4013, 1.0
    %v4095 = vadd.f32 %v4015, 1.0
    %v4096 = vadd.f32 %v4017, 1.0
    %v4097 = vadd.f32 %v4019, 1.0
    %v4098 = vadd.f32 %v4021, 1.0
    %v4099 = vadd.f32 %v4023, 1.0
    %v4100 = vadd.f32 %v4025, 1.0
    %v4101 = vadd.f32 %v4027, 1.0
    %v4102 = vadd.f32 %v4029, 1.0
    %v4103 = vadd.f32 %v4031, 1.0
    %v4104 = vadd.f32 %v4033, 1.0
    %v4105 = vadd.f32 %v4035, 1.0
    %v4106 = vadd.f32 %v4037, 1.0
    %v4107 = vadd.f32 %v4039, 1.0
    %v4108 = vadd.f32 %v4041, 1.0
    %v4109 = vadd.f32 %v4043, 1.0
    %v4110 = vadd.f32 %v4045, 1.0
    %v4111 = vadd.f32 %v4047, 1.0
    %v4112 = vrcp.pop %v4048
    %v4113 = vmul.f32 %v4048, %v4112
    %v4114 = vsub.f32 1.0, %v4113
    %v4115 = vmul.f32 %v4112, %v4114
    %v4116 = vadd.f32 %v4112, %v4115
    %vm4117 = vweird.f32 %v4048
    %vm4118 = vweird.f32 %v4112
    %vm4119 = vmor %vm4117, %vm4118
    %v4120 = vsel %vm4119, %v4112, %v4116
    %v4121 = vand.u32 2147483647, %v4048
    %vm4122 = vcmp.eq.f32.partialorder %v4121, 8.507059e+37
    %v4123 = vand.u32 %v4048, 2147483648
    %v4124 = vor.u32 1.1754944e-38, %v4123
    %v4125 = vsel %vm4122, %v4124, %v4120
    %v4126 = vmul.f32 1.0, %v4125
    %v4127 = vrcp.pop %v4049
    %v4128 = vmul.f32 %v4049, %v4127
    %v4129 = vsub.f32 1.0, %v4128
    %v4130 = vmul.f32 %v4127, %v4129
    %v4131 = vadd.f32 %v4127, %v4130
    %vm4132 = vweird.f32 %v4049
    %vm4133 = vweird.f32 %v4127
    %vm4134 = vmor %vm4132, %vm4133
    %v4135 = vsel %vm4134, %v4127, %v4131
    %v4136 = vand.u32 2147483647, %v4049
    %vm4137 = vcmp.eq.f32.partialorder %v4136, 8.507059e+37
    %v4138 = vand.u32 %v4049, 2147483648
    %v4139 = vor.u32 1.1754944e-38, %v4138
    %v4140 = vsel %vm4137, %v4139, %v4135
    %v4141 = vmul.f32 1.0, %v4140
    %v4142 = vrcp.pop %v4050
    %v4143 = vmul.f32 %v4050, %v4142
    %v4144 = vsub.f32 1.0, %v4143
    %v4145 = vmul.f32 %v4142, %v4144
    %v4146 = vadd.f32 %v4142, %v4145
    %vm4147 = vweird.f32 %v4050
    %vm4148 = vweird.f32 %v4142
    %vm4149 = vmor %vm4147, %vm4148
    %v4150 = vsel %vm4149, %v4142, %v4146
    %v4151 = vand.u32 2147483647, %v4050
    %vm4152 = vcmp.eq.f32.partialorder %v4151, 8.507059e+37
    %v4153 = vand.u32 %v4050, 2147483648
    %v4154 = vor.u32 1.1754944e-38, %v4153
    %v4155 = vsel %vm4152, %v4154, %v4150
    %v4156 = vmul.f32 1.0, %v4155
    %v4157 = vrcp.pop %v4051
    %v4158 = vmul.f32 %v4051, %v4157
    %v4159 = vsub.f32 1.0, %v4158
    %v4160 = vmul.f32 %v4157, %v4159
    %v4161 = vadd.f32 %v4157, %v4160
    %vm4162 = vweird.f32 %v4051
    %vm4163 = vweird.f32 %v4157
    %vm4164 = vmor %vm4162, %vm4163
    %v4165 = vsel %vm4164, %v4157, %v4161
    %v4166 = vand.u32 2147483647, %v4051
    %vm4167 = vcmp.eq.f32.partialorder %v4166, 8.507059e+37
    %v4168 = vand.u32 %v4051, 2147483648
    %v4169 = vor.u32 1.1754944e-38, %v4168
    %v4170 = vsel %vm4167, %v4169, %v4165
    %v4171 = vmul.f32 1.0, %v4170
    %v4172 = vrcp.pop %v4052
    %v4173 = vmul.f32 %v4052, %v4172
    %v4174 = vsub.f32 1.0, %v4173
    %v4175 = vmul.f32 %v4172, %v4174
    %v4176 = vadd.f32 %v4172, %v4175
    %vm4177 = vweird.f32 %v4052
    %vm4178 = vweird.f32 %v4172
    %vm4179 = vmor %vm4177, %vm4178
    %v4180 = vsel %vm4179, %v4172, %v4176
    %v4181 = vand.u32 2147483647, %v4052
    %vm4182 = vcmp.eq.f32.partialorder %v4181, 8.507059e+37
    %v4183 = vand.u32 %v4052, 2147483648
    %v4184 = vor.u32 1.1754944e-38, %v4183
    %v4185 = vsel %vm4182, %v4184, %v4180
    %v4186 = vmul.f32 1.0, %v4185
    %v4187 = vrcp.pop %v4053
    %v4188 = vmul.f32 %v4053, %v4187
    %v4189 = vsub.f32 1.0, %v4188
    %v4190 = vmul.f32 %v4187, %v4189
    %v4191 = vadd.f32 %v4187, %v4190
    %vm4192 = vweird.f32 %v4053
    %vm4193 = vweird.f32 %v4187
    %vm4194 = vmor %vm4192, %vm4193
    %v4195 = vsel %vm4194, %v4187, %v4191
    %v4196 = vand.u32 2147483647, %v4053
    %vm4197 = vcmp.eq.f32.partialorder %v4196, 8.507059e+37
    %v4198 = vand.u32 %v4053, 2147483648
    %v4199 = vor.u32 1.1754944e-38, %v4198
    %v4200 = vsel %vm4197, %v4199, %v4195
    %v4201 = vmul.f32 1.0, %v4200
    %v4202 = vrcp.pop %v4054
    %v4203 = vmul.f32 %v4054, %v4202
    %v4204 = vsub.f32 1.0, %v4203
    %v4205 = vmul.f32 %v4202, %v4204
    %v4206 = vadd.f32 %v4202, %v4205
    %vm4207 = vweird.f32 %v4054
    %vm4208 = vweird.f32 %v4202
    %vm4209 = vmor %vm4207, %vm4208
    %v4210 = vsel %vm4209, %v4202, %v4206
    %v4211 = vand.u32 2147483647, %v4054
    %vm4212 = vcmp.eq.f32.partialorder %v4211, 8.507059e+37
    %v4213 = vand.u32 %v4054, 2147483648
    %v4214 = vor.u32 1.1754944e-38, %v4213
    %v4215 = vsel %vm4212, %v4214, %v4210
    %v4216 = vmul.f32 1.0, %v4215
    %v4217 = vrcp.pop %v4055
    %v4218 = vmul.f32 %v4055, %v4217
    %v4219 = vsub.f32 1.0, %v4218
    %v4220 = vmul.f32 %v4217, %v4219
    %v4221 = vadd.f32 %v4217, %v4220
    %vm4222 = vweird.f32 %v4055
    %vm4223 = vweird.f32 %v4217
    %vm4224 = vmor %vm4222, %vm4223
    %v4225 = vsel %vm4224, %v4217, %v4221
    %v4226 = vand.u32 2147483647, %v4055
    %vm4227 = vcmp.eq.f32.partialorder %v4226, 8.507059e+37
    %v4228 = vand.u32 %v4055, 2147483648
    %v4229 = vor.u32 1.1754944e-38, %v4228
    %v4230 = vsel %vm4227, %v4229, %v4225
    %v4231 = vmul.f32 1.0, %v4230
    %v4232 = vrcp.pop %v4056
    %v4233 = vmul.f32 %v4056, %v4232
    %v4234 = vsub.f32 1.0, %v4233
    %v4235 = vmul.f32 %v4232, %v4234
    %v4236 = vadd.f32 %v4232, %v4235
    %vm4237 = vweird.f32 %v4056
    %vm4238 = vweird.f32 %v4232
    %vm4239 = vmor %vm4237, %vm4238
    %v4240 = vsel %vm4239, %v4232, %v4236
    %v4241 = vand.u32 2147483647, %v4056
    %vm4242 = vcmp.eq.f32.partialorder %v4241, 8.507059e+37
    %v4243 = vand.u32 %v4056, 2147483648
    %v4244 = vor.u32 1.1754944e-38, %v4243
    %v4245 = vsel %vm4242, %v4244, %v4240
    %v4246 = vmul.f32 1.0, %v4245
    %v4247 = vrcp.pop %v4057
    %v4248 = vmul.f32 %v4057, %v4247
    %v4249 = vsub.f32 1.0, %v4248
    %v4250 = vmul.f32 %v4247, %v4249
    %v4251 = vadd.f32 %v4247, %v4250
    %vm4252 = vweird.f32 %v4057
    %vm4253 = vweird.f32 %v4247
    %vm4254 = vmor %vm4252, %vm4253
    %v4255 = vsel %vm4254, %v4247, %v4251
    %v4256 = vand.u32 2147483647, %v4057
    %vm4257 = vcmp.eq.f32.partialorder %v4256, 8.507059e+37
    %v4258 = vand.u32 %v4057, 2147483648
    %v4259 = vor.u32 1.1754944e-38, %v4258
    %v4260 = vsel %vm4257, %v4259, %v4255
    %v4261 = vmul.f32 1.0, %v4260
    %v4262 = vrcp.pop %v4058
    %v4263 = vmul.f32 %v4058, %v4262
    %v4264 = vsub.f32 1.0, %v4263
    %v4265 = vmul.f32 %v4262, %v4264
    %v4266 = vadd.f32 %v4262, %v4265
    %vm4267 = vweird.f32 %v4058
    %vm4268 = vweird.f32 %v4262
    %vm4269 = vmor %vm4267, %vm4268
    %v4270 = vsel %vm4269, %v4262, %v4266
    %v4271 = vand.u32 2147483647, %v4058
    %vm4272 = vcmp.eq.f32.partialorder %v4271, 8.507059e+37
    %v4273 = vand.u32 %v4058, 2147483648
    %v4274 = vor.u32 1.1754944e-38, %v4273
    %v4275 = vsel %vm4272, %v4274, %v4270
    %v4276 = vmul.f32 1.0, %v4275
    %v4277 = vrcp.pop %v4059
    %v4278 = vmul.f32 %v4059, %v4277
    %v4279 = vsub.f32 1.0, %v4278
    %v4280 = vmul.f32 %v4277, %v4279
    %v4281 = vadd.f32 %v4277, %v4280
    %vm4282 = vweird.f32 %v4059
    %vm4283 = vweird.f32 %v4277
    %vm4284 = vmor %vm4282, %vm4283
    %v4285 = vsel %vm4284, %v4277, %v4281
    %v4286 = vand.u32 2147483647, %v4059
    %vm4287 = vcmp.eq.f32.partialorder %v4286, 8.507059e+37
    %v4288 = vand.u32 %v4059, 2147483648
    %v4289 = vor.u32 1.1754944e-38, %v4288
    %v4290 = vsel %vm4287, %v4289, %v4285
    %v4291 = vmul.f32 1.0, %v4290
    %v4292 = vrcp.pop %v4060
    %v4293 = vmul.f32 %v4060, %v4292
    %v4294 = vsub.f32 1.0, %v4293
    %v4295 = vmul.f32 %v4292, %v4294
    %v4296 = vadd.f32 %v4292, %v4295
    %vm4297 = vweird.f32 %v4060
    %vm4298 = vweird.f32 %v4292
    %vm4299 = vmor %vm4297, %vm4298
    %v4300 = vsel %vm4299, %v4292, %v4296
    %v4301 = vand.u32 2147483647, %v4060
    %vm4302 = vcmp.eq.f32.partialorder %v4301, 8.507059e+37
    %v4303 = vand.u32 %v4060, 2147483648
    %v4304 = vor.u32 1.1754944e-38, %v4303
    %v4305 = vsel %vm4302, %v4304, %v4300
    %v4306 = vmul.f32 1.0, %v4305
    %v4307 = vrcp.pop %v4061
    %v4308 = vmul.f32 %v4061, %v4307
    %v4309 = vsub.f32 1.0, %v4308
    %v4310 = vmul.f32 %v4307, %v4309
    %v4311 = vadd.f32 %v4307, %v4310
    %vm4312 = vweird.f32 %v4061
    %vm4313 = vweird.f32 %v4307
    %vm4314 = vmor %vm4312, %vm4313
    %v4315 = vsel %vm4314, %v4307, %v4311
    %v4316 = vand.u32 2147483647, %v4061
    %vm4317 = vcmp.eq.f32.partialorder %v4316, 8.507059e+37
    %v4318 = vand.u32 %v4061, 2147483648
    %v4319 = vor.u32 1.1754944e-38, %v4318
    %v4320 = vsel %vm4317, %v4319, %v4315
    %v4321 = vmul.f32 1.0, %v4320
    %v4322 = vrcp.pop %v4062
    %v4323 = vmul.f32 %v4062, %v4322
    %v4324 = vsub.f32 1.0, %v4323
    %v4325 = vmul.f32 %v4322, %v4324
    %v4326 = vadd.f32 %v4322, %v4325
    %vm4327 = vweird.f32 %v4062
    %vm4328 = vweird.f32 %v4322
    %vm4329 = vmor %vm4327, %vm4328
    %v4330 = vsel %vm4329, %v4322, %v4326
    %v4331 = vand.u32 2147483647, %v4062
    %vm4332 = vcmp.eq.f32.partialorder %v4331, 8.507059e+37
    %v4333 = vand.u32 %v4062, 2147483648
    %v4334 = vor.u32 1.1754944e-38, %v4333
    %v4335 = vsel %vm4332, %v4334, %v4330
    %v4336 = vmul.f32 1.0, %v4335
    %v4337 = vrcp.pop %v4063
    %v4338 = vmul.f32 %v4063, %v4337
    %v4339 = vsub.f32 1.0, %v4338
    %v4340 = vmul.f32 %v4337, %v4339
    %v4341 = vadd.f32 %v4337, %v4340
    %vm4342 = vweird.f32 %v4063
    %vm4343 = vweird.f32 %v4337
    %vm4344 = vmor %vm4342, %vm4343
    %v4345 = vsel %vm4344, %v4337, %v4341
    %v4346 = vand.u32 2147483647, %v4063
    %vm4347 = vcmp.eq.f32.partialorder %v4346, 8.507059e+37
    %v4348 = vand.u32 %v4063, 2147483648
    %v4349 = vor.u32 1.1754944e-38, %v4348
    %v4350 = vsel %vm4347, %v4349, %v4345
    %v4351 = vmul.f32 1.0, %v4350
    %v4352 = vrcp.pop %v4064
    %v4353 = vmul.f32 %v4064, %v4352
    %v4354 = vsub.f32 1.0, %v4353
    %v4355 = vmul.f32 %v4352, %v4354
    %v4356 = vadd.f32 %v4352, %v4355
    %vm4357 = vweird.f32 %v4064
    %vm4358 = vweird.f32 %v4352
    %vm4359 = vmor %vm4357, %vm4358
    %v4360 = vsel %vm4359, %v4352, %v4356
    %v4361 = vand.u32 2147483647, %v4064
    %vm4362 = vcmp.eq.f32.partialorder %v4361, 8.507059e+37
    %v4363 = vand.u32 %v4064, 2147483648
    %v4364 = vor.u32 1.1754944e-38, %v4363
    %v4365 = vsel %vm4362, %v4364, %v4360
    %v4366 = vmul.f32 1.0, %v4365
    %v4367 = vrcp.pop %v4065
    %v4368 = vmul.f32 %v4065, %v4367
    %v4369 = vsub.f32 1.0, %v4368
    %v4370 = vmul.f32 %v4367, %v4369
    %v4371 = vadd.f32 %v4367, %v4370
    %vm4372 = vweird.f32 %v4065
    %vm4373 = vweird.f32 %v4367
    %vm4374 = vmor %vm4372, %vm4373
    %v4375 = vsel %vm4374, %v4367, %v4371
    %v4376 = vand.u32 2147483647, %v4065
    %vm4377 = vcmp.eq.f32.partialorder %v4376, 8.507059e+37
    %v4378 = vand.u32 %v4065, 2147483648
    %v4379 = vor.u32 1.1754944e-38, %v4378
    %v4380 = vsel %vm4377, %v4379, %v4375
    %v4381 = vmul.f32 1.0, %v4380
    %v4382 = vrcp.pop %v4066
    %v4383 = vmul.f32 %v4066, %v4382
    %v4384 = vsub.f32 1.0, %v4383
    %v4385 = vmul.f32 %v4382, %v4384
    %v4386 = vadd.f32 %v4382, %v4385
    %vm4387 = vweird.f32 %v4066
    %vm4388 = vweird.f32 %v4382
    %vm4389 = vmor %vm4387, %vm4388
    %v4390 = vsel %vm4389, %v4382, %v4386
    %v4391 = vand.u32 2147483647, %v4066
    %vm4392 = vcmp.eq.f32.partialorder %v4391, 8.507059e+37
    %v4393 = vand.u32 %v4066, 2147483648
    %v4394 = vor.u32 1.1754944e-38, %v4393
    %v4395 = vsel %vm4392, %v4394, %v4390
    %v4396 = vmul.f32 1.0, %v4395
    %v4397 = vrcp.pop %v4067
    %v4398 = vmul.f32 %v4067, %v4397
    %v4399 = vsub.f32 1.0, %v4398
    %v4400 = vmul.f32 %v4397, %v4399
    %v4401 = vadd.f32 %v4397, %v4400
    %vm4402 = vweird.f32 %v4067
    %vm4403 = vweird.f32 %v4397
    %vm4404 = vmor %vm4402, %vm4403
    %v4405 = vsel %vm4404, %v4397, %v4401
    %v4406 = vand.u32 2147483647, %v4067
    %vm4407 = vcmp.eq.f32.partialorder %v4406, 8.507059e+37
    %v4408 = vand.u32 %v4067, 2147483648
    %v4409 = vor.u32 1.1754944e-38, %v4408
    %v4410 = vsel %vm4407, %v4409, %v4405
    %v4411 = vmul.f32 1.0, %v4410
    %v4412 = vrcp.pop %v4068
    %v4413 = vmul.f32 %v4068, %v4412
    %v4414 = vsub.f32 1.0, %v4413
    %v4415 = vmul.f32 %v4412, %v4414
    %v4416 = vadd.f32 %v4412, %v4415
    %vm4417 = vweird.f32 %v4068
    %vm4418 = vweird.f32 %v4412
    %vm4419 = vmor %vm4417, %vm4418
    %v4420 = vsel %vm4419, %v4412, %v4416
    %v4421 = vand.u32 2147483647, %v4068
    %vm4422 = vcmp.eq.f32.partialorder %v4421, 8.507059e+37
    %v4423 = vand.u32 %v4068, 2147483648
    %v4424 = vor.u32 1.1754944e-38, %v4423
    %v4425 = vsel %vm4422, %v4424, %v4420
    %v4426 = vmul.f32 1.0, %v4425
    %v4427 = vrcp.pop %v4069
    %v4428 = vmul.f32 %v4069, %v4427
    %v4429 = vsub.f32 1.0, %v4428
    %v4430 = vmul.f32 %v4427, %v4429
    %v4431 = vadd.f32 %v4427, %v4430
    %vm4432 = vweird.f32 %v4069
    %vm4433 = vweird.f32 %v4427
    %vm4434 = vmor %vm4432, %vm4433
    %v4435 = vsel %vm4434, %v4427, %v4431
    %v4436 = vand.u32 2147483647, %v4069
    %vm4437 = vcmp.eq.f32.partialorder %v4436, 8.507059e+37
    %v4438 = vand.u32 %v4069, 2147483648
    %v4439 = vor.u32 1.1754944e-38, %v4438
    %v4440 = vsel %vm4437, %v4439, %v4435
    %v4441 = vmul.f32 1.0, %v4440
    %v4442 = vrcp.pop %v4070
    %v4443 = vmul.f32 %v4070, %v4442
    %v4444 = vsub.f32 1.0, %v4443
    %v4445 = vmul.f32 %v4442, %v4444
    %v4446 = vadd.f32 %v4442, %v4445
    %vm4447 = vweird.f32 %v4070
    %vm4448 = vweird.f32 %v4442
    %vm4449 = vmor %vm4447, %vm4448
    %v4450 = vsel %vm4449, %v4442, %v4446
    %v4451 = vand.u32 2147483647, %v4070
    %vm4452 = vcmp.eq.f32.partialorder %v4451, 8.507059e+37
    %v4453 = vand.u32 %v4070, 2147483648
    %v4454 = vor.u32 1.1754944e-38, %v4453
    %v4455 = vsel %vm4452, %v4454, %v4450
    %v4456 = vmul.f32 1.0, %v4455
    %v4457 = vrcp.pop %v4071
    %v4458 = vmul.f32 %v4071, %v4457
    %v4459 = vsub.f32 1.0, %v4458
    %v4460 = vmul.f32 %v4457, %v4459
    %v4461 = vadd.f32 %v4457, %v4460
    %vm4462 = vweird.f32 %v4071
    %vm4463 = vweird.f32 %v4457
    %vm4464 = vmor %vm4462, %vm4463
    %v4465 = vsel %vm4464, %v4457, %v4461
    %v4466 = vand.u32 2147483647, %v4071
    %vm4467 = vcmp.eq.f32.partialorder %v4466, 8.507059e+37
    %v4468 = vand.u32 %v4071, 2147483648
    %v4469 = vor.u32 1.1754944e-38, %v4468
    %v4470 = vsel %vm4467, %v4469, %v4465
    %v4471 = vmul.f32 1.0, %v4470
    %v4472 = vrcp.pop %v4072
    %v4473 = vmul.f32 %v4072, %v4472
    %v4474 = vsub.f32 1.0, %v4473
    %v4475 = vmul.f32 %v4472, %v4474
    %v4476 = vadd.f32 %v4472, %v4475
    %vm4477 = vweird.f32 %v4072
    %vm4478 = vweird.f32 %v4472
    %vm4479 = vmor %vm4477, %vm4478
    %v4480 = vsel %vm4479, %v4472, %v4476
    %v4481 = vand.u32 2147483647, %v4072
    %vm4482 = vcmp.eq.f32.partialorder %v4481, 8.507059e+37
    %v4483 = vand.u32 %v4072, 2147483648
    %v4484 = vor.u32 1.1754944e-38, %v4483
    %v4485 = vsel %vm4482, %v4484, %v4480
    %v4486 = vmul.f32 1.0, %v4485
    %v4487 = vrcp.pop %v4073
    %v4488 = vmul.f32 %v4073, %v4487
    %v4489 = vsub.f32 1.0, %v4488
    %v4490 = vmul.f32 %v4487, %v4489
    %v4491 = vadd.f32 %v4487, %v4490
    %vm4492 = vweird.f32 %v4073
    %vm4493 = vweird.f32 %v4487
    %vm4494 = vmor %vm4492, %vm4493
    %v4495 = vsel %vm4494, %v4487, %v4491
    %v4496 = vand.u32 2147483647, %v4073
    %vm4497 = vcmp.eq.f32.partialorder %v4496, 8.507059e+37
    %v4498 = vand.u32 %v4073, 2147483648
    %v4499 = vor.u32 1.1754944e-38, %v4498
    %v4500 = vsel %vm4497, %v4499, %v4495
    %v4501 = vmul.f32 1.0, %v4500
    %v4502 = vrcp.pop %v4074
    %v4503 = vmul.f32 %v4074, %v4502
    %v4504 = vsub.f32 1.0, %v4503
    %v4505 = vmul.f32 %v4502, %v4504
    %v4506 = vadd.f32 %v4502, %v4505
    %vm4507 = vweird.f32 %v4074
    %vm4508 = vweird.f32 %v4502
    %vm4509 = vmor %vm4507, %vm4508
    %v4510 = vsel %vm4509, %v4502, %v4506
    %v4511 = vand.u32 2147483647, %v4074
    %vm4512 = vcmp.eq.f32.partialorder %v4511, 8.507059e+37
    %v4513 = vand.u32 %v4074, 2147483648
    %v4514 = vor.u32 1.1754944e-38, %v4513
    %v4515 = vsel %vm4512, %v4514, %v4510
    %v4516 = vmul.f32 1.0, %v4515
    %v4517 = vrcp.pop %v4075
    %v4518 = vmul.f32 %v4075, %v4517
    %v4519 = vsub.f32 1.0, %v4518
    %v4520 = vmul.f32 %v4517, %v4519
    %v4521 = vadd.f32 %v4517, %v4520
    %vm4522 = vweird.f32 %v4075
    %vm4523 = vweird.f32 %v4517
    %vm4524 = vmor %vm4522, %vm4523
    %v4525 = vsel %vm4524, %v4517, %v4521
    %v4526 = vand.u32 2147483647, %v4075
    %vm4527 = vcmp.eq.f32.partialorder %v4526, 8.507059e+37
    %v4528 = vand.u32 %v4075, 2147483648
    %v4529 = vor.u32 1.1754944e-38, %v4528
    %v4530 = vsel %vm4527, %v4529, %v4525
    %v4531 = vmul.f32 1.0, %v4530
    %v4532 = vrcp.pop %v4076
    %v4533 = vmul.f32 %v4076, %v4532
    %v4534 = vsub.f32 1.0, %v4533
    %v4535 = vmul.f32 %v4532, %v4534
    %v4536 = vadd.f32 %v4532, %v4535
    %vm4537 = vweird.f32 %v4076
    %vm4538 = vweird.f32 %v4532
    %vm4539 = vmor %vm4537, %vm4538
    %v4540 = vsel %vm4539, %v4532, %v4536
    %v4541 = vand.u32 2147483647, %v4076
    %vm4542 = vcmp.eq.f32.partialorder %v4541, 8.507059e+37
    %v4543 = vand.u32 %v4076, 2147483648
    %v4544 = vor.u32 1.1754944e-38, %v4543
    %v4545 = vsel %vm4542, %v4544, %v4540
    %v4546 = vmul.f32 1.0, %v4545
    %v4547 = vrcp.pop %v4077
    %v4548 = vmul.f32 %v4077, %v4547
    %v4549 = vsub.f32 1.0, %v4548
    %v4550 = vmul.f32 %v4547, %v4549
    %v4551 = vadd.f32 %v4547, %v4550
    %vm4552 = vweird.f32 %v4077
    %vm4553 = vweird.f32 %v4547
    %vm4554 = vmor %vm4552, %vm4553
    %v4555 = vsel %vm4554, %v4547, %v4551
    %v4556 = vand.u32 2147483647, %v4077
    %vm4557 = vcmp.eq.f32.partialorder %v4556, 8.507059e+37
    %v4558 = vand.u32 %v4077, 2147483648
    %v4559 = vor.u32 1.1754944e-38, %v4558
    %v4560 = vsel %vm4557, %v4559, %v4555
    %v4561 = vmul.f32 1.0, %v4560
    %v4562 = vrcp.pop %v4078
    %v4563 = vmul.f32 %v4078, %v4562
    %v4564 = vsub.f32 1.0, %v4563
    %v4565 = vmul.f32 %v4562, %v4564
    %v4566 = vadd.f32 %v4562, %v4565
    %vm4567 = vweird.f32 %v4078
    %vm4568 = vweird.f32 %v4562
    %vm4569 = vmor %vm4567, %vm4568
    %v4570 = vsel %vm4569, %v4562, %v4566
    %v4571 = vand.u32 2147483647, %v4078
    %vm4572 = vcmp.eq.f32.partialorder %v4571, 8.507059e+37
    %v4573 = vand.u32 %v4078, 2147483648
    %v4574 = vor.u32 1.1754944e-38, %v4573
    %v4575 = vsel %vm4572, %v4574, %v4570
    %v4576 = vmul.f32 1.0, %v4575
    %v4577 = vrcp.pop %v4079
    %v4578 = vmul.f32 %v4079, %v4577
    %v4579 = vsub.f32 1.0, %v4578
    %v4580 = vmul.f32 %v4577, %v4579
    %v4581 = vadd.f32 %v4577, %v4580
    %vm4582 = vweird.f32 %v4079
    %vm4583 = vweird.f32 %v4577
    %vm4584 = vmor %vm4582, %vm4583
    %v4585 = vsel %vm4584, %v4577, %v4581
    %v4586 = vand.u32 2147483647, %v4079
    %vm4587 = vcmp.eq.f32.partialorder %v4586, 8.507059e+37
    %v4588 = vand.u32 %v4079, 2147483648
    %v4589 = vor.u32 1.1754944e-38, %v4588
    %v4590 = vsel %vm4587, %v4589, %v4585
    %v4591 = vmul.f32 1.0, %v4590
    %v4592 = vrcp.pop %v4080
    %v4593 = vmul.f32 %v4080, %v4592
    %v4594 = vsub.f32 1.0, %v4593
    %v4595 = vmul.f32 %v4592, %v4594
    %v4596 = vadd.f32 %v4592, %v4595
    %vm4597 = vweird.f32 %v4080
    %vm4598 = vweird.f32 %v4592
    %vm4599 = vmor %vm4597, %vm4598
    %v4600 = vsel %vm4599, %v4592, %v4596
    %v4601 = vand.u32 2147483647, %v4080
    %vm4602 = vcmp.eq.f32.partialorder %v4601, 8.507059e+37
    %v4603 = vand.u32 %v4080, 2147483648
    %v4604 = vor.u32 1.1754944e-38, %v4603
    %v4605 = vsel %vm4602, %v4604, %v4600
    %v4606 = vmul.f32 1.0, %v4605
    %v4607 = vrcp.pop %v4081
    %v4608 = vmul.f32 %v4081, %v4607
    %v4609 = vsub.f32 1.0, %v4608
    %v4610 = vmul.f32 %v4607, %v4609
    %v4611 = vadd.f32 %v4607, %v4610
    %vm4612 = vweird.f32 %v4081
    %vm4613 = vweird.f32 %v4607
    %vm4614 = vmor %vm4612, %vm4613
    %v4615 = vsel %vm4614, %v4607, %v4611
    %v4616 = vand.u32 2147483647, %v4081
    %vm4617 = vcmp.eq.f32.partialorder %v4616, 8.507059e+37
    %v4618 = vand.u32 %v4081, 2147483648
    %v4619 = vor.u32 1.1754944e-38, %v4618
    %v4620 = vsel %vm4617, %v4619, %v4615
    %v4621 = vmul.f32 1.0, %v4620
    %v4622 = vrcp.pop %v4082
    %v4623 = vmul.f32 %v4082, %v4622
    %v4624 = vsub.f32 1.0, %v4623
    %v4625 = vmul.f32 %v4622, %v4624
    %v4626 = vadd.f32 %v4622, %v4625
    %vm4627 = vweird.f32 %v4082
    %vm4628 = vweird.f32 %v4622
    %vm4629 = vmor %vm4627, %vm4628
    %v4630 = vsel %vm4629, %v4622, %v4626
    %v4631 = vand.u32 2147483647, %v4082
    %vm4632 = vcmp.eq.f32.partialorder %v4631, 8.507059e+37
    %v4633 = vand.u32 %v4082, 2147483648
    %v4634 = vor.u32 1.1754944e-38, %v4633
    %v4635 = vsel %vm4632, %v4634, %v4630
    %v4636 = vmul.f32 1.0, %v4635
    %v4637 = vrcp.pop %v4083
    %v4638 = vmul.f32 %v4083, %v4637
    %v4639 = vsub.f32 1.0, %v4638
    %v4640 = vmul.f32 %v4637, %v4639
    %v4641 = vadd.f32 %v4637, %v4640
    %vm4642 = vweird.f32 %v4083
    %vm4643 = vweird.f32 %v4637
    %vm4644 = vmor %vm4642, %vm4643
    %v4645 = vsel %vm4644, %v4637, %v4641
    %v4646 = vand.u32 2147483647, %v4083
    %vm4647 = vcmp.eq.f32.partialorder %v4646, 8.507059e+37
    %v4648 = vand.u32 %v4083, 2147483648
    %v4649 = vor.u32 1.1754944e-38, %v4648
    %v4650 = vsel %vm4647, %v4649, %v4645
    %v4651 = vmul.f32 1.0, %v4650
    %v4652 = vrcp.pop %v4084
    %v4653 = vmul.f32 %v4084, %v4652
    %v4654 = vsub.f32 1.0, %v4653
    %v4655 = vmul.f32 %v4652, %v4654
    %v4656 = vadd.f32 %v4652, %v4655
    %vm4657 = vweird.f32 %v4084
    %vm4658 = vweird.f32 %v4652
    %vm4659 = vmor %vm4657, %vm4658
    %v4660 = vsel %vm4659, %v4652, %v4656
    %v4661 = vand.u32 2147483647, %v4084
    %vm4662 = vcmp.eq.f32.partialorder %v4661, 8.507059e+37
    %v4663 = vand.u32 %v4084, 2147483648
    %v4664 = vor.u32 1.1754944e-38, %v4663
    %v4665 = vsel %vm4662, %v4664, %v4660
    %v4666 = vmul.f32 1.0, %v4665
    %v4667 = vrcp.pop %v4085
    %v4668 = vmul.f32 %v4085, %v4667
    %v4669 = vsub.f32 1.0, %v4668
    %v4670 = vmul.f32 %v4667, %v4669
    %v4671 = vadd.f32 %v4667, %v4670
    %vm4672 = vweird.f32 %v4085
    %vm4673 = vweird.f32 %v4667
    %vm4674 = vmor %vm4672, %vm4673
    %v4675 = vsel %vm4674, %v4667, %v4671
    %v4676 = vand.u32 2147483647, %v4085
    %vm4677 = vcmp.eq.f32.partialorder %v4676, 8.507059e+37
    %v4678 = vand.u32 %v4085, 2147483648
    %v4679 = vor.u32 1.1754944e-38, %v4678
    %v4680 = vsel %vm4677, %v4679, %v4675
    %v4681 = vmul.f32 1.0, %v4680
    %v4682 = vrcp.pop %v4086
    %v4683 = vmul.f32 %v4086, %v4682
    %v4684 = vsub.f32 1.0, %v4683
    %v4685 = vmul.f32 %v4682, %v4684
    %v4686 = vadd.f32 %v4682, %v4685
    %vm4687 = vweird.f32 %v4086
    %vm4688 = vweird.f32 %v4682
    %vm4689 = vmor %vm4687, %vm4688
    %v4690 = vsel %vm4689, %v4682, %v4686
    %v4691 = vand.u32 2147483647, %v4086
    %vm4692 = vcmp.eq.f32.partialorder %v4691, 8.507059e+37
    %v4693 = vand.u32 %v4086, 2147483648
    %v4694 = vor.u32 1.1754944e-38, %v4693
    %v4695 = vsel %vm4692, %v4694, %v4690
    %v4696 = vmul.f32 1.0, %v4695
    %v4697 = vrcp.pop %v4087
    %v4698 = vmul.f32 %v4087, %v4697
    %v4699 = vsub.f32 1.0, %v4698
    %v4700 = vmul.f32 %v4697, %v4699
    %v4701 = vadd.f32 %v4697, %v4700
    %vm4702 = vweird.f32 %v4087
    %vm4703 = vweird.f32 %v4697
    %vm4704 = vmor %vm4702, %vm4703
    %v4705 = vsel %vm4704, %v4697, %v4701
    %v4706 = vand.u32 2147483647, %v4087
    %vm4707 = vcmp.eq.f32.partialorder %v4706, 8.507059e+37
    %v4708 = vand.u32 %v4087, 2147483648
    %v4709 = vor.u32 1.1754944e-38, %v4708
    %v4710 = vsel %vm4707, %v4709, %v4705
    %v4711 = vmul.f32 1.0, %v4710
    %v4712 = vrcp.pop %v4088
    %v4713 = vmul.f32 %v4088, %v4712
    %v4714 = vsub.f32 1.0, %v4713
    %v4715 = vmul.f32 %v4712, %v4714
    %v4716 = vadd.f32 %v4712, %v4715
    %vm4717 = vweird.f32 %v4088
    %vm4718 = vweird.f32 %v4712
    %vm4719 = vmor %vm4717, %vm4718
    %v4720 = vsel %vm4719, %v4712, %v4716
    %v4721 = vand.u32 2147483647, %v4088
    %vm4722 = vcmp.eq.f32.partialorder %v4721, 8.507059e+37
    %v4723 = vand.u32 %v4088, 2147483648
    %v4724 = vor.u32 1.1754944e-38, %v4723
    %v4725 = vsel %vm4722, %v4724, %v4720
    %v4726 = vmul.f32 1.0, %v4725
    %v4727 = vrcp.pop %v4089
    %v4728 = vmul.f32 %v4089, %v4727
    %v4729 = vsub.f32 1.0, %v4728
    %v4730 = vmul.f32 %v4727, %v4729
    %v4731 = vadd.f32 %v4727, %v4730
    %vm4732 = vweird.f32 %v4089
    %vm4733 = vweird.f32 %v4727
    %vm4734 = vmor %vm4732, %vm4733
    %v4735 = vsel %vm4734, %v4727, %v4731
    %v4736 = vand.u32 2147483647, %v4089
    %vm4737 = vcmp.eq.f32.partialorder %v4736, 8.507059e+37
    %v4738 = vand.u32 %v4089, 2147483648
    %v4739 = vor.u32 1.1754944e-38, %v4738
    %v4740 = vsel %vm4737, %v4739, %v4735
    %v4741 = vmul.f32 1.0, %v4740
    %v4742 = vrcp.pop %v4090
    %v4743 = vmul.f32 %v4090, %v4742
    %v4744 = vsub.f32 1.0, %v4743
    %v4745 = vmul.f32 %v4742, %v4744
    %v4746 = vadd.f32 %v4742, %v4745
    %vm4747 = vweird.f32 %v4090
    %vm4748 = vweird.f32 %v4742
    %vm4749 = vmor %vm4747, %vm4748
    %v4750 = vsel %vm4749, %v4742, %v4746
    %v4751 = vand.u32 2147483647, %v4090
    %vm4752 = vcmp.eq.f32.partialorder %v4751, 8.507059e+37
    %v4753 = vand.u32 %v4090, 2147483648
    %v4754 = vor.u32 1.1754944e-38, %v4753
    %v4755 = vsel %vm4752, %v4754, %v4750
    %v4756 = vmul.f32 1.0, %v4755
    %v4757 = vrcp.pop %v4091
    %v4758 = vmul.f32 %v4091, %v4757
    %v4759 = vsub.f32 1.0, %v4758
    %v4760 = vmul.f32 %v4757, %v4759
    %v4761 = vadd.f32 %v4757, %v4760
    %vm4762 = vweird.f32 %v4091
    %vm4763 = vweird.f32 %v4757
    %vm4764 = vmor %vm4762, %vm4763
    %v4765 = vsel %vm4764, %v4757, %v4761
    %v4766 = vand.u32 2147483647, %v4091
    %vm4767 = vcmp.eq.f32.partialorder %v4766, 8.507059e+37
    %v4768 = vand.u32 %v4091, 2147483648
    %v4769 = vor.u32 1.1754944e-38, %v4768
    %v4770 = vsel %vm4767, %v4769, %v4765
    %v4771 = vmul.f32 1.0, %v4770
    %v4772 = vrcp.pop %v4092
    %v4773 = vmul.f32 %v4092, %v4772
    %v4774 = vsub.f32 1.0, %v4773
    %v4775 = vmul.f32 %v4772, %v4774
    %v4776 = vadd.f32 %v4772, %v4775
    %vm4777 = vweird.f32 %v4092
    %vm4778 = vweird.f32 %v4772
    %vm4779 = vmor %vm4777, %vm4778
    %v4780 = vsel %vm4779, %v4772, %v4776
    %v4781 = vand.u32 2147483647, %v4092
    %vm4782 = vcmp.eq.f32.partialorder %v4781, 8.507059e+37
    %v4783 = vand.u32 %v4092, 2147483648
    %v4784 = vor.u32 1.1754944e-38, %v4783
    %v4785 = vsel %vm4782, %v4784, %v4780
    %v4786 = vmul.f32 1.0, %v4785
    %v4787 = vrcp.pop %v4093
    %v4788 = vmul.f32 %v4093, %v4787
    %v4789 = vsub.f32 1.0, %v4788
    %v4790 = vmul.f32 %v4787, %v4789
    %v4791 = vadd.f32 %v4787, %v4790
    %vm4792 = vweird.f32 %v4093
    %vm4793 = vweird.f32 %v4787
    %vm4794 = vmor %vm4792, %vm4793
    %v4795 = vsel %vm4794, %v4787, %v4791
    %v4796 = vand.u32 2147483647, %v4093
    %vm4797 = vcmp.eq.f32.partialorder %v4796, 8.507059e+37
    %v4798 = vand.u32 %v4093, 2147483648
    %v4799 = vor.u32 1.1754944e-38, %v4798
    %v4800 = vsel %vm4797, %v4799, %v4795
    %v4801 = vmul.f32 1.0, %v4800
    %v4802 = vrcp.pop %v4094
    %v4803 = vmul.f32 %v4094, %v4802
    %v4804 = vsub.f32 1.0, %v4803
    %v4805 = vmul.f32 %v4802, %v4804
    %v4806 = vadd.f32 %v4802, %v4805
    %vm4807 = vweird.f32 %v4094
    %vm4808 = vweird.f32 %v4802
    %vm4809 = vmor %vm4807, %vm4808
    %v4810 = vsel %vm4809, %v4802, %v4806
    %v4811 = vand.u32 2147483647, %v4094
    %vm4812 = vcmp.eq.f32.partialorder %v4811, 8.507059e+37
    %v4813 = vand.u32 %v4094, 2147483648
    %v4814 = vor.u32 1.1754944e-38, %v4813
    %v4815 = vsel %vm4812, %v4814, %v4810
    %v4816 = vmul.f32 1.0, %v4815
    %v4817 = vrcp.pop %v4095
    %v4818 = vmul.f32 %v4095, %v4817
    %v4819 = vsub.f32 1.0, %v4818
    %v4820 = vmul.f32 %v4817, %v4819
    %v4821 = vadd.f32 %v4817, %v4820
    %vm4822 = vweird.f32 %v4095
    %vm4823 = vweird.f32 %v4817
    %vm4824 = vmor %vm4822, %vm4823
    %v4825 = vsel %vm4824, %v4817, %v4821
    %v4826 = vand.u32 2147483647, %v4095
    %vm4827 = vcmp.eq.f32.partialorder %v4826, 8.507059e+37
    %v4828 = vand.u32 %v4095, 2147483648
    %v4829 = vor.u32 1.1754944e-38, %v4828
    %v4830 = vsel %vm4827, %v4829, %v4825
    %v4831 = vmul.f32 1.0, %v4830
    %v4832 = vrcp.pop %v4096
    %v4833 = vmul.f32 %v4096, %v4832
    %v4834 = vsub.f32 1.0, %v4833
    %v4835 = vmul.f32 %v4832, %v4834
    %v4836 = vadd.f32 %v4832, %v4835
    %vm4837 = vweird.f32 %v4096
    %vm4838 = vweird.f32 %v4832
    %vm4839 = vmor %vm4837, %vm4838
    %v4840 = vsel %vm4839, %v4832, %v4836
    %v4841 = vand.u32 2147483647, %v4096
    %vm4842 = vcmp.eq.f32.partialorder %v4841, 8.507059e+37
    %v4843 = vand.u32 %v4096, 2147483648
    %v4844 = vor.u32 1.1754944e-38, %v4843
    %v4845 = vsel %vm4842, %v4844, %v4840
    %v4846 = vmul.f32 1.0, %v4845
    %v4847 = vrcp.pop %v4097
    %v4848 = vmul.f32 %v4097, %v4847
    %v4849 = vsub.f32 1.0, %v4848
    %v4850 = vmul.f32 %v4847, %v4849
    %v4851 = vadd.f32 %v4847, %v4850
    %vm4852 = vweird.f32 %v4097
    %vm4853 = vweird.f32 %v4847
    %vm4854 = vmor %vm4852, %vm4853
    %v4855 = vsel %vm4854, %v4847, %v4851
    %v4856 = vand.u32 2147483647, %v4097
    %vm4857 = vcmp.eq.f32.partialorder %v4856, 8.507059e+37
    %v4858 = vand.u32 %v4097, 2147483648
    %v4859 = vor.u32 1.1754944e-38, %v4858
    %v4860 = vsel %vm4857, %v4859, %v4855
    %v4861 = vmul.f32 1.0, %v4860
    %v4862 = vrcp.pop %v4098
    %v4863 = vmul.f32 %v4098, %v4862
    %v4864 = vsub.f32 1.0, %v4863
    %v4865 = vmul.f32 %v4862, %v4864
    %v4866 = vadd.f32 %v4862, %v4865
    %vm4867 = vweird.f32 %v4098
    %vm4868 = vweird.f32 %v4862
    %vm4869 = vmor %vm4867, %vm4868
    %v4870 = vsel %vm4869, %v4862, %v4866
    %v4871 = vand.u32 2147483647, %v4098
    %vm4872 = vcmp.eq.f32.partialorder %v4871, 8.507059e+37
    %v4873 = vand.u32 %v4098, 2147483648
    %v4874 = vor.u32 1.1754944e-38, %v4873
    %v4875 = vsel %vm4872, %v4874, %v4870
    %v4876 = vmul.f32 1.0, %v4875
    %v4877 = vrcp.pop %v4099
    %v4878 = vmul.f32 %v4099, %v4877
    %v4879 = vsub.f32 1.0, %v4878
    %v4880 = vmul.f32 %v4877, %v4879
    %v4881 = vadd.f32 %v4877, %v4880
    %vm4882 = vweird.f32 %v4099
    %vm4883 = vweird.f32 %v4877
    %vm4884 = vmor %vm4882, %vm4883
    %v4885 = vsel %vm4884, %v4877, %v4881
    %v4886 = vand.u32 2147483647, %v4099
    %vm4887 = vcmp.eq.f32.partialorder %v4886, 8.507059e+37
    %v4888 = vand.u32 %v4099, 2147483648
    %v4889 = vor.u32 1.1754944e-38, %v4888
    %v4890 = vsel %vm4887, %v4889, %v4885
    %v4891 = vmul.f32 1.0, %v4890
    %v4892 = vrcp.pop %v4100
    %v4893 = vmul.f32 %v4100, %v4892
    %v4894 = vsub.f32 1.0, %v4893
    %v4895 = vmul.f32 %v4892, %v4894
    %v4896 = vadd.f32 %v4892, %v4895
    %vm4897 = vweird.f32 %v4100
    %vm4898 = vweird.f32 %v4892
    %vm4899 = vmor %vm4897, %vm4898
    %v4900 = vsel %vm4899, %v4892, %v4896
    %v4901 = vand.u32 2147483647, %v4100
    %vm4902 = vcmp.eq.f32.partialorder %v4901, 8.507059e+37
    %v4903 = vand.u32 %v4100, 2147483648
    %v4904 = vor.u32 1.1754944e-38, %v4903
    %v4905 = vsel %vm4902, %v4904, %v4900
    %v4906 = vmul.f32 1.0, %v4905
    %v4907 = vrcp.pop %v4101
    %v4908 = vmul.f32 %v4101, %v4907
    %v4909 = vsub.f32 1.0, %v4908
    %v4910 = vmul.f32 %v4907, %v4909
    %v4911 = vadd.f32 %v4907, %v4910
    %vm4912 = vweird.f32 %v4101
    %vm4913 = vweird.f32 %v4907
    %vm4914 = vmor %vm4912, %vm4913
    %v4915 = vsel %vm4914, %v4907, %v4911
    %v4916 = vand.u32 2147483647, %v4101
    %vm4917 = vcmp.eq.f32.partialorder %v4916, 8.507059e+37
    %v4918 = vand.u32 %v4101, 2147483648
    %v4919 = vor.u32 1.1754944e-38, %v4918
    %v4920 = vsel %vm4917, %v4919, %v4915
    %v4921 = vmul.f32 1.0, %v4920
    %v4922 = vrcp.pop %v4102
    %v4923 = vmul.f32 %v4102, %v4922
    %v4924 = vsub.f32 1.0, %v4923
    %v4925 = vmul.f32 %v4922, %v4924
    %v4926 = vadd.f32 %v4922, %v4925
    %vm4927 = vweird.f32 %v4102
    %vm4928 = vweird.f32 %v4922
    %vm4929 = vmor %vm4927, %vm4928
    %v4930 = vsel %vm4929, %v4922, %v4926
    %v4931 = vand.u32 2147483647, %v4102
    %vm4932 = vcmp.eq.f32.partialorder %v4931, 8.507059e+37
    %v4933 = vand.u32 %v4102, 2147483648
    %v4934 = vor.u32 1.1754944e-38, %v4933
    %v4935 = vsel %vm4932, %v4934, %v4930
    %v4936 = vmul.f32 1.0, %v4935
    %v4937 = vrcp.pop %v4103
    %v4938 = vmul.f32 %v4103, %v4937
    %v4939 = vsub.f32 1.0, %v4938
    %v4940 = vmul.f32 %v4937, %v4939
    %v4941 = vadd.f32 %v4937, %v4940
    %vm4942 = vweird.f32 %v4103
    %vm4943 = vweird.f32 %v4937
    %vm4944 = vmor %vm4942, %vm4943
    %v4945 = vsel %vm4944, %v4937, %v4941
    %v4946 = vand.u32 2147483647, %v4103
    %vm4947 = vcmp.eq.f32.partialorder %v4946, 8.507059e+37
    %v4948 = vand.u32 %v4103, 2147483648
    %v4949 = vor.u32 1.1754944e-38, %v4948
    %v4950 = vsel %vm4947, %v4949, %v4945
    %v4951 = vmul.f32 1.0, %v4950
    %v4952 = vrcp.pop %v4104
    %v4953 = vmul.f32 %v4104, %v4952
    %v4954 = vsub.f32 1.0, %v4953
    %v4955 = vmul.f32 %v4952, %v4954
    %v4956 = vadd.f32 %v4952, %v4955
    %vm4957 = vweird.f32 %v4104
    %vm4958 = vweird.f32 %v4952
    %vm4959 = vmor %vm4957, %vm4958
    %v4960 = vsel %vm4959, %v4952, %v4956
    %v4961 = vand.u32 2147483647, %v4104
    %vm4962 = vcmp.eq.f32.partialorder %v4961, 8.507059e+37
    %v4963 = vand.u32 %v4104, 2147483648
    %v4964 = vor.u32 1.1754944e-38, %v4963
    %v4965 = vsel %vm4962, %v4964, %v4960
    %v4966 = vmul.f32 1.0, %v4965
    %v4967 = vrcp.pop %v4105
    %v4968 = vmul.f32 %v4105, %v4967
    %v4969 = vsub.f32 1.0, %v4968
    %v4970 = vmul.f32 %v4967, %v4969
    %v4971 = vadd.f32 %v4967, %v4970
    %vm4972 = vweird.f32 %v4105
    %vm4973 = vweird.f32 %v4967
    %vm4974 = vmor %vm4972, %vm4973
    %v4975 = vsel %vm4974, %v4967, %v4971
    %v4976 = vand.u32 2147483647, %v4105
    %vm4977 = vcmp.eq.f32.partialorder %v4976, 8.507059e+37
    %v4978 = vand.u32 %v4105, 2147483648
    %v4979 = vor.u32 1.1754944e-38, %v4978
    %v4980 = vsel %vm4977, %v4979, %v4975
    %v4981 = vmul.f32 1.0, %v4980
    %v4982 = vrcp.pop %v4106
    %v4983 = vmul.f32 %v4106, %v4982
    %v4984 = vsub.f32 1.0, %v4983
    %v4985 = vmul.f32 %v4982, %v4984
    %v4986 = vadd.f32 %v4982, %v4985
    %vm4987 = vweird.f32 %v4106
    %vm4988 = vweird.f32 %v4982
    %vm4989 = vmor %vm4987, %vm4988
    %v4990 = vsel %vm4989, %v4982, %v4986
    %v4991 = vand.u32 2147483647, %v4106
    %vm4992 = vcmp.eq.f32.partialorder %v4991, 8.507059e+37
    %v4993 = vand.u32 %v4106, 2147483648
    %v4994 = vor.u32 1.1754944e-38, %v4993
    %v4995 = vsel %vm4992, %v4994, %v4990
    %v4996 = vmul.f32 1.0, %v4995
    %v4997 = vrcp.pop %v4107
    %v4998 = vmul.f32 %v4107, %v4997
    %v4999 = vsub.f32 1.0, %v4998
    %v5000 = vmul.f32 %v4997, %v4999
    %v5001 = vadd.f32 %v4997, %v5000
    %vm5002 = vweird.f32 %v4107
    %vm5003 = vweird.f32 %v4997
    %vm5004 = vmor %vm5002, %vm5003
    %v5005 = vsel %vm5004, %v4997, %v5001
    %v5006 = vand.u32 2147483647, %v4107
    %vm5007 = vcmp.eq.f32.partialorder %v5006, 8.507059e+37
    %v5008 = vand.u32 %v4107, 2147483648
    %v5009 = vor.u32 1.1754944e-38, %v5008
    %v5010 = vsel %vm5007, %v5009, %v5005
    %v5011 = vmul.f32 1.0, %v5010
    %v5012 = vrcp.pop %v4108
    %v5013 = vmul.f32 %v4108, %v5012
    %v5014 = vsub.f32 1.0, %v5013
    %v5015 = vmul.f32 %v5012, %v5014
    %v5016 = vadd.f32 %v5012, %v5015
    %vm5017 = vweird.f32 %v4108
    %vm5018 = vweird.f32 %v5012
    %vm5019 = vmor %vm5017, %vm5018
    %v5020 = vsel %vm5019, %v5012, %v5016
    %v5021 = vand.u32 2147483647, %v4108
    %vm5022 = vcmp.eq.f32.partialorder %v5021, 8.507059e+37
    %v5023 = vand.u32 %v4108, 2147483648
    %v5024 = vor.u32 1.1754944e-38, %v5023
    %v5025 = vsel %vm5022, %v5024, %v5020
    %v5026 = vmul.f32 1.0, %v5025
    %v5027 = vrcp.pop %v4109
    %v5028 = vmul.f32 %v4109, %v5027
    %v5029 = vsub.f32 1.0, %v5028
    %v5030 = vmul.f32 %v5027, %v5029
    %v5031 = vadd.f32 %v5027, %v5030
    %vm5032 = vweird.f32 %v4109
    %vm5033 = vweird.f32 %v5027
    %vm5034 = vmor %vm5032, %vm5033
    %v5035 = vsel %vm5034, %v5027, %v5031
    %v5036 = vand.u32 2147483647, %v4109
    %vm5037 = vcmp.eq.f32.partialorder %v5036, 8.507059e+37
    %v5038 = vand.u32 %v4109, 2147483648
    %v5039 = vor.u32 1.1754944e-38, %v5038
    %v5040 = vsel %vm5037, %v5039, %v5035
    %v5041 = vmul.f32 1.0, %v5040
    %v5042 = vrcp.pop %v4110
    %v5043 = vmul.f32 %v4110, %v5042
    %v5044 = vsub.f32 1.0, %v5043
    %v5045 = vmul.f32 %v5042, %v5044
    %v5046 = vadd.f32 %v5042, %v5045
    %vm5047 = vweird.f32 %v4110
    %vm5048 = vweird.f32 %v5042
    %vm5049 = vmor %vm5047, %vm5048
    %v5050 = vsel %vm5049, %v5042, %v5046
    %v5051 = vand.u32 2147483647, %v4110
    %vm5052 = vcmp.eq.f32.partialorder %v5051, 8.507059e+37
    %v5053 = vand.u32 %v4110, 2147483648
    %v5054 = vor.u32 1.1754944e-38, %v5053
    %v5055 = vsel %vm5052, %v5054, %v5050
    %v5056 = vmul.f32 1.0, %v5055
    %v5057 = vrcp.pop %v4111
    %v5058 = vmul.f32 %v4111, %v5057
    %v5059 = vsub.f32 1.0, %v5058
    %v5060 = vmul.f32 %v5057, %v5059
    %v5061 = vadd.f32 %v5057, %v5060
    %vm5062 = vweird.f32 %v4111
    %vm5063 = vweird.f32 %v5057
    %vm5064 = vmor %vm5062, %vm5063
    %v5065 = vsel %vm5064, %v5057, %v5061
    %v5066 = vand.u32 2147483647, %v4111
    %vm5067 = vcmp.eq.f32.partialorder %v5066, 8.507059e+37
    %v5068 = vand.u32 %v4111, 2147483648
    %v5069 = vor.u32 1.1754944e-38, %v5068
    %v5070 = vsel %vm5067, %v5069, %v5065
    %v5071 = vmul.f32 1.0, %v5070
    %5136 = vrot.lane.b32.xlu0 %v4126, 7
    %v5137 = vpop.permute.xlu0 %5136
    %5138 = vrot.lane.b32.xlu0 %v4141, 7
    %v5139 = vpop.permute.xlu0 %5138
    %5140 = vrot.lane.b32.xlu0 %v4156, 7
    %v5141 = vpop.permute.xlu0 %5140
    %5142 = vrot.lane.b32.xlu0 %v4171, 7
    %v5143 = vpop.permute.xlu0 %5142
    %5144 = vrot.lane.b32.xlu0 %v4186, 7
    %v5145 = vpop.permute.xlu0 %5144
    %5146 = vrot.lane.b32.xlu0 %v4201, 7
    %v5147 = vpop.permute.xlu0 %5146
    %5148 = vrot.lane.b32.xlu0 %v4216, 7
    %v5149 = vpop.permute.xlu0 %5148
    %5150 = vrot.lane.b32.xlu0 %v4231, 7
    %v5151 = vpop.permute.xlu0 %5150
    %5152 = vrot.lane.b32.xlu0 %v4246, 7
    %v5153 = vpop.permute.xlu0 %5152
    %5154 = vrot.lane.b32.xlu0 %v4261, 7
    %v5155 = vpop.permute.xlu0 %5154
    %5156 = vrot.lane.b32.xlu0 %v4276, 7
    %v5157 = vpop.permute.xlu0 %5156
    %5158 = vrot.lane.b32.xlu0 %v4291, 7
    %v5159 = vpop.permute.xlu0 %5158
    %5160 = vrot.lane.b32.xlu0 %v4306, 7
    %v5161 = vpop.permute.xlu0 %5160
    %5162 = vrot.lane.b32.xlu0 %v4321, 7
    %v5163 = vpop.permute.xlu0 %5162
    %5164 = vrot.lane.b32.xlu0 %v4336, 7
    %v5165 = vpop.permute.xlu0 %5164
    %5166 = vrot.lane.b32.xlu0 %v4351, 7
    %v5167 = vpop.permute.xlu0 %5166
    %5168 = vrot.lane.b32.xlu0 %v4366, 7
    %v5169 = vpop.permute.xlu0 %5168
    %5170 = vrot.lane.b32.xlu0 %v4381, 7
    %v5171 = vpop.permute.xlu0 %5170
    %5172 = vrot.lane.b32.xlu0 %v4396, 7
    %v5173 = vpop.permute.xlu0 %5172
    %5174 = vrot.lane.b32.xlu0 %v4411, 7
    %v5175 = vpop.permute.xlu0 %5174
    %5176 = vrot.lane.b32.xlu0 %v4426, 7
    %v5177 = vpop.permute.xlu0 %5176
    %5178 = vrot.lane.b32.xlu0 %v4441, 7
    %v5179 = vpop.permute.xlu0 %5178
    %5180 = vrot.lane.b32.xlu0 %v4456, 7
    %v5181 = vpop.permute.xlu0 %5180
    %5182 = vrot.lane.b32.xlu0 %v4471, 7
    %v5183 = vpop.permute.xlu0 %5182
    %5184 = vrot.lane.b32.xlu0 %v4486, 7
    %v5185 = vpop.permute.xlu0 %5184
    %5186 = vrot.lane.b32.xlu0 %v4501, 7
    %v5187 = vpop.permute.xlu0 %5186
    %5188 = vrot.lane.b32.xlu0 %v4516, 7
    %v5189 = vpop.permute.xlu0 %5188
    %5190 = vrot.lane.b32.xlu0 %v4531, 7
    %v5191 = vpop.permute.xlu0 %5190
    %5192 = vrot.lane.b32.xlu0 %v4546, 7
    %v5193 = vpop.permute.xlu0 %5192
    %5194 = vrot.lane.b32.xlu0 %v4561, 7
    %v5195 = vpop.permute.xlu0 %5194
    %5196 = vrot.lane.b32.xlu0 %v4576, 7
    %v5197 = vpop.permute.xlu0 %5196
    %5198 = vrot.lane.b32.xlu0 %v4591, 7
    %v5199 = vpop.permute.xlu0 %5198
    %5200 = vrot.lane.b32.xlu0 %v4606, 7
    %v5201 = vpop.permute.xlu0 %5200
    %5202 = vrot.lane.b32.xlu0 %v4621, 7
    %v5203 = vpop.permute.xlu0 %5202
    %5204 = vrot.lane.b32.xlu0 %v4636, 7
    %v5205 = vpop.permute.xlu0 %5204
    %5206 = vrot.lane.b32.xlu0 %v4651, 7
    %v5207 = vpop.permute.xlu0 %5206
    %5208 = vrot.lane.b32.xlu0 %v4666, 7
    %v5209 = vpop.permute.xlu0 %5208
    %5210 = vrot.lane.b32.xlu0 %v4681, 7
    %v5211 = vpop.permute.xlu0 %5210
    %5212 = vrot.lane.b32.xlu0 %v4696, 7
    %v5213 = vpop.permute.xlu0 %5212
    %5214 = vrot.lane.b32.xlu0 %v4711, 7
    %v5215 = vpop.permute.xlu0 %5214
    %5216 = vrot.lane.b32.xlu0 %v4726, 7
    %v5217 = vpop.permute.xlu0 %5216
    %5218 = vrot.lane.b32.xlu0 %v4741, 7
    %v5219 = vpop.permute.xlu0 %5218
    %5220 = vrot.lane.b32.xlu0 %v4756, 7
    %v5221 = vpop.permute.xlu0 %5220
    %5222 = vrot.lane.b32.xlu0 %v4771, 7
    %v5223 = vpop.permute.xlu0 %5222
    %5224 = vrot.lane.b32.xlu0 %v4786, 7
    %v5225 = vpop.permute.xlu0 %5224
    %5226 = vrot.lane.b32.xlu0 %v4801, 7
    %v5227 = vpop.permute.xlu0 %5226
    %5228 = vrot.lane.b32.xlu0 %v4816, 7
    %v5229 = vpop.permute.xlu0 %5228
    %5230 = vrot.lane.b32.xlu0 %v4831, 7
    %v5231 = vpop.permute.xlu0 %5230
    %5232 = vrot.lane.b32.xlu0 %v4846, 7
    %v5233 = vpop.permute.xlu0 %5232
    %5234 = vrot.lane.b32.xlu0 %v4861, 7
    %v5235 = vpop.permute.xlu0 %5234
    %5236 = vrot.lane.b32.xlu0 %v4876, 7
    %v5237 = vpop.permute.xlu0 %5236
    %5238 = vrot.lane.b32.xlu0 %v4891, 7
    %v5239 = vpop.permute.xlu0 %5238
    %5240 = vrot.lane.b32.xlu0 %v4906, 7
    %v5241 = vpop.permute.xlu0 %5240
    %5242 = vrot.lane.b32.xlu0 %v4921, 7
    %v5243 = vpop.permute.xlu0 %5242
    %5244 = vrot.lane.b32.xlu0 %v4936, 7
    %v5245 = vpop.permute.xlu0 %5244
    %5246 = vrot.lane.b32.xlu0 %v4951, 7
    %v5247 = vpop.permute.xlu0 %5246
    %5248 = vrot.lane.b32.xlu0 %v4966, 7
    %v5249 = vpop.permute.xlu0 %5248
    %5250 = vrot.lane.b32.xlu0 %v4981, 7
    %v5251 = vpop.permute.xlu0 %5250
    %5252 = vrot.lane.b32.xlu0 %v4996, 7
    %v5253 = vpop.permute.xlu0 %5252
    %5254 = vrot.lane.b32.xlu0 %v5011, 7
    %v5255 = vpop.permute.xlu0 %5254
    %5256 = vrot.lane.b32.xlu0 %v5026, 7
    %v5257 = vpop.permute.xlu0 %5256
    %5258 = vrot.lane.b32.xlu0 %v5041, 7
    %v5259 = vpop.permute.xlu0 %5258
    %5260 = vrot.lane.b32.xlu0 %v5056, 7
    %v5261 = vpop.permute.xlu0 %5260
    %5262 = vrot.lane.b32.xlu0 %v5071, 7
    %v5263 = vpop.permute.xlu0 %5262
    %vm5328 = vcmask 105472
    %v5329 = vsel %vm5328, %v1006, %v1435
    %v5330 = vsel %vm5328, %v1008, %v1450
    %v5331 = vsel %vm5328, %v1011, %v1465
    %v5332 = vsel %vm5328, %v1013, %v1480
    %v5333 = vsel %vm5328, %v1016, %v1495
    %v5334 = vsel %vm5328, %v1018, %v1510
    %v5335 = vsel %vm5328, %v1021, %v1525
    %v5336 = vsel %vm5328, %v1023, %v1540
    %v5337 = vsel %vm5328, %v1026, %v1555
    %v5338 = vsel %vm5328, %v1028, %v1570
    %v5339 = vsel %vm5328, %v1031, %v1585
    %v5340 = vsel %vm5328, %v1033, %v1600
    %v5341 = vsel %vm5328, %v1036, %v1615
    %v5342 = vsel %vm5328, %v1038, %v1630
    %v5343 = vsel %vm5328, %v1041, %v1645
    %v5344 = vsel %vm5328, %v1043, %v1660
    %v5345 = vsel %vm5328, %v1046, %v1675
    %v5346 = vsel %vm5328, %v1048, %v1690
    %v5347 = vsel %vm5328, %v1051, %v1705
    %v5348 = vsel %vm5328, %v1053, %v1720
    %v5349 = vsel %vm5328, %v1056, %v1735
    %v5350 = vsel %vm5328, %v1058, %v1750
    %v5351 = vsel %vm5328, %v1061, %v1765
    %v5352 = vsel %vm5328, %v1063, %v1780
    %v5353 = vsel %vm5328, %v1066, %v1795
    %v5354 = vsel %vm5328, %v1068, %v1810
    %v5355 = vsel %vm5328, %v1071, %v1825
    %v5356 = vsel %vm5328, %v1073, %v1840
    %v5357 = vsel %vm5328, %v1076, %v1855
    %v5358 = vsel %vm5328, %v1078, %v1870
    %v5359 = vsel %vm5328, %v1081, %v1885
    %v5360 = vsel %vm5328, %v1083, %v1900
    %v5361 = vsel %vm5328, %v1086, %v1915
    %v5362 = vsel %vm5328, %v1088, %v1930
    %v5363 = vsel %vm5328, %v1091, %v1945
    %v5364 = vsel %vm5328, %v1093, %v1960
    %v5365 = vsel %vm5328, %v1096, %v1975
    %v5366 = vsel %vm5328, %v1098, %v1990
    %v5367 = vsel %vm5328, %v1101, %v2005
    %v5368 = vsel %vm5328, %v1103, %v2020
    %v5369 = vsel %vm5328, %v1106, %v2035
    %v5370 = vsel %vm5328, %v1108, %v2050
    %v5371 = vsel %vm5328, %v1111, %v2065
    %v5372 = vsel %vm5328, %v1113, %v2080
    %v5373 = vsel %vm5328, %v1116, %v2095
    %v5374 = vsel %vm5328, %v1118, %v2110
    %v5375 = vsel %vm5328, %v1121, %v2125
    %v5376 = vsel %vm5328, %v1123, %v2140
    %v5377 = vsel %vm5328, %v1126, %v2155
    %v5378 = vsel %vm5328, %v1128, %v2170
    %v5379 = vsel %vm5328, %v1131, %v2185
    %v5380 = vsel %vm5328, %v1133, %v2200
    %v5381 = vsel %vm5328, %v1136, %v2215
    %v5382 = vsel %vm5328, %v1138, %v2230
    %v5383 = vsel %vm5328, %v1141, %v2245
    %v5384 = vsel %vm5328, %v1143, %v2260
    %v5385 = vsel %vm5328, %v1146, %v2275
    %v5386 = vsel %vm5328, %v1148, %v2290
    %v5387 = vsel %vm5328, %v1151, %v2305
    %v5388 = vsel %vm5328, %v1153, %v2320
    %v5389 = vsel %vm5328, %v1156, %v2335
    %v5390 = vsel %vm5328, %v1158, %v2350
    %v5391 = vsel %vm5328, %v1161, %v2365
    %v5392 = vsel %vm5328, %v1163, %v2380
    %vm5393 = vcmask 113664
    %v5394 = vsel %vm5393, %v5329, %v2957
    %v5395 = vsel %vm5393, %v5330, %v2958
    %v5396 = vsel %vm5393, %v5331, %v2959
    %v5397 = vsel %vm5393, %v5332, %v2960
    %v5398 = vsel %vm5393, %v5333, %v2961
    %v5399 = vsel %vm5393, %v5334, %v2962
    %v5400 = vsel %vm5393, %v5335, %v2963
    %v5401 = vsel %vm5393, %v5336, %v2964
    %v5402 = vsel %vm5393, %v5337, %v2965
    %v5403 = vsel %vm5393, %v5338, %v2966
    %v5404 = vsel %vm5393, %v5339, %v2967
    %v5405 = vsel %vm5393, %v5340, %v2968
    %v5406 = vsel %vm5393, %v5341, %v2969
    %v5407 = vsel %vm5393, %v5342, %v2970
    %v5408 = vsel %vm5393, %v5343, %v2971
    %v5409 = vsel %vm5393, %v5344, %v2972
    %v5410 = vsel %vm5393, %v5345, %v2973
    %v5411 = vsel %vm5393, %v5346, %v2974
    %v5412 = vsel %vm5393, %v5347, %v2975
    %v5413 = vsel %vm5393, %v5348, %v2976
    %v5414 = vsel %vm5393, %v5349, %v2977
    %v5415 = vsel %vm5393, %v5350, %v2978
    %v5416 = vsel %vm5393, %v5351, %v2979
    %v5417 = vsel %vm5393, %v5352, %v2980
    %v5418 = vsel %vm5393, %v5353, %v2981
    %v5419 = vsel %vm5393, %v5354, %v2982
    %v5420 = vsel %vm5393, %v5355, %v2983
    %v5421 = vsel %vm5393, %v5356, %v2984
    %v5422 = vsel %vm5393, %v5357, %v2985
    %v5423 = vsel %vm5393, %v5358, %v2986
    %v5424 = vsel %vm5393, %v5359, %v2987
    %v5425 = vsel %vm5393, %v5360, %v2988
    %v5426 = vsel %vm5393, %v5361, %v2989
    %v5427 = vsel %vm5393, %v5362, %v2990
    %v5428 = vsel %vm5393, %v5363, %v2991
    %v5429 = vsel %vm5393, %v5364, %v2992
    %v5430 = vsel %vm5393, %v5365, %v2993
    %v5431 = vsel %vm5393, %v5366, %v2994
    %v5432 = vsel %vm5393, %v5367, %v2995
    %v5433 = vsel %vm5393, %v5368, %v2996
    %v5434 = vsel %vm5393, %v5369, %v2997
    %v5435 = vsel %vm5393, %v5370, %v2998
    %v5436 = vsel %vm5393, %v5371, %v2999
    %v5437 = vsel %vm5393, %v5372, %v3000
    %v5438 = vsel %vm5393, %v5373, %v3001
    %v5439 = vsel %vm5393, %v5374, %v3002
    %v5440 = vsel %vm5393, %v5375, %v3003
    %v5441 = vsel %vm5393, %v5376, %v3004
    %v5442 = vsel %vm5393, %v5377, %v3005
    %v5443 = vsel %vm5393, %v5378, %v3006
    %v5444 = vsel %vm5393, %v5379, %v3007
    %v5445 = vsel %vm5393, %v5380, %v3008
    %v5446 = vsel %vm5393, %v5381, %v3009
    %v5447 = vsel %vm5393, %v5382, %v3010
    %v5448 = vsel %vm5393, %v5383, %v3011
    %v5449 = vsel %vm5393, %v5384, %v3012
    %v5450 = vsel %vm5393, %v5385, %v3013
    %v5451 = vsel %vm5393, %v5386, %v3014
    %v5452 = vsel %vm5393, %v5387, %v3015
    %v5453 = vsel %vm5393, %v5388, %v3016
    %v5454 = vsel %vm5393, %v5389, %v3017
    %v5455 = vsel %vm5393, %v5390, %v3018
    %v5456 = vsel %vm5393, %v5391, %v3019
    %v5457 = vsel %vm5393, %v5392, %v3020
    %vm5458 = vcmask 121856
    %v5459 = vsel %vm5458, %v5394, %v3346
    %v5460 = vsel %vm5458, %v5395, %v3349
    %v5461 = vsel %vm5458, %v5396, %v3352
    %v5462 = vsel %vm5458, %v5397, %v3355
    %v5463 = vsel %vm5458, %v5398, %v3358
    %v5464 = vsel %vm5458, %v5399, %v3361
    %v5465 = vsel %vm5458, %v5400, %v3364
    %v5466 = vsel %vm5458, %v5401, %v3367
    %v5467 = vsel %vm5458, %v5402, %v3370
    %v5468 = vsel %vm5458, %v5403, %v3373
    %v5469 = vsel %vm5458, %v5404, %v3376
    %v5470 = vsel %vm5458, %v5405, %v3379
    %v5471 = vsel %vm5458, %v5406, %v3382
    %v5472 = vsel %vm5458, %v5407, %v3385
    %v5473 = vsel %vm5458, %v5408, %v3388
    %v5474 = vsel %vm5458, %v5409, %v3391
    %v5475 = vsel %vm5458, %v5410, %v3394
    %v5476 = vsel %vm5458, %v5411, %v3397
    %v5477 = vsel %vm5458, %v5412, %v3400
    %v5478 = vsel %vm5458, %v5413, %v3403
    %v5479 = vsel %vm5458, %v5414, %v3406
    %v5480 = vsel %vm5458, %v5415, %v3409
    %v5481 = vsel %vm5458, %v5416, %v3412
    %v5482 = vsel %vm5458, %v5417, %v3415
    %v5483 = vsel %vm5458, %v5418, %v3418
    %v5484 = vsel %vm5458, %v5419, %v3421
    %v5485 = vsel %vm5458, %v5420, %v3424
    %v5486 = vsel %vm5458, %v5421, %v3427
    %v5487 = vsel %vm5458, %v5422, %v3430
    %v5488 = vsel %vm5458, %v5423, %v3433
    %v5489 = vsel %vm5458, %v5424, %v3436
    %v5490 = vsel %vm5458, %v5425, %v3439
    %v5491 = vsel %vm5458, %v5426, %v3442
    %v5492 = vsel %vm5458, %v5427, %v3445
    %v5493 = vsel %vm5458, %v5428, %v3448
    %v5494 = vsel %vm5458, %v5429, %v3451
    %v5495 = vsel %vm5458, %v5430, %v3454
    %v5496 = vsel %vm5458, %v5431, %v3457
    %v5497 = vsel %vm5458, %v5432, %v3460
    %v5498 = vsel %vm5458, %v5433, %v3463
    %v5499 = vsel %vm5458, %v5434, %v3466
    %v5500 = vsel %vm5458, %v5435, %v3469
    %v5501 = vsel %vm5458, %v5436, %v3472
    %v5502 = vsel %vm5458, %v5437, %v3475
    %v5503 = vsel %vm5458, %v5438, %v3478
    %v5504 = vsel %vm5458, %v5439, %v3481
    %v5505 = vsel %vm5458, %v5440, %v3484
    %v5506 = vsel %vm5458, %v5441, %v3487
    %v5507 = vsel %vm5458, %v5442, %v3490
    %v5508 = vsel %vm5458, %v5443, %v3493
    %v5509 = vsel %vm5458, %v5444, %v3496
    %v5510 = vsel %vm5458, %v5445, %v3499
    %v5511 = vsel %vm5458, %v5446, %v3502
    %v5512 = vsel %vm5458, %v5447, %v3505
    %v5513 = vsel %vm5458, %v5448, %v3508
    %v5514 = vsel %vm5458, %v5449, %v3511
    %v5515 = vsel %vm5458, %v5450, %v3514
    %v5516 = vsel %vm5458, %v5451, %v3517
    %v5517 = vsel %vm5458, %v5452, %v3520
    %v5518 = vsel %vm5458, %v5453, %v3523
    %v5519 = vsel %vm5458, %v5454, %v3526
    %v5520 = vsel %vm5458, %v5455, %v3529
    %v5521 = vsel %vm5458, %v5456, %v3532
    %v5522 = vsel %vm5458, %v5457, %v3535
    %vm5523 = vcmask 130048
    %v5524 = vsel %vm5523, %v5459, %v5137
    %v5525 = vsel %vm5523, %v5460, %v5139
    %v5526 = vsel %vm5523, %v5461, %v5141
    %v5527 = vsel %vm5523, %v5462, %v5143
    %v5528 = vsel %vm5523, %v5463, %v5145
    %v5529 = vsel %vm5523, %v5464, %v5147
    %v5530 = vsel %vm5523, %v5465, %v5149
    %v5531 = vsel %vm5523, %v5466, %v5151
    %v5532 = vsel %vm5523, %v5467, %v5153
    %v5533 = vsel %vm5523, %v5468, %v5155
    %v5534 = vsel %vm5523, %v5469, %v5157
    %v5535 = vsel %vm5523, %v5470, %v5159
    %v5536 = vsel %vm5523, %v5471, %v5161
    %v5537 = vsel %vm5523, %v5472, %v5163
    %v5538 = vsel %vm5523, %v5473, %v5165
    %v5539 = vsel %vm5523, %v5474, %v5167
    %v5540 = vsel %vm5523, %v5475, %v5169
    %v5541 = vsel %vm5523, %v5476, %v5171
    %v5542 = vsel %vm5523, %v5477, %v5173
    %v5543 = vsel %vm5523, %v5478, %v5175
    %v5544 = vsel %vm5523, %v5479, %v5177
    %v5545 = vsel %vm5523, %v5480, %v5179
    %v5546 = vsel %vm5523, %v5481, %v5181
    %v5547 = vsel %vm5523, %v5482, %v5183
    %v5548 = vsel %vm5523, %v5483, %v5185
    %v5549 = vsel %vm5523, %v5484, %v5187
    %v5550 = vsel %vm5523, %v5485, %v5189
    %v5551 = vsel %vm5523, %v5486, %v5191
    %v5552 = vsel %vm5523, %v5487, %v5193
    %v5553 = vsel %vm5523, %v5488, %v5195
    %v5554 = vsel %vm5523, %v5489, %v5197
    %v5555 = vsel %vm5523, %v5490, %v5199
    %v5556 = vsel %vm5523, %v5491, %v5201
    %v5557 = vsel %vm5523, %v5492, %v5203
    %v5558 = vsel %vm5523, %v5493, %v5205
    %v5559 = vsel %vm5523, %v5494, %v5207
    %v5560 = vsel %vm5523, %v5495, %v5209
    %v5561 = vsel %vm5523, %v5496, %v5211
    %v5562 = vsel %vm5523, %v5497, %v5213
    %v5563 = vsel %vm5523, %v5498, %v5215
    %v5564 = vsel %vm5523, %v5499, %v5217
    %v5565 = vsel %vm5523, %v5500, %v5219
    %v5566 = vsel %vm5523, %v5501, %v5221
    %v5567 = vsel %vm5523, %v5502, %v5223
    %v5568 = vsel %vm5523, %v5503, %v5225
    %v5569 = vsel %vm5523, %v5504, %v5227
    %v5570 = vsel %vm5523, %v5505, %v5229
    %v5571 = vsel %vm5523, %v5506, %v5231
    %v5572 = vsel %vm5523, %v5507, %v5233
    %v5573 = vsel %vm5523, %v5508, %v5235
    %v5574 = vsel %vm5523, %v5509, %v5237
    %v5575 = vsel %vm5523, %v5510, %v5239
    %v5576 = vsel %vm5523, %v5511, %v5241
    %v5577 = vsel %vm5523, %v5512, %v5243
    %v5578 = vsel %vm5523, %v5513, %v5245
    %v5579 = vsel %vm5523, %v5514, %v5247
    %v5580 = vsel %vm5523, %v5515, %v5249
    %v5581 = vsel %vm5523, %v5516, %v5251
    %v5582 = vsel %vm5523, %v5517, %v5253
    %v5583 = vsel %vm5523, %v5518, %v5255
    %v5584 = vsel %vm5523, %v5519, %v5257
    %v5585 = vsel %vm5523, %v5520, %v5259
    %v5586 = vsel %vm5523, %v5521, %v5261
    %v5587 = vsel %vm5523, %v5522, %v5263
    %vm5588 = vcmask 138240
    %v5589 = vsel %vm5588, %v5524, 0.0
    %v5590 = vsel %vm5588, %v5525, 0.0
    %v5591 = vsel %vm5588, %v5526, 0.0
    %v5592 = vsel %vm5588, %v5527, 0.0
    %v5593 = vsel %vm5588, %v5528, 0.0
    %v5594 = vsel %vm5588, %v5529, 0.0
    %v5595 = vsel %vm5588, %v5530, 0.0
    %v5596 = vsel %vm5588, %v5531, 0.0
    %v5597 = vsel %vm5588, %v5532, 0.0
    %v5598 = vsel %vm5588, %v5533, 0.0
    %v5599 = vsel %vm5588, %v5534, 0.0
    %v5600 = vsel %vm5588, %v5535, 0.0
    %v5601 = vsel %vm5588, %v5536, 0.0
    %v5602 = vsel %vm5588, %v5537, 0.0
    %v5603 = vsel %vm5588, %v5538, 0.0
    %v5604 = vsel %vm5588, %v5539, 0.0
    %v5605 = vsel %vm5588, %v5540, 0.0
    %v5606 = vsel %vm5588, %v5541, 0.0
    %v5607 = vsel %vm5588, %v5542, 0.0
    %v5608 = vsel %vm5588, %v5543, 0.0
    %v5609 = vsel %vm5588, %v5544, 0.0
    %v5610 = vsel %vm5588, %v5545, 0.0
    %v5611 = vsel %vm5588, %v5546, 0.0
    %v5612 = vsel %vm5588, %v5547, 0.0
    %v5613 = vsel %vm5588, %v5548, 0.0
    %v5614 = vsel %vm5588, %v5549, 0.0
    %v5615 = vsel %vm5588, %v5550, 0.0
    %v5616 = vsel %vm5588, %v5551, 0.0
    %v5617 = vsel %vm5588, %v5552, 0.0
    %v5618 = vsel %vm5588, %v5553, 0.0
    %v5619 = vsel %vm5588, %v5554, 0.0
    %v5620 = vsel %vm5588, %v5555, 0.0
    %v5621 = vsel %vm5588, %v5556, 0.0
    %v5622 = vsel %vm5588, %v5557, 0.0
    %v5623 = vsel %vm5588, %v5558, 0.0
    %v5624 = vsel %vm5588, %v5559, 0.0
    %v5625 = vsel %vm5588, %v5560, 0.0
    %v5626 = vsel %vm5588, %v5561, 0.0
    %v5627 = vsel %vm5588, %v5562, 0.0
    %v5628 = vsel %vm5588, %v5563, 0.0
    %v5629 = vsel %vm5588, %v5564, 0.0
    %v5630 = vsel %vm5588, %v5565, 0.0
    %v5631 = vsel %vm5588, %v5566, 0.0
    %v5632 = vsel %vm5588, %v5567, 0.0
    %v5633 = vsel %vm5588, %v5568, 0.0
    %v5634 = vsel %vm5588, %v5569, 0.0
    %v5635 = vsel %vm5588, %v5570, 0.0
    %v5636 = vsel %vm5588, %v5571, 0.0
    %v5637 = vsel %vm5588, %v5572, 0.0
    %v5638 = vsel %vm5588, %v5573, 0.0
    %v5639 = vsel %vm5588, %v5574, 0.0
    %v5640 = vsel %vm5588, %v5575, 0.0
    %v5641 = vsel %vm5588, %v5576, 0.0
    %v5642 = vsel %vm5588, %v5577, 0.0
    %v5643 = vsel %vm5588, %v5578, 0.0
    %v5644 = vsel %vm5588, %v5579, 0.0
    %v5645 = vsel %vm5588, %v5580, 0.0
    %v5646 = vsel %vm5588, %v5581, 0.0
    %v5647 = vsel %vm5588, %v5582, 0.0
    %v5648 = vsel %vm5588, %v5583, 0.0
    %v5649 = vsel %vm5588, %v5584, 0.0
    %v5650 = vsel %vm5588, %v5585, 0.0
    %v5651 = vsel %vm5588, %v5586, 0.0
    %v5652 = vsel %vm5588, %v5587, 0.0
    %5653 = vst [vmem:[#allocation2] sm:$0xff] %v5589
    %5654 = vst [vmem:[#allocation2 + $0x8] sm:$0xff] %v5590
    %5655 = vst [vmem:[#allocation2 + $0x10] sm:$0xff] %v5591
    %5656 = vst [vmem:[#allocation2 + $0x18] sm:$0xff] %v5592
    %5657 = vst [vmem:[#allocation2 + $0x20] sm:$0xff] %v5593
    %5658 = vst [vmem:[#allocation2 + $0x28] sm:$0xff] %v5594
    %5659 = vst [vmem:[#allocation2 + $0x30] sm:$0xff] %v5595
    %5660 = vst [vmem:[#allocation2 + $0x38] sm:$0xff] %v5596
    %5661 = vst [vmem:[#allocation2 + $0x40] sm:$0xff] %v5597
    %5662 = vst [vmem:[#allocation2 + $0x48] sm:$0xff] %v5598
    %5663 = vst [vmem:[#allocation2 + $0x50] sm:$0xff] %v5599
    %5664 = vst [vmem:[#allocation2 + $0x58] sm:$0xff] %v5600
    %5665 = vst [vmem:[#allocation2 + $0x60] sm:$0xff] %v5601
    %5666 = vst [vmem:[#allocation2 + $0x68] sm:$0xff] %v5602
    %5667 = vst [vmem:[#allocation2 + $0x70] sm:$0xff] %v5603
    %5668 = vst [vmem:[#allocation2 + $0x78] sm:$0xff] %v5604
    %5669 = vst [vmem:[#allocation2 + $0x80] sm:$0xff] %v5605
    %5670 = vst [vmem:[#allocation2 + $0x88] sm:$0xff] %v5606
    %5671 = vst [vmem:[#allocation2 + $0x90] sm:$0xff] %v5607
    %5672 = vst [vmem:[#allocation2 + $0x98] sm:$0xff] %v5608
    %5673 = vst [vmem:[#allocation2 + $0xa0] sm:$0xff] %v5609
    %5674 = vst [vmem:[#allocation2 + $0xa8] sm:$0xff] %v5610
    %5675 = vst [vmem:[#allocation2 + $0xb0] sm:$0xff] %v5611
    %5676 = vst [vmem:[#allocation2 + $0xb8] sm:$0xff] %v5612
    %5677 = vst [vmem:[#allocation2 + $0xc0] sm:$0xff] %v5613
    %5678 = vst [vmem:[#allocation2 + $0xc8] sm:$0xff] %v5614
    %5679 = vst [vmem:[#allocation2 + $0xd0] sm:$0xff] %v5615
    %5680 = vst [vmem:[#allocation2 + $0xd8] sm:$0xff] %v5616
    %5681 = vst [vmem:[#allocation2 + $0xe0] sm:$0xff] %v5617
    %5682 = vst [vmem:[#allocation2 + $0xe8] sm:$0xff] %v5618
    %5683 = vst [vmem:[#allocation2 + $0xf0] sm:$0xff] %v5619
    %5684 = vst [vmem:[#allocation2 + $0xf8] sm:$0xff] %v5620
    %5685 = vst [vmem:[#allocation2 + $0x100] sm:$0xff] %v5621
    %5686 = vst [vmem:[#allocation2 + $0x108] sm:$0xff] %v5622
    %5687 = vst [vmem:[#allocation2 + $0x110] sm:$0xff] %v5623
    %5688 = vst [vmem:[#allocation2 + $0x118] sm:$0xff] %v5624
    %5689 = vst [vmem:[#allocation2 + $0x120] sm:$0xff] %v5625
    %5690 = vst [vmem:[#allocation2 + $0x128] sm:$0xff] %v5626
    %5691 = vst [vmem:[#allocation2 + $0x130] sm:$0xff] %v5627
    %5692 = vst [vmem:[#allocation2 + $0x138] sm:$0xff] %v5628
    %5693 = vst [vmem:[#allocation2 + $0x140] sm:$0xff] %v5629
    %5694 = vst [vmem:[#allocation2 + $0x148] sm:$0xff] %v5630
    %5695 = vst [vmem:[#allocation2 + $0x150] sm:$0xff] %v5631
    %5696 = vst [vmem:[#allocation2 + $0x158] sm:$0xff] %v5632
    %5697 = vst [vmem:[#allocation2 + $0x160] sm:$0xff] %v5633
    %5698 = vst [vmem:[#allocation2 + $0x168] sm:$0xff] %v5634
    %5699 = vst [vmem:[#allocation2 + $0x170] sm:$0xff] %v5635
    %5700 = vst [vmem:[#allocation2 + $0x178] sm:$0xff] %v5636
    %5701 = vst [vmem:[#allocation2 + $0x180] sm:$0xff] %v5637
    %5702 = vst [vmem:[#allocation2 + $0x188] sm:$0xff] %v5638
    %5703 = vst [vmem:[#allocation2 + $0x190] sm:$0xff] %v5639
    %5704 = vst [vmem:[#allocation2 + $0x198] sm:$0xff] %v5640
    %5705 = vst [vmem:[#allocation2 + $0x1a0] sm:$0xff] %v5641
    %5706 = vst [vmem:[#allocation2 + $0x1a8] sm:$0xff] %v5642
    %5707 = vst [vmem:[#allocation2 + $0x1b0] sm:$0xff] %v5643
    %5708 = vst [vmem:[#allocation2 + $0x1b8] sm:$0xff] %v5644
    %5709 = vst [vmem:[#allocation2 + $0x1c0] sm:$0xff] %v5645
    %5710 = vst [vmem:[#allocation2 + $0x1c8] sm:$0xff] %v5646
    %5711 = vst [vmem:[#allocation2 + $0x1d0] sm:$0xff] %v5647
    %5712 = vst [vmem:[#allocation2 + $0x1d8] sm:$0xff] %v5648
    %5713 = vst [vmem:[#allocation2 + $0x1e0] sm:$0xff] %v5649
    %5714 = vst [vmem:[#allocation2 + $0x1e8] sm:$0xff] %v5650
    %5715 = vst [vmem:[#allocation2 + $0x1f0] sm:$0xff] %v5651
    %5716 = vst [vmem:[#allocation2 + $0x1f8] sm:$0xff] %v5652
    // Predicated region
    $region30: #{tpu_custom_call.1} parent=1 // pred_check
      _
    $region31: #{tpu_custom_call.1} parent=1 // pred_check_branch
      %5718 = sbr.rel (0) target = $region33
    $region32: #{tpu_custom_call.1} parent=1 // pred_region
      %5720 = vsyncadd [#allocation3], 0
      %s5721 = sshll.u32 [#allocation2], 4
      %s5722 = int_to_ptr.vmem [resolvable:$true] %s5721
      %s5723 = sshll.u32 %s7, 4
      %s5724 = int_to_ptr.hbm [resolvable:$true] %s5723
      %5729 = dma.vmem_to_hbm [thread:$0]  %s5722, 8192, %s5724, [#allocation3], 128, 128, 8
    $region33: #{tpu_custom_call.1} parent=1 // pred_fallthru
      _
    // Predicated region
    $region34: #{tpu_custom_call.1} parent=1 // pred_check
      _
    $region35: #{tpu_custom_call.1} parent=1 // pred_check_branch
      %5731 = sbr.rel (0) target = $region37
    $region36: #{tpu_custom_call.1} parent=1 // pred_region
      %5733 = dma.done [#allocation3], 8192
    $region37: #{tpu_custom_call.1} parent=1 // pred_fallthru
      _
    %5734 = vsyncpa [#allocation3], 1

</llo_original>
